<compile_context>
chip_gen: v5e
topology: v5e:2x2
jax: 0.10.0
libtpu: 0.0.40
codegen_flags: <defaults>
</compile_context>

<pallas_src>
import functools

import numpy as np
import jax
import jax.numpy as jnp
from jax import lax
from jax.experimental import pallas as pl
from jax.experimental.pallas import tpu as pltpu


_VMEM_BUDGET = 36 * 1024 * 1024     # block-size selection budget
_VMEM_LIMIT = 48 * 1024 * 1024      # scoped VMEM limit passed to Mosaic


# ------------------------------ helpers ------------------------------------

def _pick_tile(n, cap):
    """Block size for a tiled dim: the whole dim when it fits, otherwise the
    largest divisor of n that is a multiple of 16 and <= cap (falling back to
    a plain multiple of 16/8)."""
    if n <= cap:
        return n
    best = 0
    for d in range(16, cap + 1, 16):
        if n % d == 0:
            best = d
    if best:
        return best
    if cap >= 16:
        return (cap // 16) * 16
    return max(8, (cap // 8) * 8)


# ------------------------------ kernels ------------------------------------

def _embed_kernel(s_ref, w_ref, b_ref, ot_ref, of_ref):
    # s_ref: (rt, 3) scalar fields [x_time_shift, x_freq_shift, cond]
    # w_ref: (4, D)  rows [w_time_in, w_time_cond, w_freq_in, w_freq_cond]
    # b_ref: (2, D)  rows [b_time_in + b_time_cond, b_freq_in + b_freq_cond]
    s = s_ref[...]
    w = w_ref[...]
    b = b_ref[...]
    xt = s[:, 0:1]
    xf = s[:, 1:2]
    c = s[:, 2:3]
    ot_ref[...] = (xt * w[0:1, :] + c * w[1:2, :] + b[0:1, :]).astype(jnp.bfloat16)
    of_ref[...] = (xf * w[2:3, :] + c * w[3:4, :] + b[1:2, :]).astype(jnp.bfloat16)


def _gru_kernel(x_ref, wih_ref, whh_ref, bx_ref, bhn_ref, *refs, ndir):
    # x_ref   : (1, L, nb, Din) bf16, recurrence axis L leading in the block
    # wih_ref : (ndir, Din, 3H) bf16 (gates packed [r | z | n] on the lane axis)
    # whh_ref : (ndir, H, 3H)   bf16
    # bx_ref  : (ndir, 1, 3H)   f32  = b_ih + [b_hr, b_hz, 0]  (folded)
    # bhn_ref : (ndir, 1, H)    f32  = b_hn (must stay inside the recurrence)
    # refs    : ndir outputs (1, L, nb, H) bf16,
    #           scratch gx (ndir, L, nb, 3H) bf16, scratch h (ndir, nb, H) bf16
    out_refs = refs[:ndir]
    gx_ref = refs[ndir]
    h_ref = refs[ndir + 1]

    L = x_ref.shape[1]
    nb = x_ref.shape[2]
    din = x_ref.shape[3]
    H = whh_ref.shape[1]

    # Hoisted input projection: one fused (rows, Din) @ (Din, 3H) matmul per
    # direction, chunked along L so the f32 intermediate stays ~2 MiB.
    chunk_l = max(1, min(L, (2 * 1024 * 1024) // max(1, 4 * 3 * H * nb)))
    for l0 in range(0, L, chunk_l):
        cl = min(chunk_l, L - l0)
        xb = x_ref[0, l0:l0 + cl].reshape(cl * nb, din)
        for d in range(ndir):
            gx = jnp.dot(xb, wih_ref[d], preferred_element_type=jnp.float32)
            gx = gx + bx_ref[d]
            gx_ref[d, l0:l0 + cl] = gx.reshape(cl, nb, 3 * H).astype(jnp.bfloat16)

    h_ref[...] = jnp.zeros_like(h_ref)

    # Serial recurrence: one fused (nb, H) @ (H, 3H) matmul per direction/step.
    def step(i, carry):
        for d in range(ndir):
            s = i if d == 0 else L - 1 - i          # direction 1 walks backwards
            h = h_ref[d]                            # (nb, H) bf16
            gh = jnp.dot(h, whh_ref[d], preferred_element_type=jnp.float32)
            gx = gx_ref[d, s]                       # (nb, 3H) bf16
            r = jax.nn.sigmoid(gx[:, 0:H] + gh[:, 0:H])
            z = jax.nn.sigmoid(gx[:, H:2 * H] + gh[:, H:2 * H])
            n = jnp.tanh(gx[:, 2 * H:3 * H] + r * (gh[:, 2 * H:3 * H] + bhn_ref[d]))
            h_new = (1.0 - z) * n + z * h
            hb = h_new.astype(jnp.bfloat16)
            h_ref[d] = hb
            out_refs[d][0, s] = hb
        return carry

    lax.fori_loop(0, L, step, 0)


def _time_mix_kernel(x1_ref, x2_ref, x3_ref, res_ref, xfq_ref, w_ref, b_ref,
                     ot_ref, osum_ref):
    # All blocks are M-major: (1, tm, tt, H/D), bf16.
    # x1: time GRU output (already transposed to M-major), x2/x3: bi-freq GRU.
    # w_ref: (3, H, D) bf16 (time_out weight split over the concat), b: (1, D).
    tm = x1_ref.shape[1]
    tt = x1_ref.shape[2]
    H = x1_ref.shape[3]
    D = w_ref.shape[2]
    rows = tm * tt
    a1 = x1_ref[0].reshape(rows, H)
    a2 = x2_ref[0].reshape(rows, H)
    a3 = x3_ref[0].reshape(rows, H)
    y = (jnp.dot(a1, w_ref[0], preferred_element_type=jnp.float32)
         + jnp.dot(a2, w_ref[1], preferred_element_type=jnp.float32)
         + jnp.dot(a3, w_ref[2], preferred_element_type=jnp.float32)
         + b_ref[...])
    y = y + res_ref[0].reshape(rows, D)
    ysum = y + xfq_ref[0].reshape(rows, D)
    ot_ref[0] = y.reshape(tm, tt, D).astype(jnp.bfloat16)
    osum_ref[0] = ysum.reshape(tm, tt, D).astype(jnp.bfloat16)


def _freq_mix_kernel(xf_ref, res_ref, w_ref, b_ref, o_ref):
    # xf_ref : (1, tm, tt, H) bf16 (freq GRU output), res_ref: (1, tm, tt, D).
    tm = xf_ref.shape[1]
    tt = xf_ref.shape[2]
    H = xf_ref.shape[3]
    D = w_ref.shape[1]
    rows = tm * tt
    a = xf_ref[0].reshape(rows, H)
    y = (jnp.dot(a, w_ref[...], preferred_element_type=jnp.float32)
         + b_ref[...]
         + res_ref[0].reshape(rows, D))
    o_ref[0] = y.reshape(tm, tt, D).astype(jnp.bfloat16)


def _head_kernel(xt_ref, xf_ref, nz_ref, wa_ref, wb_ref, b_ref, *out_refs,
                 n_mix, emit_params):
    # xt/xf: (rt, TT, D) bf16 (M-major rows); nz: (rt, TT) f32
    # wa/wb: (D, 3K) bf16; b: (1, 3K) f32
    rt, TT, D = xt_ref.shape
    K = n_mix
    rows = rt * TT
    a = xt_ref[...].reshape(rows, D)
    c = xf_ref[...].reshape(rows, D)
    y = (jnp.dot(a, wa_ref[...], preferred_element_type=jnp.float32)
         + jnp.dot(c, wb_ref[...], preferred_element_type=jnp.float32)
         + b_ref[...])
    y = y.reshape(rt, TT, 3 * K)
    mu = y[:, :, 0:K]
    sg = y[:, :, K:2 * K]
    pz = y[:, :, 2 * K:3 * K]
    # sigma = exp(sigma / (K * ||sigma||_2))  (epsilon guards an all-zero row)
    inv_nrm = lax.rsqrt(jnp.sum(sg * sg, axis=-1, keepdims=True) + 1e-12)
    sg = jnp.exp(sg * inv_nrm * (1.0 / K))
    # pi = softmax(pi, axis=-1)  (exact division)
    pmax = jnp.max(pz, axis=-1, keepdims=True)
    e = jnp.exp(pz - pmax)
    pi = e / jnp.sum(e, axis=-1, keepdims=True)
    # mixture collapse (forward_sample)
    out_refs[0][...] = (jnp.sum(mu * pi, axis=-1)
                        + jnp.sum(sg * pi, axis=-1) * nz_ref[...])
    if emit_params:
        pk = out_refs[1]
        pk[:, :, 0:K] = mu
        pk[:, :, K:2 * K] = sg
        pk[:, :, 2 * K:3 * K] = pi


# ------------------------------ wrappers ------------------------------------

def embed_inputs(scalars, w_pack, b_pack):
    R = scalars.shape[0]
    D = w_pack.shape[1]
    rt = _pick_tile(R, 2048)
    grid = (pl.cdiv(R, rt),)
    return pl.pallas_call(
        _embed_kernel,
        grid=grid,
        in_specs=[pl.BlockSpec((rt, 3), lambda i: (i, 0)),
                  pl.BlockSpec((4, D), lambda i: (0, 0)),
                  pl.BlockSpec((2, D), lambda i: (0, 0))],
        out_specs=(pl.BlockSpec((rt, D), lambda i: (i, 0)),
                   pl.BlockSpec((rt, D), lambda i: (i, 0))),
        out_shape=(jax.ShapeDtypeStruct((R, D), jnp.bfloat16),
                   jax.ShapeDtypeStruct((R, D), jnp.bfloat16)),
        compiler_params=pltpu.CompilerParams(dimension_semantics=("parallel",)),
    )(scalars, w_pack, b_pack)


def gru_seq(x, gp, row_cap=128):
    """GRU(s) with the recurrence along axis 1 of x: x is (B, L, N, Din); every
    row of axis 2 is an independent sequence.  Returns ndir outputs (B,L,N,H)."""
    Bb, L, N, din = x.shape
    wih, whh, bx, bhn = gp["wih"], gp["whh"], gp["bx"], gp["bhn"]
    ndir = wih.shape[0]
    H = whh.shape[1]
    # VMEM per independent row: double-buffered bf16 input/output blocks plus
    # the bf16 gx scratch.
    per_row = 2 * L * din * 2 + ndir * 2 * L * H * 2 + ndir * L * 3 * H * 2
    cap = max(8, min(row_cap, _VMEM_BUDGET // max(per_row, 1)))
    nb = _pick_tile(N, cap)
    grid = (Bb, pl.cdiv(N, nb))

    def _full(a):
        nd = a.ndim
        return pl.BlockSpec(a.shape, lambda b, j, nd=nd: (0,) * nd)

    return pl.pallas_call(
        functools.partial(_gru_kernel, ndir=ndir),
        grid=grid,
        in_specs=[pl.BlockSpec((1, L, nb, din), lambda b, j: (b, 0, j, 0)),
                  _full(wih), _full(whh), _full(bx), _full(bhn)],
        out_specs=tuple(pl.BlockSpec((1, L, nb, H), lambda b, j: (b, 0, j, 0))
                        for _ in range(ndir)),
        out_shape=tuple(jax.ShapeDtypeStruct((Bb, L, N, H), jnp.bfloat16)
                        for _ in range(ndir)),
        scratch_shapes=[pltpu.VMEM((ndir, L, nb, 3 * H), jnp.bfloat16),
                        pltpu.VMEM((ndir, nb, H), jnp.bfloat16)],
        compiler_params=pltpu.CompilerParams(
            dimension_semantics=("parallel", "parallel"),
            vmem_limit_bytes=_VMEM_LIMIT),
    )(x, wih, whh, bx, bhn)


def time_mix(x1m, x2, x3, x_time_m, x_freq_m, w_stack, bias):
    B, M, T, H = x1m.shape
    D = w_stack.shape[2]
    cell = (3 * H + 4 * D) * 6                    # rough bytes per (m, t) cell
    max_cells = max(256, _VMEM_BUDGET // max(cell, 1))
    tm = _pick_tile(M, min(128, max_cells))
    tt = _pick_tile(T, max(8, min(32, max_cells // max(tm, 1))))
    grid = (B, pl.cdiv(M, tm), pl.cdiv(T, tt))
    blk_h = pl.BlockSpec((1, tm, tt, H), lambda b, jm, jt: (b, jm, jt, 0))
    blk_d = pl.BlockSpec((1, tm, tt, D), lambda b, jm, jt: (b, jm, jt, 0))
    return pl.pallas_call(
        _time_mix_kernel,
        grid=grid,
        in_specs=[blk_h, blk_h, blk_h, blk_d, blk_d,
                  pl.BlockSpec((3, H, D), lambda b, jm, jt: (0, 0, 0)),
                  pl.BlockSpec((1, D), lambda b, jm, jt: (0, 0))],
        out_specs=(blk_d, blk_d),
        out_shape=(jax.ShapeDtypeStruct((B, M, T, D), jnp.bfloat16),
                   jax.ShapeDtypeStruct((B, M, T, D), jnp.bfloat16)),
        compiler_params=pltpu.CompilerParams(
            dimension_semantics=("parallel", "parallel", "parallel"),
            vmem_limit_bytes=_VMEM_LIMIT),
    )(x1m, x2, x3, x_time_m, x_freq_m, w_stack, bias)


def freq_mix(xfm, x_freq_m, w, bias):
    B, M, T, H = xfm.shape
    D = w.shape[1]
    cell = (H + 2 * D) * 6
    max_cells = max(256, _VMEM_BUDGET // max(cell, 1))
    tm = _pick_tile(M, min(128, max_cells))
    tt = _pick_tile(T, max(8, min(32, max_cells // max(tm, 1))))
    grid = (B, pl.cdiv(M, tm), pl.cdiv(T, tt))
    blk_h = pl.BlockSpec((1, tm, tt, H), lambda b, jm, jt: (b, jm, jt, 0))
    blk_d = pl.BlockSpec((1, tm, tt, D), lambda b, jm, jt: (b, jm, jt, 0))
    return pl.pallas_call(
        _freq_mix_kernel,
        grid=grid,
        in_specs=[blk_h, blk_d,
                  pl.BlockSpec((H, D), lambda b, jm, jt: (0, 0)),
                  pl.BlockSpec((1, D), lambda b, jm, jt: (0, 0))],
        out_specs=blk_d,
        out_shape=jax.ShapeDtypeStruct((B, M, T, D), jnp.bfloat16),
        compiler_params=pltpu.CompilerParams(
            dimension_semantics=("parallel", "parallel", "parallel"),
            vmem_limit_bytes=_VMEM_LIMIT),
    )(xfm, x_freq_m, w, bias)


def mixture_head(x_time_m, x_freq_m, noise_m, wa, wb, bias, sample):
    B, M, T, D = x_time_m.shape
    K3 = wa.shape[1]
    K = K3 // 3
    R = B * M
    xt = x_time_m.reshape(R, T, D)
    xf = x_freq_m.reshape(R, T, D)
    nz = noise_m.reshape(R, T)
    per_row = T * D * 8 + T * K3 * 16 + T * 16
    rt = _pick_tile(R, max(8, min(256, (24 * 1024 * 1024) // max(per_row, 1))))
    grid = (pl.cdiv(R, rt),)
    feat = pl.BlockSpec((rt, T, D), lambda i: (i, 0, 0))
    row2 = pl.BlockSpec((rt, T), lambda i: (i, 0))
    if sample:
        out_specs = (row2,)
        out_shape = (jax.ShapeDtypeStruct((R, T), jnp.float32),)
    else:
        out_specs = (row2, pl.BlockSpec((rt, T, K3), lambda i: (i, 0, 0)))
        out_shape = (jax.ShapeDtypeStruct((R, T), jnp.float32),
                     jax.ShapeDtypeStruct((R, T, K3), jnp.float32))
    outs = pl.pallas_call(
        functools.partial(_head_kernel, n_mix=K, emit_params=not sample),
        grid=grid,
        in_specs=[feat, feat, row2,
                  pl.BlockSpec((D, K3), lambda i: (0, 0)),
                  pl.BlockSpec((D, K3), lambda i: (0, 0)),
                  pl.BlockSpec((1, K3), lambda i: (0, 0))],
        out_specs=out_specs,
        out_shape=out_shape,
        compiler_params=pltpu.CompilerParams(
            dimension_semantics=("parallel",), vmem_limit_bytes=_VMEM_LIMIT),
    )(xt, xf, nz, wa, wb, bias)
    samp = outs[0].reshape(B, M, T)
    if sample:
        return samp
    return samp, outs[1].reshape(B, M, T, K3)


# --------------------------- parameter creation ------------------------------

def _uniform(key, shape, scale):
    return jax.random.uniform(key, shape, jnp.float32, -scale, scale)


def _init_linear(key, din, dout):
    k1, k2 = jax.random.split(key)
    s = 1.0 / float(np.sqrt(din))
    return _uniform(k1, (din, dout), s), _uniform(k2, (dout,), s)


def _init_gru(key, din, h, ndir):
    s = 1.0 / float(np.sqrt(h))
    wih, whh, bx, bhn = [], [], [], []
    for k in jax.random.split(key, ndir):
        k1, k2, k3, k4 = jax.random.split(k, 4)
        wi = _uniform(k1, (din, 3 * h), s)          # gates packed [r | z | n]
        wh = _uniform(k2, (h, 3 * h), s)
        bi = _uniform(k3, (3 * h,), s)
        bh = _uniform(k4, (3 * h,), s)
        wih.append(wi)
        whh.append(wh)
        # Fold b_hh for r and z into the hoisted input projection.
        bx.append((bi + jnp.concatenate(
            [bh[:2 * h], jnp.zeros((h,), jnp.float32)])).reshape(1, 3 * h))
        bhn.append(bh[2 * h:].reshape(1, h))
    return dict(wih=jnp.stack(wih, 0).astype(jnp.bfloat16),
                whh=jnp.stack(whh, 0).astype(jnp.bfloat16),
                bx=jnp.stack(bx, 0),
                bhn=jnp.stack(bhn, 0))


def init_melnet_tier(key, dims, n_layers, n_mixtures=10):
    D = dims
    keys = jax.random.split(key, 5 + n_layers)
    ti_w, ti_b = _init_linear(keys[0], 1, D)   # time_input
    fi_w, fi_b = _init_linear(keys[1], 1, D)   # freq_input
    tc_w, tc_b = _init_linear(keys[2], 1, D)   # time_cond
    fc_w, fc_b = _init_linear(keys[3], 1, D)   # freq_cond
    fo_w, fo_b = _init_linear(keys[4], 2 * D, 3 * n_mixtures)   # fc_out (W^T)
    params = dict(
        embed_w=jnp.stack([ti_w[0], tc_w[0], fi_w[0], fc_w[0]], 0),
        embed_b=jnp.stack([ti_b + tc_b, fi_b + fc_b], 0),
        embed_w_nc=jnp.stack([ti_w[0], jnp.zeros((D,), jnp.float32),
                              fi_w[0], jnp.zeros((D,), jnp.float32)], 0),
        embed_b_nc=jnp.stack([ti_b, fi_b], 0),
        fc_wa=fo_w[:D].astype(jnp.bfloat16),
        fc_wb=fo_w[D:].astype(jnp.bfloat16),
        fc_b=fo_b.reshape(1, 3 * n_mixtures),
        layers=[],
    )
    for i in range(n_layers):
        lk = jax.random.split(keys[5 + i], 5)
        to_w, to_b = _init_linear(lk[3], 3 * D, D)   # time_out (W^T)
        fr_w, fr_b = _init_linear(lk[4], D, D)       # freq_out (W^T)
        params["layers"].append(dict(
            time_rnn=_init_gru(lk[0], D, D, 1),
            bi_rnn=_init_gru(lk[1], D, D, 2),
            freq_rnn=_init_gru(lk[2], D, D, 1),
            time_out_w=jnp.stack([to_w[0:D], to_w[D:2 * D], to_w[2 * D:3 * D]],
                                 0).astype(jnp.bfloat16),
            time_out_b=to_b.reshape(1, D),
            freq_out_w=fr_w.astype(jnp.bfloat16),
            freq_out_b=fr_b.reshape(1, D),
        ))
    return params


# ------------------------------ forward pass --------------------------------

def melnet_tier_forward(params, x, cond, noise, sample=True):
    B, T, M = x.shape
    D = params["embed_w"].shape[1]
    K = params["fc_wa"].shape[1] // 3

    # F.pad(x, [0,0,-1,1,0,0]): shift one step along T, zero-pad the tail.
    x_t_sh = jnp.concatenate([x[:, 1:, :], jnp.zeros((B, 1, M), x.dtype)], axis=1)
    # F.pad(x, [0,0,0,0,-1,1]): shift one step along B, zero-pad the tail
    # (faithful to the PyTorch reference pad ordering).
    x_f_sh = jnp.concatenate([x[1:, :, :], jnp.zeros((1, T, M), x.dtype)], axis=0)

    if M == 1:
        # TODO(synk): degenerate cond.shape[2]==1 branch of the reference; the
        # cond linears are skipped and shaped_cond is broadcast-added (only
        # well defined for T == 1, mirroring the PyTorch behaviour).
        scal = jnp.stack([x_t_sh, x_f_sh, jnp.zeros_like(x)], axis=-1)
        scal_m = jnp.transpose(scal, (0, 2, 1, 3)).reshape(-1, 3)
        xt_r, xf_r = embed_inputs(scal_m, params["embed_w_nc"], params["embed_b_nc"])
        shaped_cond = cond[..., None].reshape(-1, 1, 1, 1)
        x_time_m = (xt_r.reshape(B, M, T, D) + shaped_cond).astype(jnp.bfloat16)
        x_freq_m = (xf_r.reshape(B, M, T, D) + shaped_cond).astype(jnp.bfloat16)
    else:
        scal = jnp.stack([x_t_sh, x_f_sh, cond], axis=-1)            # (B, T, M, 3)
        scal_m = jnp.transpose(scal, (0, 2, 1, 3)).reshape(-1, 3)    # M-major order
        xt_r, xf_r = embed_inputs(scal_m, params["embed_w"], params["embed_b"])
        x_time_m = xt_r.reshape(B, M, T, D)
        x_freq_m = xf_r.reshape(B, M, T, D)

    # T-leading copy of x_time for the time-direction GRU (bf16 XLA transpose).
    x_time_nat = jnp.transpose(x_time_m, (0, 2, 1, 3))               # (B, T, M, D)

    n_layers = len(params["layers"])
    for li, lp in enumerate(params["layers"]):
        (x1,) = gru_seq(x_time_nat, lp["time_rnn"])          # seq over T, T-leading
        x1_m = jnp.transpose(x1, (0, 2, 1, 3))               # -> M-major
        x2, x3 = gru_seq(x_time_m, lp["bi_rnn"])             # fwd/bwd over M
        x_time_m, x_sum_m = time_mix(x1_m, x2, x3, x_time_m, x_freq_m,
                                     lp["time_out_w"], lp["time_out_b"])
        (xfm,) = gru_seq(x_sum_m, lp["freq_rnn"])            # seq over M
        x_freq_m = freq_mix(xfm, x_freq_m, lp["freq_out_w"], lp["freq_out_b"])
        if li + 1 < n_layers:
            x_time_nat = jnp.transpose(x_time_m, (0, 2, 1, 3))

    noise_m = jnp.transpose(noise, (0, 2, 1))                # (B, M, T)
    if sample:
        samp_m = mixture_head(x_time_m, x_freq_m, noise_m,
                              params["fc_wa"], params["fc_wb"], params["fc_b"],
                              sample=True)
        return jnp.transpose(samp_m, (0, 2, 1))              # (B, T, M)
    _, packed = mixture_head(x_time_m, x_freq_m, noise_m,
                             params["fc_wa"], params["fc_wb"], params["fc_b"],
                             sample=False)
    packed = jnp.transpose(packed, (0, 2, 1, 3))             # (B, T, M, 3K)
    mu = packed[..., :K]
    sigma = packed[..., K:2 * K]
    pi = packed[..., 2 * K:]
    return mu, sigma, pi


# ----------------------------------- main ------------------------------------

if __name__ == "__main__":
    B, T, M = 2, 8, 8
    dims, n_layers, n_mixtures = 32, 2, 10

    params = init_melnet_tier(jax.random.PRNGKey(1234), dims, n_layers, n_mixtures)

    kx, kc, kn = jax.random.split(jax.random.PRNGKey(0), 3)
    x = jax.random.normal(kx, (B, T, M), jnp.float32)
    cond = jax.random.normal(kc, (B, T, M), jnp.float32)
    noise = jax.random.normal(kn, (B, T, M), jnp.float32)

    fwd = jax.jit(functools.partial(melnet_tier_forward, sample=True))
    out = jax.block_until_ready(fwd(params, x, cond, noise))

    assert out.shape == (B, T, M)
    assert bool(jnp.all(jnp.isfinite(out)))
    print("KERNEL_OK")
</pallas_src>

<mosaic_0001>
module attributes {stable_mosaic.version = 11 : i64} {
  func.func @_embed_kernel(%arg0: i32, %arg1: memref<128x3xf32, #tpu.memory_space<vmem>>, %arg2: memref<4x32xf32, #tpu.memory_space<vmem>>, %arg3: memref<2x32xf32, #tpu.memory_space<vmem>>, %arg4: memref<128x32xbf16, #tpu.memory_space<vmem>>, %arg5: memref<128x32xbf16, #tpu.memory_space<vmem>>) attributes {dimension_semantics = [#tpu.dimension_semantics<parallel>], iteration_bounds = array<i64: 1>, scalar_prefetch = 0 : i64, scratch_operands = 0 : i64, tpu.core_type = #tpu.core_type<tc>, window_params = [{transform_indices = @transform_0, window_bounds = array<i64: 128, 3>}, {pipeline_mode = #tpu.pipeline_mode<synchronous>, transform_indices = @transform_1, window_bounds = array<i64: 4, 32>}, {pipeline_mode = #tpu.pipeline_mode<synchronous>, transform_indices = @transform_2, window_bounds = array<i64: 2, 32>}, {transform_indices = @transform_3, window_bounds = array<i64: 128, 32>}, {transform_indices = @transform_4, window_bounds = array<i64: 128, 32>}]} {
    %c0 = arith.constant 0 : index
    %c0_0 = arith.constant 0 : index
    %0 = vector.load %arg1[%c0, %c0_0] : memref<128x3xf32, #tpu.memory_space<vmem>>, vector<128x3xf32>
    %c0_1 = arith.constant 0 : index
    %c0_2 = arith.constant 0 : index
    %1 = vector.load %arg2[%c0_1, %c0_2] : memref<4x32xf32, #tpu.memory_space<vmem>>, vector<4x32xf32>
    %c0_3 = arith.constant 0 : index
    %c0_4 = arith.constant 0 : index
    %2 = vector.load %arg3[%c0_3, %c0_4] : memref<2x32xf32, #tpu.memory_space<vmem>>, vector<2x32xf32>
    %3 = vector.extract_strided_slice %0 {offsets = [0, 0], sizes = [128, 1], strides = [1, 1]} : vector<128x3xf32> to vector<128x1xf32>
    %4 = vector.extract_strided_slice %0 {offsets = [0, 1], sizes = [128, 1], strides = [1, 1]} : vector<128x3xf32> to vector<128x1xf32>
    %5 = vector.extract_strided_slice %0 {offsets = [0, 2], sizes = [128, 1], strides = [1, 1]} : vector<128x3xf32> to vector<128x1xf32>
    %6 = vector.extract_strided_slice %1 {offsets = [0, 0], sizes = [1, 32], strides = [1, 1]} : vector<4x32xf32> to vector<1x32xf32>
    %7 = vector.broadcast %3 : vector<128x1xf32> to vector<128x32xf32>
    %8 = vector.broadcast %6 : vector<1x32xf32> to vector<128x32xf32>
    %9 = arith.mulf %7, %8 : vector<128x32xf32>
    %10 = vector.extract_strided_slice %1 {offsets = [1, 0], sizes = [1, 32], strides = [1, 1]} : vector<4x32xf32> to vector<1x32xf32>
    %11 = vector.broadcast %5 : vector<128x1xf32> to vector<128x32xf32>
    %12 = vector.broadcast %10 : vector<1x32xf32> to vector<128x32xf32>
    %13 = arith.mulf %11, %12 : vector<128x32xf32>
    %14 = arith.addf %9, %13 : vector<128x32xf32>
    %15 = vector.extract_strided_slice %2 {offsets = [0, 0], sizes = [1, 32], strides = [1, 1]} : vector<2x32xf32> to vector<1x32xf32>
    %16 = vector.broadcast %15 : vector<1x32xf32> to vector<128x32xf32>
    %17 = arith.addf %14, %16 : vector<128x32xf32>
    %18 = arith.truncf %17 : vector<128x32xf32> to vector<128x32xbf16>
    %c0_5 = arith.constant 0 : index
    %c0_6 = arith.constant 0 : index
    %19 = vector.load %arg4[%c0_5, %c0_6] : memref<128x32xbf16, #tpu.memory_space<vmem>>, vector<128x32xbf16>
    tpu.vector_store %arg4[%c0_5, %c0_6], %18 {strides = array<i32>} : memref<128x32xbf16, #tpu.memory_space<vmem>>, vector<128x32xbf16>,
    %20 = vector.extract_strided_slice %1 {offsets = [2, 0], sizes = [1, 32], strides = [1, 1]} : vector<4x32xf32> to vector<1x32xf32>
    %21 = vector.broadcast %4 : vector<128x1xf32> to vector<128x32xf32>
    %22 = vector.broadcast %20 : vector<1x32xf32> to vector<128x32xf32>
    %23 = arith.mulf %21, %22 : vector<128x32xf32>
    %24 = vector.extract_strided_slice %1 {offsets = [3, 0], sizes = [1, 32], strides = [1, 1]} : vector<4x32xf32> to vector<1x32xf32>
    %25 = vector.broadcast %5 : vector<128x1xf32> to vector<128x32xf32>
    %26 = vector.broadcast %24 : vector<1x32xf32> to vector<128x32xf32>
    %27 = arith.mulf %25, %26 : vector<128x32xf32>
    %28 = arith.addf %23, %27 : vector<128x32xf32>
    %29 = vector.extract_strided_slice %2 {offsets = [1, 0], sizes = [1, 32], strides = [1, 1]} : vector<2x32xf32> to vector<1x32xf32>
    %30 = vector.broadcast %29 : vector<1x32xf32> to vector<128x32xf32>
    %31 = arith.addf %28, %30 : vector<128x32xf32>
    %32 = arith.truncf %31 : vector<128x32xf32> to vector<128x32xbf16>
    %c0_7 = arith.constant 0 : index
    %c0_8 = arith.constant 0 : index
    %33 = vector.load %arg5[%c0_7, %c0_8] : memref<128x32xbf16, #tpu.memory_space<vmem>>, vector<128x32xbf16>
    tpu.vector_store %arg5[%c0_7, %c0_8], %32 {strides = array<i32>} : memref<128x32xbf16, #tpu.memory_space<vmem>>, vector<128x32xbf16>,
    return
  }
  func.func @transform_0(%arg0: i32) -> (i32, i32) {
    %c0_i32 = arith.constant 0 : i32
    %c0_i32_0 = arith.constant 0 : i32
    return %arg0, %c0_i32 : i32, i32
  }
  func.func @transform_1(%arg0: i32) -> (i32, i32) {
    %c0_i32 = arith.constant 0 : i32
    %c0_i32_0 = arith.constant 0 : i32
    %c0_i32_1 = arith.constant 0 : i32
    return %c0_i32, %c0_i32_0 : i32, i32
  }
  func.func @transform_2(%arg0: i32) -> (i32, i32) {
    %c0_i32 = arith.constant 0 : i32
    %c0_i32_0 = arith.constant 0 : i32
    %c0_i32_1 = arith.constant 0 : i32
    return %c0_i32, %c0_i32_0 : i32, i32
  }
  func.func @transform_3(%arg0: i32) -> (i32, i32) {
    %c0_i32 = arith.constant 0 : i32
    %c0_i32_0 = arith.constant 0 : i32
    return %arg0, %c0_i32 : i32, i32
  }
  func.func @transform_4(%arg0: i32) -> (i32, i32) {
    %c0_i32 = arith.constant 0 : i32
    %c0_i32_0 = arith.constant 0 : i32
    return %arg0, %c0_i32 : i32, i32
  }
}

module attributes {stable_mosaic.version = 11 : i64} {
  func.func @_gru_kernel(%arg0: i32, %arg1: i32, %arg2: memref<1x8x8x32xbf16, #tpu.memory_space<vmem>>, %arg3: memref<2x32x96xbf16, #tpu.memory_space<vmem>>, %arg4: memref<2x32x96xbf16, #tpu.memory_space<vmem>>, %arg5: memref<2x1x96xf32, #tpu.memory_space<vmem>>, %arg6: memref<2x1x32xf32, #tpu.memory_space<vmem>>, %arg7: memref<1x8x8x32xbf16, #tpu.memory_space<vmem>>, %arg8: memref<1x8x8x32xbf16, #tpu.memory_space<vmem>>, %arg9: memref<2x8x8x96xbf16, #tpu.memory_space<vmem>>, %arg10: memref<2x8x32xbf16, #tpu.memory_space<vmem>>) attributes {dimension_semantics = [#tpu.dimension_semantics<parallel>, #tpu.dimension_semantics<parallel>], iteration_bounds = array<i64: 2, 1>, scalar_prefetch = 0 : i64, scratch_operands = 2 : i64, tpu.core_type = #tpu.core_type<tc>, window_params = [{transform_indices = @transform_0, window_bounds = array<i64: 1, 8, 8, 32>}, {pipeline_mode = #tpu.pipeline_mode<synchronous>, transform_indices = @transform_1, window_bounds = array<i64: 2, 32, 96>}, {pipeline_mode = #tpu.pipeline_mode<synchronous>, transform_indices = @transform_2, window_bounds = array<i64: 2, 32, 96>}, {pipeline_mode = #tpu.pipeline_mode<synchronous>, transform_indices = @transform_3, window_bounds = array<i64: 2, 1, 96>}, {pipeline_mode = #tpu.pipeline_mode<synchronous>, transform_indices = @transform_4, window_bounds = array<i64: 2, 1, 32>}, {transform_indices = @transform_5, window_bounds = array<i64: 1, 8, 8, 32>}, {transform_indices = @transform_6, window_bounds = array<i64: 1, 8, 8, 32>}]} {
    %c0 = arith.constant 0 : index
    %c0_0 = arith.constant 0 : index
    %c0_1 = arith.constant 0 : index
    %c0_2 = arith.constant 0 : index
    %0 = vector.load %arg2[%c0, %c0_0, %c0_1, %c0_2] : memref<1x8x8x32xbf16, #tpu.memory_space<vmem>>, vector<1x8x8x32xbf16>
    %1 = vector.shape_cast %0 : vector<1x8x8x32xbf16> to vector<8x8x32xbf16>
    %2 = vector.shape_cast %1 : vector<8x8x32xbf16> to vector<64x32xbf16>
    %c0_3 = arith.constant 0 : index
    %c0_4 = arith.constant 0 : index
    %c0_5 = arith.constant 0 : index
    %3 = vector.load %arg3[%c0_3, %c0_4, %c0_5] : memref<2x32x96xbf16, #tpu.memory_space<vmem>>, vector<1x32x96xbf16>
    %4 = vector.shape_cast %3 : vector<1x32x96xbf16> to vector<32x96xbf16>
    %cst = arith.constant dense<0.000000e+00> : vector<64x96xf32>
    %5 = tpu.matmul %2, %4, %cst {dimension_numbers = #tpu.dot_dimension_numbers<[1], [0], [0], [1], [0, 0, 1, 1], [], []>} : vector<64x32xbf16>, vector<32x96xbf16>, vector<64x96xf32> -> vector<64x96xf32>
    %c0_6 = arith.constant 0 : index
    %c0_7 = arith.constant 0 : index
    %c0_8 = arith.constant 0 : index
    %6 = vector.load %arg5[%c0_6, %c0_7, %c0_8] : memref<2x1x96xf32, #tpu.memory_space<vmem>>, vector<1x1x96xf32>
    %7 = vector.shape_cast %6 : vector<1x1x96xf32> to vector<1x96xf32>
    %8 = vector.broadcast %7 : vector<1x96xf32> to vector<64x96xf32>
    %9 = arith.addf %5, %8 : vector<64x96xf32>
    %10 = vector.shape_cast %9 : vector<64x96xf32> to vector<8x8x96xf32>
    %11 = arith.truncf %10 : vector<8x8x96xf32> to vector<8x8x96xbf16>
    %c0_9 = arith.constant 0 : index
    %c0_10 = arith.constant 0 : index
    %c0_11 = arith.constant 0 : index
    %c0_12 = arith.constant 0 : index
    %12 = vector.load %arg9[%c0_9, %c0_10, %c0_11, %c0_12] : memref<2x8x8x96xbf16, #tpu.memory_space<vmem>>, vector<1x8x8x96xbf16>
    %13 = vector.shape_cast %12 : vector<1x8x8x96xbf16> to vector<8x8x96xbf16>
    %14 = vector.shape_cast %11 : vector<8x8x96xbf16> to vector<1x8x8x96xbf16>
    tpu.vector_store %arg9[%c0_9, %c0_10, %c0_11, %c0_12], %14 {strides = array<i32>} : memref<2x8x8x96xbf16, #tpu.memory_space<vmem>>, vector<1x8x8x96xbf16>,
    %c1 = arith.constant 1 : index
    %c0_13 = arith.constant 0 : index
    %c0_14 = arith.constant 0 : index
    %15 = vector.load %arg3[%c1, %c0_13, %c0_14] : memref<2x32x96xbf16, #tpu.memory_space<vmem>>, vector<1x32x96xbf16>
    %16 = vector.shape_cast %15 : vector<1x32x96xbf16> to vector<32x96xbf16>
    %cst_15 = arith.constant dense<0.000000e+00> : vector<64x96xf32>
    %17 = tpu.matmul %2, %16, %cst_15 {dimension_numbers = #tpu.dot_dimension_numbers<[1], [0], [0], [1], [0, 0, 1, 1], [], []>} : vector<64x32xbf16>, vector<32x96xbf16>, vector<64x96xf32> -> vector<64x96xf32>
    %c1_16 = arith.constant 1 : index
    %c0_17 = arith.constant 0 : index
    %c0_18 = arith.constant 0 : index
    %18 = vector.load %arg5[%c1_16, %c0_17, %c0_18] : memref<2x1x96xf32, #tpu.memory_space<vmem>>, vector<1x1x96xf32>
    %19 = vector.shape_cast %18 : vector<1x1x96xf32> to vector<1x96xf32>
    %20 = vector.broadcast %19 : vector<1x96xf32> to vector<64x96xf32>
    %21 = arith.addf %17, %20 : vector<64x96xf32>
    %22 = vector.shape_cast %21 : vector<64x96xf32> to vector<8x8x96xf32>
    %23 = arith.truncf %22 : vector<8x8x96xf32> to vector<8x8x96xbf16>
    %c1_19 = arith.constant 1 : index
    %c0_20 = arith.constant 0 : index
    %c0_21 = arith.constant 0 : index
    %c0_22 = arith.constant 0 : index
    %24 = vector.load %arg9[%c1_19, %c0_20, %c0_21, %c0_22] : memref<2x8x8x96xbf16, #tpu.memory_space<vmem>>, vector<1x8x8x96xbf16>
    %25 = vector.shape_cast %24 : vector<1x8x8x96xbf16> to vector<8x8x96xbf16>
    %26 = vector.shape_cast %23 : vector<8x8x96xbf16> to vector<1x8x8x96xbf16>
    tpu.vector_store %arg9[%c1_19, %c0_20, %c0_21, %c0_22], %26 {strides = array<i32>} : memref<2x8x8x96xbf16, #tpu.memory_space<vmem>>, vector<1x8x8x96xbf16>,
    %cst_23 = arith.constant 0.000000e+00 : bf16
    %27 = vector.broadcast %cst_23 : bf16 to vector<2x8x32xbf16>
    %c0_24 = arith.constant 0 : index
    %c0_25 = arith.constant 0 : index
    %c0_26 = arith.constant 0 : index
    %28 = vector.load %arg10[%c0_24, %c0_25, %c0_26] : memref<2x8x32xbf16, #tpu.memory_space<vmem>>, vector<2x8x32xbf16>
    tpu.vector_store %arg10[%c0_24, %c0_25, %c0_26], %27 {strides = array<i32>} : memref<2x8x32xbf16, #tpu.memory_space<vmem>>, vector<2x8x32xbf16>,
    %c0_i32 = arith.constant 0 : i32
    %c8_i32 = arith.constant 8 : i32
    %29 = arith.addi %c0_i32, %c8_i32 : i32
    %c1_i32 = arith.constant 1 : i32
    scf.for %arg11 = %c0_i32 to %29 step %c1_i32  : i32 {
      %c0_28 = arith.constant 0 : index
      %c0_29 = arith.constant 0 : index
      %c0_30 = arith.constant 0 : index
      %30 = vector.load %arg10[%c0_28, %c0_29, %c0_30] : memref<2x8x32xbf16, #tpu.memory_space<vmem>>, vector<1x8x32xbf16>
      %31 = vector.shape_cast %30 : vector<1x8x32xbf16> to vector<8x32xbf16>
      %c0_31 = arith.constant 0 : index
      %c0_32 = arith.constant 0 : index
      %c0_33 = arith.constant 0 : index
      %32 = vector.load %arg4[%c0_31, %c0_32, %c0_33] : memref<2x32x96xbf16, #tpu.memory_space<vmem>>, vector<1x32x96xbf16>
      %33 = vector.shape_cast %32 : vector<1x32x96xbf16> to vector<32x96xbf16>
      %cst_34 = arith.constant dense<0.000000e+00> : vector<8x96xf32>
      %34 = tpu.matmul %31, %33, %cst_34 {dimension_numbers = #tpu.dot_dimension_numbers<[1], [0], [0], [1], [0, 0, 1, 1], [], []>} : vector<8x32xbf16>, vector<32x96xbf16>, vector<8x96xf32> -> vector<8x96xf32>
      %c0_35 = arith.constant 0 : index
      %35 = arith.index_cast %arg11 : i32 to index
      %c0_36 = arith.constant 0 : index
      %c0_37 = arith.constant 0 : index
      %36 = vector.load %arg9[%c0_35, %35, %c0_36, %c0_37] : memref<2x8x8x96xbf16, #tpu.memory_space<vmem>>, vector<1x1x8x96xbf16>
      %37 = vector.shape_cast %36 : vector<1x1x8x96xbf16> to vector<8x96xbf16>
      %38 = vector.extract_strided_slice %37 {offsets = [0, 0], sizes = [8, 32], strides = [1, 1]} : vector<8x96xbf16> to vector<8x32xbf16>
      %39 = vector.extract_strided_slice %34 {offsets = [0, 0], sizes = [8, 32], strides = [1, 1]} : vector<8x96xf32> to vector<8x32xf32>
      %40 = arith.extf %38 : vector<8x32xbf16> to vector<8x32xf32>
      %41 = arith.addf %40, %39 : vector<8x32xf32>
      %42 = arith.negf %41 : vector<8x32xf32>
      %43 = math.exp %42 : vector<8x32xf32>
      %cst_38 = arith.constant 1.000000e+00 : f32
      %44 = vector.broadcast %cst_38 : f32 to vector<8x32xf32>
      %45 = arith.addf %44, %43 : vector<8x32xf32>
      %46 = arith.divf %44, %45 : vector<8x32xf32>
      %47 = vector.extract_strided_slice %37 {offsets = [0, 32], sizes = [8, 32], strides = [1, 1]} : vector<8x96xbf16> to vector<8x32xbf16>
      %48 = vector.extract_strided_slice %34 {offsets = [0, 32], sizes = [8, 32], strides = [1, 1]} : vector<8x96xf32> to vector<8x32xf32>
      %49 = arith.extf %47 : vector<8x32xbf16> to vector<8x32xf32>
      %50 = arith.addf %49, %48 : vector<8x32xf32>
      %51 = arith.negf %50 : vector<8x32xf32>
      %52 = math.exp %51 : vector<8x32xf32>
      %cst_39 = arith.constant 1.000000e+00 : f32
      %53 = vector.broadcast %cst_39 : f32 to vector<8x32xf32>
      %54 = arith.addf %53, %52 : vector<8x32xf32>
      %55 = arith.divf %53, %54 : vector<8x32xf32>
      %56 = vector.extract_strided_slice %37 {offsets = [0, 64], sizes = [8, 32], strides = [1, 1]} : vector<8x96xbf16> to vector<8x32xbf16>
      %57 = vector.extract_strided_slice %34 {offsets = [0, 64], sizes = [8, 32], strides = [1, 1]} : vector<8x96xf32> to vector<8x32xf32>
      %c0_40 = arith.constant 0 : index
      %c0_41 = arith.constant 0 : index
      %c0_42 = arith.constant 0 : index
      %58 = vector.load %arg6[%c0_40, %c0_41, %c0_42] : memref<2x1x32xf32, #tpu.memory_space<vmem>>, vector<1x1x32xf32>
      %59 = vector.shape_cast %58 : vector<1x1x32xf32> to vector<1x32xf32>
      %60 = vector.broadcast %59 : vector<1x32xf32> to vector<8x32xf32>
      %61 = arith.addf %57, %60 : vector<8x32xf32>
      %62 = arith.mulf %46, %61 : vector<8x32xf32>
      %63 = arith.extf %56 : vector<8x32xbf16> to vector<8x32xf32>
      %64 = arith.addf %63, %62 : vector<8x32xf32>
      %65 = math.tanh %64 : vector<8x32xf32>
      %cst_43 = arith.constant 1.000000e+00 : f32
      %66 = vector.broadcast %cst_43 : f32 to vector<8x32xf32>
      %67 = arith.subf %66, %55 : vector<8x32xf32>
      %68 = arith.mulf %67, %65 : vector<8x32xf32>
      %69 = arith.extf %31 : vector<8x32xbf16> to vector<8x32xf32>
      %70 = arith.mulf %55, %69 : vector<8x32xf32>
      %71 = arith.addf %68, %70 : vector<8x32xf32>
      %72 = arith.truncf %71 : vector<8x32xf32> to vector<8x32xbf16>
      %c0_44 = arith.constant 0 : index
      %c0_45 = arith.constant 0 : index
      %c0_46 = arith.constant 0 : index
      %73 = vector.load %arg10[%c0_44, %c0_45, %c0_46] : memref<2x8x32xbf16, #tpu.memory_space<vmem>>, vector<1x8x32xbf16>
      %74 = vector.shape_cast %73 : vector<1x8x32xbf16> to vector<8x32xbf16>
      %75 = vector.shape_cast %72 : vector<8x32xbf16> to vector<1x8x32xbf16>
      tpu.vector_store %arg10[%c0_44, %c0_45, %c0_46], %75 {strides = array<i32>} : memref<2x8x32xbf16, #tpu.memory_space<vmem>>, vector<1x8x32xbf16>,
      %c0_47 = arith.constant 0 : index
      %76 = arith.index_cast %arg11 : i32 to index
      %c0_48 = arith.constant 0 : index
      %c0_49 = arith.constant 0 : index
      %77 = vector.load %arg7[%c0_47, %76, %c0_48, %c0_49] : memref<1x8x8x32xbf16, #tpu.memory_space<vmem>>, vector<1x1x8x32xbf16>
      %78 = vector.shape_cast %77 : vector<1x1x8x32xbf16> to vector<8x32xbf16>
      %79 = vector.shape_cast %72 : vector<8x32xbf16> to vector<1x1x8x32xbf16>
      tpu.vector_store %arg7[%c0_47, %76, %c0_48, %c0_49], %79 {strides = array<i32>} : memref<1x8x8x32xbf16, #tpu.memory_space<vmem>>, vector<1x1x8x32xbf16>,
      %c7_i32 = arith.constant 7 : i32
      %80 = arith.subi %c7_i32, %arg11 : i32
      %c1_50 = arith.constant 1 : index
      %c0_51 = arith.constant 0 : index
      %c0_52 = arith.constant 0 : index
      %81 = vector.load %arg10[%c1_50, %c0_51, %c0_52] : memref<2x8x32xbf16, #tpu.memory_space<vmem>>, vector<1x8x32xbf16>
      %82 = vector.shape_cast %81 : vector<1x8x32xbf16> to vector<8x32xbf16>
      %c1_53 = arith.constant 1 : index
      %c0_54 = arith.constant 0 : index
      %c0_55 = arith.constant 0 : index
      %83 = vector.load %arg4[%c1_53, %c0_54, %c0_55] : memref<2x32x96xbf16, #tpu.memory_space<vmem>>, vector<1x32x96xbf16>
      %84 = vector.shape_cast %83 : vector<1x32x96xbf16> to vector<32x96xbf16>
      %cst_56 = arith.constant dense<0.000000e+00> : vector<8x96xf32>
      %85 = tpu.matmul %82, %84, %cst_56 {dimension_numbers = #tpu.dot_dimension_numbers<[1], [0], [0], [1], [0, 0, 1, 1], [], []>} : vector<8x32xbf16>, vector<32x96xbf16>, vector<8x96xf32> -> vector<8x96xf32>
      %c1_57 = arith.constant 1 : index
      %86 = arith.index_cast %80 : i32 to index
      %c0_58 = arith.constant 0 : index
      %c0_59 = arith.constant 0 : index
      %87 = vector.load %arg9[%c1_57, %86, %c0_58, %c0_59] : memref<2x8x8x96xbf16, #tpu.memory_space<vmem>>, vector<1x1x8x96xbf16>
      %88 = vector.shape_cast %87 : vector<1x1x8x96xbf16> to vector<8x96xbf16>
      %89 = vector.extract_strided_slice %88 {offsets = [0, 0], sizes = [8, 32], strides = [1, 1]} : vector<8x96xbf16> to vector<8x32xbf16>
      %90 = vector.extract_strided_slice %85 {offsets = [0, 0], sizes = [8, 32], strides = [1, 1]} : vector<8x96xf32> to vector<8x32xf32>
      %91 = arith.extf %89 : vector<8x32xbf16> to vector<8x32xf32>
      %92 = arith.addf %91, %90 : vector<8x32xf32>
      %93 = arith.negf %92 : vector<8x32xf32>
      %94 = math.exp %93 : vector<8x32xf32>
      %cst_60 = arith.constant 1.000000e+00 : f32
      %95 = vector.broadcast %cst_60 : f32 to vector<8x32xf32>
      %96 = arith.addf %95, %94 : vector<8x32xf32>
      %97 = arith.divf %95, %96 : vector<8x32xf32>
      %98 = vector.extract_strided_slice %88 {offsets = [0, 32], sizes = [8, 32], strides = [1, 1]} : vector<8x96xbf16> to vector<8x32xbf16>
      %99 = vector.extract_strided_slice %85 {offsets = [0, 32], sizes = [8, 32], strides = [1, 1]} : vector<8x96xf32> to vector<8x32xf32>
      %100 = arith.extf %98 : vector<8x32xbf16> to vector<8x32xf32>
      %101 = arith.addf %100, %99 : vector<8x32xf32>
      %102 = arith.negf %101 : vector<8x32xf32>
      %103 = math.exp %102 : vector<8x32xf32>
      %cst_61 = arith.constant 1.000000e+00 : f32
      %104 = vector.broadcast %cst_61 : f32 to vector<8x32xf32>
      %105 = arith.addf %104, %103 : vector<8x32xf32>
      %106 = arith.divf %104, %105 : vector<8x32xf32>
      %107 = vector.extract_strided_slice %88 {offsets = [0, 64], sizes = [8, 32], strides = [1, 1]} : vector<8x96xbf16> to vector<8x32xbf16>
      %108 = vector.extract_strided_slice %85 {offsets = [0, 64], sizes = [8, 32], strides = [1, 1]} : vector<8x96xf32> to vector<8x32xf32>
      %c1_62 = arith.constant 1 : index
      %c0_63 = arith.constant 0 : index
      %c0_64 = arith.constant 0 : index
      %109 = vector.load %arg6[%c1_62, %c0_63, %c0_64] : memref<2x1x32xf32, #tpu.memory_space<vmem>>, vector<1x1x32xf32>
      %110 = vector.shape_cast %109 : vector<1x1x32xf32> to vector<1x32xf32>
      %111 = vector.broadcast %110 : vector<1x32xf32> to vector<8x32xf32>
      %112 = arith.addf %108, %111 : vector<8x32xf32>
      %113 = arith.mulf %97, %112 : vector<8x32xf32>
      %114 = arith.extf %107 : vector<8x32xbf16> to vector<8x32xf32>
      %115 = arith.addf %114, %113 : vector<8x32xf32>
      %116 = math.tanh %115 : vector<8x32xf32>
      %cst_65 = arith.constant 1.000000e+00 : f32
      %117 = vector.broadcast %cst_65 : f32 to vector<8x32xf32>
      %118 = arith.subf %117, %106 : vector<8x32xf32>
      %119 = arith.mulf %118, %116 : vector<8x32xf32>
      %120 = arith.extf %82 : vector<8x32xbf16> to vector<8x32xf32>
      %121 = arith.mulf %106, %120 : vector<8x32xf32>
      %122 = arith.addf %119, %121 : vector<8x32xf32>
      %123 = arith.truncf %122 : vector<8x32xf32> to vector<8x32xbf16>
      %c1_66 = arith.constant 1 : index
      %c0_67 = arith.constant 0 : index
      %c0_68 = arith.constant 0 : index
      %124 = vector.load %arg10[%c1_66, %c0_67, %c0_68] : memref<2x8x32xbf16, #tpu.memory_space<vmem>>, vector<1x8x32xbf16>
      %125 = vector.shape_cast %124 : vector<1x8x32xbf16> to vector<8x32xbf16>
      %126 = vector.shape_cast %123 : vector<8x32xbf16> to vector<1x8x32xbf16>
      tpu.vector_store %arg10[%c1_66, %c0_67, %c0_68], %126 {strides = array<i32>} : memref<2x8x32xbf16, #tpu.memory_space<vmem>>, vector<1x8x32xbf16>,
      %c0_69 = arith.constant 0 : index
      %127 = arith.index_cast %80 : i32 to index
      %c0_70 = arith.constant 0 : index
      %c0_71 = arith.constant 0 : index
      %128 = vector.load %arg8[%c0_69, %127, %c0_70, %c0_71] : memref<1x8x8x32xbf16, #tpu.memory_space<vmem>>, vector<1x1x8x32xbf16>
      %129 = vector.shape_cast %128 : vector<1x1x8x32xbf16> to vector<8x32xbf16>
      %130 = vector.shape_cast %123 : vector<8x32xbf16> to vector<1x1x8x32xbf16>
      tpu.vector_store %arg8[%c0_69, %127, %c0_70, %c0_71], %130 {strides = array<i32>} : memref<1x8x8x32xbf16, #tpu.memory_space<vmem>>, vector<1x1x8x32xbf16>,
    }
    %c8_i32_27 = arith.constant 8 : i32
    return
  }
  func.func @transform_0(%arg0: i32, %arg1: i32) -> (i32, i32, i32, i32) {
    %c0_i32 = arith.constant 0 : i32
    %c0_i32_0 = arith.constant 0 : i32
    %c0_i32_1 = arith.constant 0 : i32
    return %arg0, %c0_i32, %arg1, %c0_i32_0 : i32, i32, i32, i32
  }
  func.func @transform_1(%arg0: i32, %arg1: i32) -> (i32, i32, i32) {
    %c0_i32 = arith.constant 0 : i32
    %c0_i32_0 = arith.constant 0 : i32
    %c0_i32_1 = arith.constant 0 : i32
    %c0_i32_2 = arith.constant 0 : i32
    return %c0_i32, %c0_i32_0, %c0_i32_1 : i32, i32, i32
  }
  func.func @transform_2(%arg0: i32, %arg1: i32) -> (i32, i32, i32) {
    %c0_i32 = arith.constant 0 : i32
    %c0_i32_0 = arith.constant 0 : i32
    %c0_i32_1 = arith.constant 0 : i32
    %c0_i32_2 = arith.constant 0 : i32
    return %c0_i32, %c0_i32_0, %c0_i32_1 : i32, i32, i32
  }
  func.func @transform_3(%arg0: i32, %arg1: i32) -> (i32, i32, i32) {
    %c0_i32 = arith.constant 0 : i32
    %c0_i32_0 = arith.constant 0 : i32
    %c0_i32_1 = arith.constant 0 : i32
    %c0_i32_2 = arith.constant 0 : i32
    return %c0_i32, %c0_i32_0, %c0_i32_1 : i32, i32, i32
  }
  func.func @transform_4(%arg0: i32, %arg1: i32) -> (i32, i32, i32) {
    %c0_i32 = arith.constant 0 : i32
    %c0_i32_0 = arith.constant 0 : i32
    %c0_i32_1 = arith.constant 0 : i32
    %c0_i32_2 = arith.constant 0 : i32
    return %c0_i32, %c0_i32_0, %c0_i32_1 : i32, i32, i32
  }
  func.func @transform_5(%arg0: i32, %arg1: i32) -> (i32, i32, i32, i32) {
    %c0_i32 = arith.constant 0 : i32
    %c0_i32_0 = arith.constant 0 : i32
    %c0_i32_1 = arith.constant 0 : i32
    return %arg0, %c0_i32, %arg1, %c0_i32_0 : i32, i32, i32, i32
  }
  func.func @transform_6(%arg0: i32, %arg1: i32) -> (i32, i32, i32, i32) {
    %c0_i32 = arith.constant 0 : i32
    %c0_i32_0 = arith.constant 0 : i32
    %c0_i32_1 = arith.constant 0 : i32
    return %arg0, %c0_i32, %arg1, %c0_i32_0 : i32, i32, i32, i32
  }
}

module attributes {stable_mosaic.version = 11 : i64} {
  func.func @_gru_kernel(%arg0: i32, %arg1: i32, %arg2: memref<1x8x8x32xbf16, #tpu.memory_space<vmem>>, %arg3: memref<1x32x96xbf16, #tpu.memory_space<vmem>>, %arg4: memref<1x32x96xbf16, #tpu.memory_space<vmem>>, %arg5: memref<1x1x96xf32, #tpu.memory_space<vmem>>, %arg6: memref<1x1x32xf32, #tpu.memory_space<vmem>>, %arg7: memref<1x8x8x32xbf16, #tpu.memory_space<vmem>>, %arg8: memref<1x8x8x96xbf16, #tpu.memory_space<vmem>>, %arg9: memref<1x8x32xbf16, #tpu.memory_space<vmem>>) attributes {dimension_semantics = [#tpu.dimension_semantics<parallel>, #tpu.dimension_semantics<parallel>], iteration_bounds = array<i64: 2, 1>, scalar_prefetch = 0 : i64, scratch_operands = 2 : i64, tpu.core_type = #tpu.core_type<tc>, window_params = [{transform_indices = @transform_0, window_bounds = array<i64: 1, 8, 8, 32>}, {pipeline_mode = #tpu.pipeline_mode<synchronous>, transform_indices = @transform_1, window_bounds = array<i64: 1, 32, 96>}, {pipeline_mode = #tpu.pipeline_mode<synchronous>, transform_indices = @transform_2, window_bounds = array<i64: 1, 32, 96>}, {pipeline_mode = #tpu.pipeline_mode<synchronous>, transform_indices = @transform_3, window_bounds = array<i64: 1, 1, 96>}, {pipeline_mode = #tpu.pipeline_mode<synchronous>, transform_indices = @transform_4, window_bounds = array<i64: 1, 1, 32>}, {transform_indices = @transform_5, window_bounds = array<i64: 1, 8, 8, 32>}]} {
    %c0 = arith.constant 0 : index
    %c0_0 = arith.constant 0 : index
    %c0_1 = arith.constant 0 : index
    %c0_2 = arith.constant 0 : index
    %0 = vector.load %arg2[%c0, %c0_0, %c0_1, %c0_2] : memref<1x8x8x32xbf16, #tpu.memory_space<vmem>>, vector<1x8x8x32xbf16>
    %1 = vector.shape_cast %0 : vector<1x8x8x32xbf16> to vector<8x8x32xbf16>
    %2 = vector.shape_cast %1 : vector<8x8x32xbf16> to vector<64x32xbf16>
    %c0_3 = arith.constant 0 : index
    %c0_4 = arith.constant 0 : index
    %c0_5 = arith.constant 0 : index
    %3 = vector.load %arg3[%c0_3, %c0_4, %c0_5] : memref<1x32x96xbf16, #tpu.memory_space<vmem>>, vector<1x32x96xbf16>
    %4 = vector.shape_cast %3 : vector<1x32x96xbf16> to vector<32x96xbf16>
    %cst = arith.constant dense<0.000000e+00> : vector<64x96xf32>
    %5 = tpu.matmul %2, %4, %cst {dimension_numbers = #tpu.dot_dimension_numbers<[1], [0], [0], [1], [0, 0, 1, 1], [], []>} : vector<64x32xbf16>, vector<32x96xbf16>, vector<64x96xf32> -> vector<64x96xf32>
    %c0_6 = arith.constant 0 : index
    %c0_7 = arith.constant 0 : index
    %c0_8 = arith.constant 0 : index
    %6 = vector.load %arg5[%c0_6, %c0_7, %c0_8] : memref<1x1x96xf32, #tpu.memory_space<vmem>>, vector<1x1x96xf32>
    %7 = vector.shape_cast %6 : vector<1x1x96xf32> to vector<1x96xf32>
    %8 = vector.broadcast %7 : vector<1x96xf32> to vector<64x96xf32>
    %9 = arith.addf %5, %8 : vector<64x96xf32>
    %10 = vector.shape_cast %9 : vector<64x96xf32> to vector<8x8x96xf32>
    %11 = arith.truncf %10 : vector<8x8x96xf32> to vector<8x8x96xbf16>
    %c0_9 = arith.constant 0 : index
    %c0_10 = arith.constant 0 : index
    %c0_11 = arith.constant 0 : index
    %c0_12 = arith.constant 0 : index
    %12 = vector.load %arg8[%c0_9, %c0_10, %c0_11, %c0_12] : memref<1x8x8x96xbf16, #tpu.memory_space<vmem>>, vector<1x8x8x96xbf16>
    %13 = vector.shape_cast %12 : vector<1x8x8x96xbf16> to vector<8x8x96xbf16>
    %14 = vector.shape_cast %11 : vector<8x8x96xbf16> to vector<1x8x8x96xbf16>
    tpu.vector_store %arg8[%c0_9, %c0_10, %c0_11, %c0_12], %14 {strides = array<i32>} : memref<1x8x8x96xbf16, #tpu.memory_space<vmem>>, vector<1x8x8x96xbf16>,
    %cst_13 = arith.constant 0.000000e+00 : bf16
    %15 = vector.broadcast %cst_13 : bf16 to vector<1x8x32xbf16>
    %c0_14 = arith.constant 0 : index
    %c0_15 = arith.constant 0 : index
    %c0_16 = arith.constant 0 : index
    %16 = vector.load %arg9[%c0_14, %c0_15, %c0_16] : memref<1x8x32xbf16, #tpu.memory_space<vmem>>, vector<1x8x32xbf16>
    tpu.vector_store %arg9[%c0_14, %c0_15, %c0_16], %15 {strides = array<i32>} : memref<1x8x32xbf16, #tpu.memory_space<vmem>>, vector<1x8x32xbf16>,
    %c0_i32 = arith.constant 0 : i32
    %c8_i32 = arith.constant 8 : i32
    %17 = arith.addi %c0_i32, %c8_i32 : i32
    %c1_i32 = arith.constant 1 : i32
    scf.for %arg10 = %c0_i32 to %17 step %c1_i32  : i32 {
      %c0_18 = arith.constant 0 : index
      %c0_19 = arith.constant 0 : index
      %c0_20 = arith.constant 0 : index
      %18 = vector.load %arg9[%c0_18, %c0_19, %c0_20] : memref<1x8x32xbf16, #tpu.memory_space<vmem>>, vector<1x8x32xbf16>
      %19 = vector.shape_cast %18 : vector<1x8x32xbf16> to vector<8x32xbf16>
      %c0_21 = arith.constant 0 : index
      %c0_22 = arith.constant 0 : index
      %c0_23 = arith.constant 0 : index
      %20 = vector.load %arg4[%c0_21, %c0_22, %c0_23] : memref<1x32x96xbf16, #tpu.memory_space<vmem>>, vector<1x32x96xbf16>
      %21 = vector.shape_cast %20 : vector<1x32x96xbf16> to vector<32x96xbf16>
      %cst_24 = arith.constant dense<0.000000e+00> : vector<8x96xf32>
      %22 = tpu.matmul %19, %21, %cst_24 {dimension_numbers = #tpu.dot_dimension_numbers<[1], [0], [0], [1], [0, 0, 1, 1], [], []>} : vector<8x32xbf16>, vector<32x96xbf16>, vector<8x96xf32> -> vector<8x96xf32>
      %c0_25 = arith.constant 0 : index
      %23 = arith.index_cast %arg10 : i32 to index
      %c0_26 = arith.constant 0 : index
      %c0_27 = arith.constant 0 : index
      %24 = vector.load %arg8[%c0_25, %23, %c0_26, %c0_27] : memref<1x8x8x96xbf16, #tpu.memory_space<vmem>>, vector<1x1x8x96xbf16>
      %25 = vector.shape_cast %24 : vector<1x1x8x96xbf16> to vector<8x96xbf16>
      %26 = vector.extract_strided_slice %25 {offsets = [0, 0], sizes = [8, 32], strides = [1, 1]} : vector<8x96xbf16> to vector<8x32xbf16>
      %27 = vector.extract_strided_slice %22 {offsets = [0, 0], sizes = [8, 32], strides = [1, 1]} : vector<8x96xf32> to vector<8x32xf32>
      %28 = arith.extf %26 : vector<8x32xbf16> to vector<8x32xf32>
      %29 = arith.addf %28, %27 : vector<8x32xf32>
      %30 = arith.negf %29 : vector<8x32xf32>
      %31 = math.exp %30 : vector<8x32xf32>
      %cst_28 = arith.constant 1.000000e+00 : f32
      %32 = vector.broadcast %cst_28 : f32 to vector<8x32xf32>
      %33 = arith.addf %32, %31 : vector<8x32xf32>
      %34 = arith.divf %32, %33 : vector<8x32xf32>
      %35 = vector.extract_strided_slice %25 {offsets = [0, 32], sizes = [8, 32], strides = [1, 1]} : vector<8x96xbf16> to vector<8x32xbf16>
      %36 = vector.extract_strided_slice %22 {offsets = [0, 32], sizes = [8, 32], strides = [1, 1]} : vector<8x96xf32> to vector<8x32xf32>
      %37 = arith.extf %35 : vector<8x32xbf16> to vector<8x32xf32>
      %38 = arith.addf %37, %36 : vector<8x32xf32>
      %39 = arith.negf %38 : vector<8x32xf32>
      %40 = math.exp %39 : vector<8x32xf32>
      %cst_29 = arith.constant 1.000000e+00 : f32
      %41 = vector.broadcast %cst_29 : f32 to vector<8x32xf32>
      %42 = arith.addf %41, %40 : vector<8x32xf32>
      %43 = arith.divf %41, %42 : vector<8x32xf32>
      %44 = vector.extract_strided_slice %25 {offsets = [0, 64], sizes = [8, 32], strides = [1, 1]} : vector<8x96xbf16> to vector<8x32xbf16>
      %45 = vector.extract_strided_slice %22 {offsets = [0, 64], sizes = [8, 32], strides = [1, 1]} : vector<8x96xf32> to vector<8x32xf32>
      %c0_30 = arith.constant 0 : index
      %c0_31 = arith.constant 0 : index
      %c0_32 = arith.constant 0 : index
      %46 = vector.load %arg6[%c0_30, %c0_31, %c0_32] : memref<1x1x32xf32, #tpu.memory_space<vmem>>, vector<1x1x32xf32>
      %47 = vector.shape_cast %46 : vector<1x1x32xf32> to vector<1x32xf32>
      %48 = vector.broadcast %47 : vector<1x32xf32> to vector<8x32xf32>
      %49 = arith.addf %45, %48 : vector<8x32xf32>
      %50 = arith.mulf %34, %49 : vector<8x32xf32>
      %51 = arith.extf %44 : vector<8x32xbf16> to vector<8x32xf32>
      %52 = arith.addf %51, %50 : vector<8x32xf32>
      %53 = math.tanh %52 : vector<8x32xf32>
      %cst_33 = arith.constant 1.000000e+00 : f32
      %54 = vector.broadcast %cst_33 : f32 to vector<8x32xf32>
      %55 = arith.subf %54, %43 : vector<8x32xf32>
      %56 = arith.mulf %55, %53 : vector<8x32xf32>
      %57 = arith.extf %19 : vector<8x32xbf16> to vector<8x32xf32>
      %58 = arith.mulf %43, %57 : vector<8x32xf32>
      %59 = arith.addf %56, %58 : vector<8x32xf32>
      %60 = arith.truncf %59 : vector<8x32xf32> to vector<8x32xbf16>
      %c0_34 = arith.constant 0 : index
      %c0_35 = arith.constant 0 : index
      %c0_36 = arith.constant 0 : index
      %61 = vector.load %arg9[%c0_34, %c0_35, %c0_36] : memref<1x8x32xbf16, #tpu.memory_space<vmem>>, vector<1x8x32xbf16>
      %62 = vector.shape_cast %61 : vector<1x8x32xbf16> to vector<8x32xbf16>
      %63 = vector.shape_cast %60 : vector<8x32xbf16> to vector<1x8x32xbf16>
      tpu.vector_store %arg9[%c0_34, %c0_35, %c0_36], %63 {strides = array<i32>} : memref<1x8x32xbf16, #tpu.memory_space<vmem>>, vector<1x8x32xbf16>,
      %c0_37 = arith.constant 0 : index
      %64 = arith.index_cast %arg10 : i32 to index
      %c0_38 = arith.constant 0 : index
      %c0_39 = arith.constant 0 : index
      %65 = vector.load %arg7[%c0_37, %64, %c0_38, %c0_39] : memref<1x8x8x32xbf16, #tpu.memory_space<vmem>>, vector<1x1x8x32xbf16>
      %66 = vector.shape_cast %65 : vector<1x1x8x32xbf16> to vector<8x32xbf16>
      %67 = vector.shape_cast %60 : vector<8x32xbf16> to vector<1x1x8x32xbf16>
      tpu.vector_store %arg7[%c0_37, %64, %c0_38, %c0_39], %67 {strides = array<i32>} : memref<1x8x8x32xbf16, #tpu.memory_space<vmem>>, vector<1x1x8x32xbf16>,
    }
    %c8_i32_17 = arith.constant 8 : i32
    return
  }
  func.func @transform_0(%arg0: i32, %arg1: i32) -> (i32, i32, i32, i32) {
    %c0_i32 = arith.constant 0 : i32
    %c0_i32_0 = arith.constant 0 : i32
    %c0_i32_1 = arith.constant 0 : i32
    return %arg0, %c0_i32, %arg1, %c0_i32_0 : i32, i32, i32, i32
  }
  func.func @transform_1(%arg0: i32, %arg1: i32) -> (i32, i32, i32) {
    %c0_i32 = arith.constant 0 : i32
    %c0_i32_0 = arith.constant 0 : i32
    %c0_i32_1 = arith.constant 0 : i32
    %c0_i32_2 = arith.constant 0 : i32
    return %c0_i32, %c0_i32_0, %c0_i32_1 : i32, i32, i32
  }
  func.func @transform_2(%arg0: i32, %arg1: i32) -> (i32, i32, i32) {
    %c0_i32 = arith.constant 0 : i32
    %c0_i32_0 = arith.constant 0 : i32
    %c0_i32_1 = arith.constant 0 : i32
    %c0_i32_2 = arith.constant 0 : i32
    return %c0_i32, %c0_i32_0, %c0_i32_1 : i32, i32, i32
  }
  func.func @transform_3(%arg0: i32, %arg1: i32) -> (i32, i32, i32) {
    %c0_i32 = arith.constant 0 : i32
    %c0_i32_0 = arith.constant 0 : i32
    %c0_i32_1 = arith.constant 0 : i32
    %c0_i32_2 = arith.constant 0 : i32
    return %c0_i32, %c0_i32_0, %c0_i32_1 : i32, i32, i32
  }
  func.func @transform_4(%arg0: i32, %arg1: i32) -> (i32, i32, i32) {
    %c0_i32 = arith.constant 0 : i32
    %c0_i32_0 = arith.constant 0 : i32
    %c0_i32_1 = arith.constant 0 : i32
    %c0_i32_2 = arith.constant 0 : i32
    return %c0_i32, %c0_i32_0, %c0_i32_1 : i32, i32, i32
  }
  func.func @transform_5(%arg0: i32, %arg1: i32) -> (i32, i32, i32, i32) {
    %c0_i32 = arith.constant 0 : i32
    %c0_i32_0 = arith.constant 0 : i32
    %c0_i32_1 = arith.constant 0 : i32
    return %arg0, %c0_i32, %arg1, %c0_i32_0 : i32, i32, i32, i32
  }
}

module attributes {stable_mosaic.version = 11 : i64} {
  func.func @_time_mix_kernel(%arg0: i32, %arg1: i32, %arg2: i32, %arg3: memref<1x8x8x32xbf16, #tpu.memory_space<vmem>>, %arg4: memref<1x8x8x32xbf16, #tpu.memory_space<vmem>>, %arg5: memref<1x8x8x32xbf16, #tpu.memory_space<vmem>>, %arg6: memref<1x8x8x32xbf16, #tpu.memory_space<vmem>>, %arg7: memref<1x8x8x32xbf16, #tpu.memory_space<vmem>>, %arg8: memref<3x32x32xbf16, #tpu.memory_space<vmem>>, %arg9: memref<1x32xf32, #tpu.memory_space<vmem>>, %arg10: memref<1x8x8x32xbf16, #tpu.memory_space<vmem>>, %arg11: memref<1x8x8x32xbf16, #tpu.memory_space<vmem>>) attributes {dimension_semantics = [#tpu.dimension_semantics<parallel>, #tpu.dimension_semantics<parallel>, #tpu.dimension_semantics<parallel>], iteration_bounds = array<i64: 2, 1, 1>, scalar_prefetch = 0 : i64, scratch_operands = 0 : i64, tpu.core_type = #tpu.core_type<tc>, window_params = [{transform_indices = @transform_0, window_bounds = array<i64: 1, 8, 8, 32>}, {transform_indices = @transform_1, window_bounds = array<i64: 1, 8, 8, 32>}, {transform_indices = @transform_2, window_bounds = array<i64: 1, 8, 8, 32>}, {transform_indices = @transform_3, window_bounds = array<i64: 1, 8, 8, 32>}, {transform_indices = @transform_4, window_bounds = array<i64: 1, 8, 8, 32>}, {pipeline_mode = #tpu.pipeline_mode<synchronous>, transform_indices = @transform_5, window_bounds = array<i64: 3, 32, 32>}, {pipeline_mode = #tpu.pipeline_mode<synchronous>, transform_indices = @transform_6, window_bounds = array<i64: 1, 32>}, {transform_indices = @transform_7, window_bounds = array<i64: 1, 8, 8, 32>}, {transform_indices = @transform_8, window_bounds = array<i64: 1, 8, 8, 32>}]} {
    %c0 = arith.constant 0 : index
    %c0_0 = arith.constant 0 : index
    %c0_1 = arith.constant 0 : index
    %c0_2 = arith.constant 0 : index
    %0 = vector.load %arg3[%c0, %c0_0, %c0_1, %c0_2] : memref<1x8x8x32xbf16, #tpu.memory_space<vmem>>, vector<1x8x8x32xbf16>
    %1 = vector.shape_cast %0 : vector<1x8x8x32xbf16> to vector<8x8x32xbf16>
    %2 = vector.shape_cast %1 : vector<8x8x32xbf16> to vector<64x32xbf16>
    %c0_3 = arith.constant 0 : index
    %c0_4 = arith.constant 0 : index
    %c0_5 = arith.constant 0 : index
    %c0_6 = arith.constant 0 : index
    %3 = vector.load %arg4[%c0_3, %c0_4, %c0_5, %c0_6] : memref<1x8x8x32xbf16, #tpu.memory_space<vmem>>, vector<1x8x8x32xbf16>
    %4 = vector.shape_cast %3 : vector<1x8x8x32xbf16> to vector<8x8x32xbf16>
    %5 = vector.shape_cast %4 : vector<8x8x32xbf16> to vector<64x32xbf16>
    %c0_7 = arith.constant 0 : index
    %c0_8 = arith.constant 0 : index
    %c0_9 = arith.constant 0 : index
    %c0_10 = arith.constant 0 : index
    %6 = vector.load %arg5[%c0_7, %c0_8, %c0_9, %c0_10] : memref<1x8x8x32xbf16, #tpu.memory_space<vmem>>, vector<1x8x8x32xbf16>
    %7 = vector.shape_cast %6 : vector<1x8x8x32xbf16> to vector<8x8x32xbf16>
    %8 = vector.shape_cast %7 : vector<8x8x32xbf16> to vector<64x32xbf16>
    %c0_11 = arith.constant 0 : index
    %c0_12 = arith.constant 0 : index
    %c0_13 = arith.constant 0 : index
    %9 = vector.load %arg8[%c0_11, %c0_12, %c0_13] : memref<3x32x32xbf16, #tpu.memory_space<vmem>>, vector<1x32x32xbf16>
    %10 = vector.shape_cast %9 : vector<1x32x32xbf16> to vector<32x32xbf16>
    %cst = arith.constant dense<0.000000e+00> : vector<64x32xf32>
    %11 = tpu.matmul %2, %10, %cst {dimension_numbers = #tpu.dot_dimension_numbers<[1], [0], [0], [1], [0, 0, 1, 1], [], []>} : vector<64x32xbf16>, vector<32x32xbf16>, vector<64x32xf32> -> vector<64x32xf32>
    %c1 = arith.constant 1 : index
    %c0_14 = arith.constant 0 : index
    %c0_15 = arith.constant 0 : index
    %12 = vector.load %arg8[%c1, %c0_14, %c0_15] : memref<3x32x32xbf16, #tpu.memory_space<vmem>>, vector<1x32x32xbf16>
    %13 = vector.shape_cast %12 : vector<1x32x32xbf16> to vector<32x32xbf16>
    %cst_16 = arith.constant dense<0.000000e+00> : vector<64x32xf32>
    %14 = tpu.matmul %5, %13, %cst_16 {dimension_numbers = #tpu.dot_dimension_numbers<[1], [0], [0], [1], [0, 0, 1, 1], [], []>} : vector<64x32xbf16>, vector<32x32xbf16>, vector<64x32xf32> -> vector<64x32xf32>
    %15 = arith.addf %11, %14 : vector<64x32xf32>
    %c2 = arith.constant 2 : index
    %c0_17 = arith.constant 0 : index
    %c0_18 = arith.constant 0 : index
    %16 = vector.load %arg8[%c2, %c0_17, %c0_18] : memref<3x32x32xbf16, #tpu.memory_space<vmem>>, vector<1x32x32xbf16>
    %17 = vector.shape_cast %16 : vector<1x32x32xbf16> to vector<32x32xbf16>
    %cst_19 = arith.constant dense<0.000000e+00> : vector<64x32xf32>
    %18 = tpu.matmul %8, %17, %cst_19 {dimension_numbers = #tpu.dot_dimension_numbers<[1], [0], [0], [1], [0, 0, 1, 1], [], []>} : vector<64x32xbf16>, vector<32x32xbf16>, vector<64x32xf32> -> vector<64x32xf32>
    %19 = arith.addf %15, %18 : vector<64x32xf32>
    %c0_20 = arith.constant 0 : index
    %c0_21 = arith.constant 0 : index
    %20 = vector.load %arg9[%c0_20, %c0_21] : memref<1x32xf32, #tpu.memory_space<vmem>>, vector<1x32xf32>
    %21 = vector.broadcast %20 : vector<1x32xf32> to vector<64x32xf32>
    %22 = arith.addf %19, %21 : vector<64x32xf32>
    %c0_22 = arith.constant 0 : index
    %c0_23 = arith.constant 0 : index
    %c0_24 = arith.constant 0 : index
    %c0_25 = arith.constant 0 : index
    %23 = vector.load %arg6[%c0_22, %c0_23, %c0_24, %c0_25] : memref<1x8x8x32xbf16, #tpu.memory_space<vmem>>, vector<1x8x8x32xbf16>
    %24 = vector.shape_cast %23 : vector<1x8x8x32xbf16> to vector<8x8x32xbf16>
    %25 = vector.shape_cast %24 : vector<8x8x32xbf16> to vector<64x32xbf16>
    %26 = arith.extf %25 : vector<64x32xbf16> to vector<64x32xf32>
    %27 = arith.addf %22, %26 : vector<64x32xf32>
    %c0_26 = arith.constant 0 : index
    %c0_27 = arith.constant 0 : index
    %c0_28 = arith.constant 0 : index
    %c0_29 = arith.constant 0 : index
    %28 = vector.load %arg7[%c0_26, %c0_27, %c0_28, %c0_29] : memref<1x8x8x32xbf16, #tpu.memory_space<vmem>>, vector<1x8x8x32xbf16>
    %29 = vector.shape_cast %28 : vector<1x8x8x32xbf16> to vector<8x8x32xbf16>
    %30 = vector.shape_cast %29 : vector<8x8x32xbf16> to vector<64x32xbf16>
    %31 = arith.extf %30 : vector<64x32xbf16> to vector<64x32xf32>
    %32 = arith.addf %27, %31 : vector<64x32xf32>
    %33 = vector.shape_cast %27 : vector<64x32xf32> to vector<8x8x32xf32>
    %34 = arith.truncf %33 : vector<8x8x32xf32> to vector<8x8x32xbf16>
    %c0_30 = arith.constant 0 : index
    %c0_31 = arith.constant 0 : index
    %c0_32 = arith.constant 0 : index
    %c0_33 = arith.constant 0 : index
    %35 = vector.load %arg10[%c0_30, %c0_31, %c0_32, %c0_33] : memref<1x8x8x32xbf16, #tpu.memory_space<vmem>>, vector<1x8x8x32xbf16>
    %36 = vector.shape_cast %35 : vector<1x8x8x32xbf16> to vector<8x8x32xbf16>
    %37 = vector.shape_cast %34 : vector<8x8x32xbf16> to vector<1x8x8x32xbf16>
    tpu.vector_store %arg10[%c0_30, %c0_31, %c0_32, %c0_33], %37 {strides = array<i32>} : memref<1x8x8x32xbf16, #tpu.memory_space<vmem>>, vector<1x8x8x32xbf16>,
    %38 = vector.shape_cast %32 : vector<64x32xf32> to vector<8x8x32xf32>
    %39 = arith.truncf %38 : vector<8x8x32xf32> to vector<8x8x32xbf16>
    %c0_34 = arith.constant 0 : index
    %c0_35 = arith.constant 0 : index
    %c0_36 = arith.constant 0 : index
    %c0_37 = arith.constant 0 : index
    %40 = vector.load %arg11[%c0_34, %c0_35, %c0_36, %c0_37] : memref<1x8x8x32xbf16, #tpu.memory_space<vmem>>, vector<1x8x8x32xbf16>
    %41 = vector.shape_cast %40 : vector<1x8x8x32xbf16> to vector<8x8x32xbf16>
    %42 = vector.shape_cast %39 : vector<8x8x32xbf16> to vector<1x8x8x32xbf16>
    tpu.vector_store %arg11[%c0_34, %c0_35, %c0_36, %c0_37], %42 {strides = array<i32>} : memref<1x8x8x32xbf16, #tpu.memory_space<vmem>>, vector<1x8x8x32xbf16>,
    return
  }
  func.func @transform_0(%arg0: i32, %arg1: i32, %arg2: i32) -> (i32, i32, i32, i32) {
    %c0_i32 = arith.constant 0 : i32
    %c0_i32_0 = arith.constant 0 : i32
    return %arg0, %arg1, %arg2, %c0_i32 : i32, i32, i32, i32
  }
  func.func @transform_1(%arg0: i32, %arg1: i32, %arg2: i32) -> (i32, i32, i32, i32) {
    %c0_i32 = arith.constant 0 : i32
    %c0_i32_0 = arith.constant 0 : i32
    return %arg0, %arg1, %arg2, %c0_i32 : i32, i32, i32, i32
  }
  func.func @transform_2(%arg0: i32, %arg1: i32, %arg2: i32) -> (i32, i32, i32, i32) {
    %c0_i32 = arith.constant 0 : i32
    %c0_i32_0 = arith.constant 0 : i32
    return %arg0, %arg1, %arg2, %c0_i32 : i32, i32, i32, i32
  }
  func.func @transform_3(%arg0: i32, %arg1: i32, %arg2: i32) -> (i32, i32, i32, i32) {
    %c0_i32 = arith.constant 0 : i32
    %c0_i32_0 = arith.constant 0 : i32
    return %arg0, %arg1, %arg2, %c0_i32 : i32, i32, i32, i32
  }
  func.func @transform_4(%arg0: i32, %arg1: i32, %arg2: i32) -> (i32, i32, i32, i32) {
    %c0_i32 = arith.constant 0 : i32
    %c0_i32_0 = arith.constant 0 : i32
    return %arg0, %arg1, %arg2, %c0_i32 : i32, i32, i32, i32
  }
  func.func @transform_5(%arg0: i32, %arg1: i32, %arg2: i32) -> (i32, i32, i32) {
    %c0_i32 = arith.constant 0 : i32
    %c0_i32_0 = arith.constant 0 : i32
    %c0_i32_1 = arith.constant 0 : i32
    %c0_i32_2 = arith.constant 0 : i32
    return %c0_i32, %c0_i32_0, %c0_i32_1 : i32, i32, i32
  }
  func.func @transform_6(%arg0: i32, %arg1: i32, %arg2: i32) -> (i32, i32) {
    %c0_i32 = arith.constant 0 : i32
    %c0_i32_0 = arith.constant 0 : i32
    %c0_i32_1 = arith.constant 0 : i32
    return %c0_i32, %c0_i32_0 : i32, i32
  }
  func.func @transform_7(%arg0: i32, %arg1: i32, %arg2: i32) -> (i32, i32, i32, i32) {
    %c0_i32 = arith.constant 0 : i32
    %c0_i32_0 = arith.constant 0 : i32
    return %arg0, %arg1, %arg2, %c0_i32 : i32, i32, i32, i32
  }
  func.func @transform_8(%arg0: i32, %arg1: i32, %arg2: i32) -> (i32, i32, i32, i32) {
    %c0_i32 = arith.constant 0 : i32
    %c0_i32_0 = arith.constant 0 : i32
    return %arg0, %arg1, %arg2, %c0_i32 : i32, i32, i32, i32
  }
}

module attributes {stable_mosaic.version = 11 : i64} {
  func.func @_freq_mix_kernel(%arg0: i32, %arg1: i32, %arg2: i32, %arg3: memref<1x8x8x32xbf16, #tpu.memory_space<vmem>>, %arg4: memref<1x8x8x32xbf16, #tpu.memory_space<vmem>>, %arg5: memref<32x32xbf16, #tpu.memory_space<vmem>>, %arg6: memref<1x32xf32, #tpu.memory_space<vmem>>, %arg7: memref<1x8x8x32xbf16, #tpu.memory_space<vmem>>) attributes {dimension_semantics = [#tpu.dimension_semantics<parallel>, #tpu.dimension_semantics<parallel>, #tpu.dimension_semantics<parallel>], iteration_bounds = array<i64: 2, 1, 1>, scalar_prefetch = 0 : i64, scratch_operands = 0 : i64, tpu.core_type = #tpu.core_type<tc>, window_params = [{transform_indices = @transform_0, window_bounds = array<i64: 1, 8, 8, 32>}, {transform_indices = @transform_1, window_bounds = array<i64: 1, 8, 8, 32>}, {pipeline_mode = #tpu.pipeline_mode<synchronous>, transform_indices = @transform_2, window_bounds = array<i64: 32, 32>}, {pipeline_mode = #tpu.pipeline_mode<synchronous>, transform_indices = @transform_3, window_bounds = array<i64: 1, 32>}, {transform_indices = @transform_4, window_bounds = array<i64: 1, 8, 8, 32>}]} {
    %c0 = arith.constant 0 : index
    %c0_0 = arith.constant 0 : index
    %c0_1 = arith.constant 0 : index
    %c0_2 = arith.constant 0 : index
    %0 = vector.load %arg3[%c0, %c0_0, %c0_1, %c0_2] : memref<1x8x8x32xbf16, #tpu.memory_space<vmem>>, vector<1x8x8x32xbf16>
    %1 = vector.shape_cast %0 : vector<1x8x8x32xbf16> to vector<8x8x32xbf16>
    %2 = vector.shape_cast %1 : vector<8x8x32xbf16> to vector<64x32xbf16>
    %c0_3 = arith.constant 0 : index
    %c0_4 = arith.constant 0 : index
    %3 = vector.load %arg5[%c0_3, %c0_4] : memref<32x32xbf16, #tpu.memory_space<vmem>>, vector<32x32xbf16>
    %cst = arith.constant dense<0.000000e+00> : vector<64x32xf32>
    %4 = tpu.matmul %2, %3, %cst {dimension_numbers = #tpu.dot_dimension_numbers<[1], [0], [0], [1], [0, 0, 1, 1], [], []>} : vector<64x32xbf16>, vector<32x32xbf16>, vector<64x32xf32> -> vector<64x32xf32>
    %c0_5 = arith.constant 0 : index
    %c0_6 = arith.constant 0 : index
    %5 = vector.load %arg6[%c0_5, %c0_6] : memref<1x32xf32, #tpu.memory_space<vmem>>, vector<1x32xf32>
    %6 = vector.broadcast %5 : vector<1x32xf32> to vector<64x32xf32>
    %7 = arith.addf %4, %6 : vector<64x32xf32>
    %c0_7 = arith.constant 0 : index
    %c0_8 = arith.constant 0 : index
    %c0_9 = arith.constant 0 : index
    %c0_10 = arith.constant 0 : index
    %8 = vector.load %arg4[%c0_7, %c0_8, %c0_9, %c0_10] : memref<1x8x8x32xbf16, #tpu.memory_space<vmem>>, vector<1x8x8x32xbf16>
    %9 = vector.shape_cast %8 : vector<1x8x8x32xbf16> to vector<8x8x32xbf16>
    %10 = vector.shape_cast %9 : vector<8x8x32xbf16> to vector<64x32xbf16>
    %11 = arith.extf %10 : vector<64x32xbf16> to vector<64x32xf32>
    %12 = arith.addf %7, %11 : vector<64x32xf32>
    %13 = vector.shape_cast %12 : vector<64x32xf32> to vector<8x8x32xf32>
    %14 = arith.truncf %13 : vector<8x8x32xf32> to vector<8x8x32xbf16>
    %c0_11 = arith.constant 0 : index
    %c0_12 = arith.constant 0 : index
    %c0_13 = arith.constant 0 : index
    %c0_14 = arith.constant 0 : index
    %15 = vector.load %arg7[%c0_11, %c0_12, %c0_13, %c0_14] : memref<1x8x8x32xbf16, #tpu.memory_space<vmem>>, vector<1x8x8x32xbf16>
    %16 = vector.shape_cast %15 : vector<1x8x8x32xbf16> to vector<8x8x32xbf16>
    %17 = vector.shape_cast %14 : vector<8x8x32xbf16> to vector<1x8x8x32xbf16>
    tpu.vector_store %arg7[%c0_11, %c0_12, %c0_13, %c0_14], %17 {strides = array<i32>} : memref<1x8x8x32xbf16, #tpu.memory_space<vmem>>, vector<1x8x8x32xbf16>,
    return
  }
  func.func @transform_0(%arg0: i32, %arg1: i32, %arg2: i32) -> (i32, i32, i32, i32) {
    %c0_i32 = arith.constant 0 : i32
    %c0_i32_0 = arith.constant 0 : i32
    return %arg0, %arg1, %arg2, %c0_i32 : i32, i32, i32, i32
  }
  func.func @transform_1(%arg0: i32, %arg1: i32, %arg2: i32) -> (i32, i32, i32, i32) {
    %c0_i32 = arith.constant 0 : i32
    %c0_i32_0 = arith.constant 0 : i32
    return %arg0, %arg1, %arg2, %c0_i32 : i32, i32, i32, i32
  }
  func.func @transform_2(%arg0: i32, %arg1: i32, %arg2: i32) -> (i32, i32) {
    %c0_i32 = arith.constant 0 : i32
    %c0_i32_0 = arith.constant 0 : i32
    %c0_i32_1 = arith.constant 0 : i32
    return %c0_i32, %c0_i32_0 : i32, i32
  }
  func.func @transform_3(%arg0: i32, %arg1: i32, %arg2: i32) -> (i32, i32) {
    %c0_i32 = arith.constant 0 : i32
    %c0_i32_0 = arith.constant 0 : i32
    %c0_i32_1 = arith.constant 0 : i32
    return %c0_i32, %c0_i32_0 : i32, i32
  }
  func.func @transform_4(%arg0: i32, %arg1: i32, %arg2: i32) -> (i32, i32, i32, i32) {
    %c0_i32 = arith.constant 0 : i32
    %c0_i32_0 = arith.constant 0 : i32
    return %arg0, %arg1, %arg2, %c0_i32 : i32, i32, i32, i32
  }
}

module attributes {stable_mosaic.version = 11 : i64} {
  func.func @_head_kernel(%arg0: i32, %arg1: memref<16x8x32xbf16, #tpu.memory_space<vmem>>, %arg2: memref<16x8x32xbf16, #tpu.memory_space<vmem>>, %arg3: memref<16x8xf32, #tpu.memory_space<vmem>>, %arg4: memref<32x30xbf16, #tpu.memory_space<vmem>>, %arg5: memref<32x30xbf16, #tpu.memory_space<vmem>>, %arg6: memref<1x30xf32, #tpu.memory_space<vmem>>, %arg7: memref<16x8xf32, #tpu.memory_space<vmem>>) attributes {dimension_semantics = [#tpu.dimension_semantics<parallel>], iteration_bounds = array<i64: 1>, scalar_prefetch = 0 : i64, scratch_operands = 0 : i64, tpu.core_type = #tpu.core_type<tc>, window_params = [{transform_indices = @transform_0, window_bounds = array<i64: 16, 8, 32>}, {transform_indices = @transform_1, window_bounds = array<i64: 16, 8, 32>}, {transform_indices = @transform_2, window_bounds = array<i64: 16, 8>}, {pipeline_mode = #tpu.pipeline_mode<synchronous>, transform_indices = @transform_3, window_bounds = array<i64: 32, 30>}, {pipeline_mode = #tpu.pipeline_mode<synchronous>, transform_indices = @transform_4, window_bounds = array<i64: 32, 30>}, {pipeline_mode = #tpu.pipeline_mode<synchronous>, transform_indices = @transform_5, window_bounds = array<i64: 1, 30>}, {transform_indices = @transform_6, window_bounds = array<i64: 16, 8>}]} {
    %c0 = arith.constant 0 : index
    %c0_0 = arith.constant 0 : index
    %c0_1 = arith.constant 0 : index
    %0 = vector.load %arg1[%c0, %c0_0, %c0_1] : memref<16x8x32xbf16, #tpu.memory_space<vmem>>, vector<16x8x32xbf16>
    %1 = vector.shape_cast %0 : vector<16x8x32xbf16> to vector<128x32xbf16>
    %c0_2 = arith.constant 0 : index
    %c0_3 = arith.constant 0 : index
    %c0_4 = arith.constant 0 : index
    %2 = vector.load %arg2[%c0_2, %c0_3, %c0_4] : memref<16x8x32xbf16, #tpu.memory_space<vmem>>, vector<16x8x32xbf16>
    %3 = vector.shape_cast %2 : vector<16x8x32xbf16> to vector<128x32xbf16>
    %c0_5 = arith.constant 0 : index
    %c0_6 = arith.constant 0 : index
    %4 = vector.load %arg4[%c0_5, %c0_6] : memref<32x30xbf16, #tpu.memory_space<vmem>>, vector<32x30xbf16>
    %cst = arith.constant dense<0.000000e+00> : vector<128x30xf32>
    %5 = tpu.matmul %1, %4, %cst {dimension_numbers = #tpu.dot_dimension_numbers<[1], [0], [0], [1], [0, 0, 1, 1], [], []>} : vector<128x32xbf16>, vector<32x30xbf16>, vector<128x30xf32> -> vector<128x30xf32>
    %c0_7 = arith.constant 0 : index
    %c0_8 = arith.constant 0 : index
    %6 = vector.load %arg5[%c0_7, %c0_8] : memref<32x30xbf16, #tpu.memory_space<vmem>>, vector<32x30xbf16>
    %cst_9 = arith.constant dense<0.000000e+00> : vector<128x30xf32>
    %7 = tpu.matmul %3, %6, %cst_9 {dimension_numbers = #tpu.dot_dimension_numbers<[1], [0], [0], [1], [0, 0, 1, 1], [], []>} : vector<128x32xbf16>, vector<32x30xbf16>, vector<128x30xf32> -> vector<128x30xf32>
    %8 = arith.addf %5, %7 : vector<128x30xf32>
    %c0_10 = arith.constant 0 : index
    %c0_11 = arith.constant 0 : index
    %9 = vector.load %arg6[%c0_10, %c0_11] : memref<1x30xf32, #tpu.memory_space<vmem>>, vector<1x30xf32>
    %10 = vector.broadcast %9 : vector<1x30xf32> to vector<128x30xf32>
    %11 = arith.addf %8, %10 : vector<128x30xf32>
    %12 = vector.shape_cast %11 : vector<128x30xf32> to vector<16x8x30xf32>
    %13 = vector.extract_strided_slice %12 {offsets = [0, 0, 0], sizes = [16, 8, 10], strides = [1, 1, 1]} : vector<16x8x30xf32> to vector<16x8x10xf32>
    %14 = vector.extract_strided_slice %12 {offsets = [0, 0, 10], sizes = [16, 8, 10], strides = [1, 1, 1]} : vector<16x8x30xf32> to vector<16x8x10xf32>
    %15 = vector.extract_strided_slice %12 {offsets = [0, 0, 20], sizes = [16, 8, 10], strides = [1, 1, 1]} : vector<16x8x30xf32> to vector<16x8x10xf32>
    %16 = arith.mulf %14, %14 : vector<16x8x10xf32>
    %cst_12 = arith.constant dense<0.000000e+00> : vector<16x8xf32>
    %17 = vector.multi_reduction <add>, %16, %cst_12 [2] : vector<16x8x10xf32> to vector<16x8xf32>
    %18 = vector.shape_cast %17 : vector<16x8xf32> to vector<16x8x1xf32>
    %cst_13 = arith.constant 9.99999996E-13 : f32
    %19 = vector.broadcast %cst_13 : f32 to vector<16x8x1xf32>
    %20 = arith.addf %18, %19 : vector<16x8x1xf32>
    %21 = math.rsqrt %20 : vector<16x8x1xf32>
    %22 = vector.broadcast %21 : vector<16x8x1xf32> to vector<16x8x10xf32>
    %23 = arith.mulf %14, %22 : vector<16x8x10xf32>
    %cst_14 = arith.constant 1.000000e-01 : f32
    %24 = vector.broadcast %cst_14 : f32 to vector<16x8x10xf32>
    %25 = arith.mulf %23, %24 : vector<16x8x10xf32>
    %26 = math.exp %25 : vector<16x8x10xf32>
    %cst_15 = arith.constant dense<0xFF800000> : vector<16x8xf32>
    %27 = vector.multi_reduction <maximumf>, %15, %cst_15 [2] : vector<16x8x10xf32> to vector<16x8xf32>
    %28 = vector.shape_cast %27 : vector<16x8xf32> to vector<16x8x1xf32>
    %29 = vector.broadcast %28 : vector<16x8x1xf32> to vector<16x8x10xf32>
    %30 = arith.subf %15, %29 : vector<16x8x10xf32>
    %31 = math.exp %30 : vector<16x8x10xf32>
    %cst_16 = arith.constant dense<0.000000e+00> : vector<16x8xf32>
    %32 = vector.multi_reduction <add>, %31, %cst_16 [2] : vector<16x8x10xf32> to vector<16x8xf32>
    %33 = vector.shape_cast %32 : vector<16x8xf32> to vector<16x8x1xf32>
    %34 = vector.broadcast %33 : vector<16x8x1xf32> to vector<16x8x10xf32>
    %35 = arith.divf %31, %34 : vector<16x8x10xf32>
    %36 = arith.mulf %13, %35 : vector<16x8x10xf32>
    %cst_17 = arith.constant dense<0.000000e+00> : vector<16x8xf32>
    %37 = vector.multi_reduction <add>, %36, %cst_17 [2] : vector<16x8x10xf32> to vector<16x8xf32>
    %38 = arith.mulf %26, %35 : vector<16x8x10xf32>
    %cst_18 = arith.constant dense<0.000000e+00> : vector<16x8xf32>
    %39 = vector.multi_reduction <add>, %38, %cst_18 [2] : vector<16x8x10xf32> to vector<16x8xf32>
    %c0_19 = arith.constant 0 : index
    %c0_20 = arith.constant 0 : index
    %40 = vector.load %arg3[%c0_19, %c0_20] : memref<16x8xf32, #tpu.memory_space<vmem>>, vector<16x8xf32>
    %41 = arith.mulf %39, %40 : vector<16x8xf32>
    %42 = arith.addf %37, %41 : vector<16x8xf32>
    %c0_21 = arith.constant 0 : index
    %c0_22 = arith.constant 0 : index
    %43 = vector.load %arg7[%c0_21, %c0_22] : memref<16x8xf32, #tpu.memory_space<vmem>>, vector<16x8xf32>
    tpu.vector_store %arg7[%c0_21, %c0_22], %42 {strides = array<i32>} : memref<16x8xf32, #tpu.memory_space<vmem>>, vector<16x8xf32>,
    return
  }
  func.func @transform_0(%arg0: i32) -> (i32, i32, i32) {
    %c0_i32 = arith.constant 0 : i32
    %c0_i32_0 = arith.constant 0 : i32
    %c0_i32_1 = arith.constant 0 : i32
    return %arg0, %c0_i32, %c0_i32_0 : i32, i32, i32
  }
  func.func @transform_1(%arg0: i32) -> (i32, i32, i32) {
    %c0_i32 = arith.constant 0 : i32
    %c0_i32_0 = arith.constant 0 : i32
    %c0_i32_1 = arith.constant 0 : i32
    return %arg0, %c0_i32, %c0_i32_0 : i32, i32, i32
  }
  func.func @transform_2(%arg0: i32) -> (i32, i32) {
    %c0_i32 = arith.constant 0 : i32
    %c0_i32_0 = arith.constant 0 : i32
    return %arg0, %c0_i32 : i32, i32
  }
  func.func @transform_3(%arg0: i32) -> (i32, i32) {
    %c0_i32 = arith.constant 0 : i32
    %c0_i32_0 = arith.constant 0 : i32
    %c0_i32_1 = arith.constant 0 : i32
    return %c0_i32, %c0_i32_0 : i32, i32
  }
  func.func @transform_4(%arg0: i32) -> (i32, i32) {
    %c0_i32 = arith.constant 0 : i32
    %c0_i32_0 = arith.constant 0 : i32
    %c0_i32_1 = arith.constant 0 : i32
    return %c0_i32, %c0_i32_0 : i32, i32
  }
  func.func @transform_5(%arg0: i32) -> (i32, i32) {
    %c0_i32 = arith.constant 0 : i32
    %c0_i32_0 = arith.constant 0 : i32
    %c0_i32_1 = arith.constant 0 : i32
    return %c0_i32, %c0_i32_0 : i32, i32
  }
  func.func @transform_6(%arg0: i32) -> (i32, i32) {
    %c0_i32 = arith.constant 0 : i32
    %c0_i32_0 = arith.constant 0 : i32
    return %arg0, %c0_i32 : i32, i32
  }
}

</mosaic_0001>

<llo_original>
// kernel: melnet_tier_forward.12
$region0: #{melnet_tier_forward.12}
  #allocation0 [shape = 'u32[]', space=smem, size = 0x4, offset = 0x4, fixed_abs, tag = 'smem constant byte address 0x4 - core index']
  #allocation1 [shape = 'u32[72,128]{1,0:T(1,128)}', space=vmem, size = 0x9000, scoped, tag = 'internal scratch']
  %s0 = inlined_call_operand.vmem [shape: f32[128,3], index: 0, kind: input, shape index: {}]
  %s1 = inlined_call_operand.vmem [shape: f32[4,32], index: 1, kind: input, shape index: {}]
  %s2 = inlined_call_operand.vmem [shape: f32[2,32], index: 2, kind: input, shape index: {}]
  %s3 = inlined_call_operand.vmem [shape: bf16[128,32], index: 3, kind: output, shape index: {0}]
  %s4 = inlined_call_operand.vmem [shape: bf16[128,32], index: 4, kind: output, shape index: {1}]
  %5 = xla_tuple %s3, %s4
  %s6 = sld [smem:[#allocation0]]
  $region30: #{melnet_tier_forward.12} parent=0
    _
  %s8 = ssub.s32 1, %s6
  %s9 = scalar_select 0, %s8, %s6
  // Predicated region
  $region2: #{melnet_tier_forward.12} parent=0 // pred_check
    _
  $region3: #{melnet_tier_forward.12} parent=0 // pred_check_branch
    %11 = sbr.rel (0) target = $region5
  $region4: #{melnet_tier_forward.12} parent=0 // pred_region
    _
  $region5: #{melnet_tier_forward.12} parent=0 // pred_fallthru
    _
  // Predicated region
  $region6: #{melnet_tier_forward.12} parent=0 // pred_check
    _
  $region7: #{melnet_tier_forward.12} parent=0 // pred_check_branch
    %13 = sbr.rel (0) target = $region9
  $region8: #{melnet_tier_forward.12} parent=0 // pred_region
    _
  $region9: #{melnet_tier_forward.12} parent=0 // pred_fallthru
    _
  // Predicated region
  $region10: #{melnet_tier_forward.12} parent=0 // pred_check
    _
  $region11: #{melnet_tier_forward.12} parent=0 // pred_check_branch
    %15 = sbr.rel (0) target = $region13
  $region12: #{melnet_tier_forward.12} parent=0 // pred_region
    _
  $region13: #{melnet_tier_forward.12} parent=0 // pred_fallthru
    _
  %v16 = vld [vmem:[%s0] sm:$0xff]
  %v17 = vld [vmem:[%s0 + $0x8] sm:$0xff]
  %v18 = vld [vmem:[%s0 + $0x10] sm:$0xff]
  %v19 = vld [vmem:[%s0 + $0x18] sm:$0xff]
  %v20 = vld [vmem:[%s0 + $0x20] sm:$0xff]
  %v21 = vld [vmem:[%s0 + $0x28] sm:$0xff]
  %v22 = vld [vmem:[%s0 + $0x30] sm:$0xff]
  %v23 = vld [vmem:[%s0 + $0x38] sm:$0xff]
  %v24 = vld [vmem:[%s0 + $0x40] sm:$0xff]
  %v25 = vld [vmem:[%s0 + $0x48] sm:$0xff]
  %v26 = vld [vmem:[%s0 + $0x50] sm:$0xff]
  %v27 = vld [vmem:[%s0 + $0x58] sm:$0xff]
  %v28 = vld [vmem:[%s0 + $0x60] sm:$0xff]
  %v29 = vld [vmem:[%s0 + $0x68] sm:$0xff]
  %v30 = vld [vmem:[%s0 + $0x70] sm:$0xff]
  %v31 = vld [vmem:[%s0 + $0x78] sm:$0xff]
  %v32 = vld [vmem:[%s1] sm:$0xf]
  %v33 = vld [vmem:[%s2] sm:$0x3]
  %35 = vset.pattern.permute.xlu0 0
  %36 = vperm.xlu0 %35, %v16
  %v37 = vpop.permute.xlu0 %36
  %40 = vset.pattern.permute.xlu0 0
  %41 = vperm.xlu0 %40, %v17
  %v42 = vpop.permute.xlu0 %41
  %45 = vset.pattern.permute.xlu0 0
  %46 = vperm.xlu0 %45, %v18
  %v47 = vpop.permute.xlu0 %46
  %50 = vset.pattern.permute.xlu0 0
  %51 = vperm.xlu0 %50, %v19
  %v52 = vpop.permute.xlu0 %51
  %55 = vset.pattern.permute.xlu0 0
  %56 = vperm.xlu0 %55, %v20
  %v57 = vpop.permute.xlu0 %56
  %60 = vset.pattern.permute.xlu0 0
  %61 = vperm.xlu0 %60, %v21
  %v62 = vpop.permute.xlu0 %61
  %65 = vset.pattern.permute.xlu0 0
  %66 = vperm.xlu0 %65, %v22
  %v67 = vpop.permute.xlu0 %66
  %70 = vset.pattern.permute.xlu0 0
  %71 = vperm.xlu0 %70, %v23
  %v72 = vpop.permute.xlu0 %71
  %75 = vset.pattern.permute.xlu0 0
  %76 = vperm.xlu0 %75, %v24
  %v77 = vpop.permute.xlu0 %76
  %80 = vset.pattern.permute.xlu0 0
  %81 = vperm.xlu0 %80, %v25
  %v82 = vpop.permute.xlu0 %81
  %85 = vset.pattern.permute.xlu0 0
  %86 = vperm.xlu0 %85, %v26
  %v87 = vpop.permute.xlu0 %86
  %90 = vset.pattern.permute.xlu0 0
  %91 = vperm.xlu0 %90, %v27
  %v92 = vpop.permute.xlu0 %91
  %95 = vset.pattern.permute.xlu0 0
  %96 = vperm.xlu0 %95, %v28
  %v97 = vpop.permute.xlu0 %96
  %100 = vset.pattern.permute.xlu0 0
  %101 = vperm.xlu0 %100, %v29
  %v102 = vpop.permute.xlu0 %101
  %105 = vset.pattern.permute.xlu0 0
  %106 = vperm.xlu0 %105, %v30
  %v107 = vpop.permute.xlu0 %106
  %110 = vset.pattern.permute.xlu0 0
  %111 = vperm.xlu0 %110, %v31
  %v112 = vpop.permute.xlu0 %111
  %v114 = vperm.slane %v32, 0
  %v115 = vmul.f32 %v37, %v114
  %v116 = vmul.f32 %v42, %v114
  %v117 = vmul.f32 %v47, %v114
  %v118 = vmul.f32 %v52, %v114
  %v119 = vmul.f32 %v57, %v114
  %v120 = vmul.f32 %v62, %v114
  %v121 = vmul.f32 %v67, %v114
  %v122 = vmul.f32 %v72, %v114
  %v123 = vmul.f32 %v77, %v114
  %v124 = vmul.f32 %v82, %v114
  %v125 = vmul.f32 %v87, %v114
  %v126 = vmul.f32 %v92, %v114
  %v127 = vmul.f32 %v97, %v114
  %v128 = vmul.f32 %v102, %v114
  %v129 = vmul.f32 %v107, %v114
  %v130 = vmul.f32 %v112, %v114
  %131 = vset.pattern.permute.xlu0 2
  %132 = vperm.xlu0 %131, %v16
  %v133 = vpop.permute.xlu0 %132
  %135 = vset.pattern.permute.xlu0 2
  %136 = vperm.xlu0 %135, %v17
  %v137 = vpop.permute.xlu0 %136
  %139 = vset.pattern.permute.xlu0 2
  %140 = vperm.xlu0 %139, %v18
  %v141 = vpop.permute.xlu0 %140
  %143 = vset.pattern.permute.xlu0 2
  %144 = vperm.xlu0 %143, %v19
  %v145 = vpop.permute.xlu0 %144
  %147 = vset.pattern.permute.xlu0 2
  %148 = vperm.xlu0 %147, %v20
  %v149 = vpop.permute.xlu0 %148
  %151 = vset.pattern.permute.xlu0 2
  %152 = vperm.xlu0 %151, %v21
  %v153 = vpop.permute.xlu0 %152
  %155 = vset.pattern.permute.xlu0 2
  %156 = vperm.xlu0 %155, %v22
  %v157 = vpop.permute.xlu0 %156
  %159 = vset.pattern.permute.xlu0 2
  %160 = vperm.xlu0 %159, %v23
  %v161 = vpop.permute.xlu0 %160
  %163 = vset.pattern.permute.xlu0 2
  %164 = vperm.xlu0 %163, %v24
  %v165 = vpop.permute.xlu0 %164
  %167 = vset.pattern.permute.xlu0 2
  %168 = vperm.xlu0 %167, %v25
  %v169 = vpop.permute.xlu0 %168
  %171 = vset.pattern.permute.xlu0 2
  %172 = vperm.xlu0 %171, %v26
  %v173 = vpop.permute.xlu0 %172
  %175 = vset.pattern.permute.xlu0 2
  %176 = vperm.xlu0 %175, %v27
  %v177 = vpop.permute.xlu0 %176
  %179 = vset.pattern.permute.xlu0 2
  %180 = vperm.xlu0 %179, %v28
  %v181 = vpop.permute.xlu0 %180
  %183 = vset.pattern.permute.xlu0 2
  %184 = vperm.xlu0 %183, %v29
  %v185 = vpop.permute.xlu0 %184
  %187 = vset.pattern.permute.xlu0 2
  %188 = vperm.xlu0 %187, %v30
  %v189 = vpop.permute.xlu0 %188
  %191 = vset.pattern.permute.xlu0 2
  %192 = vperm.xlu0 %191, %v31
  %v193 = vpop.permute.xlu0 %192
  %v195 = vperm.slane %v32, 1
  %v196 = vmul.f32 %v133, %v195
  %v197 = vmul.f32 %v137, %v195
  %v198 = vmul.f32 %v141, %v195
  %v199 = vmul.f32 %v145, %v195
  %v200 = vmul.f32 %v149, %v195
  %v201 = vmul.f32 %v153, %v195
  %v202 = vmul.f32 %v157, %v195
  %v203 = vmul.f32 %v161, %v195
  %v204 = vmul.f32 %v165, %v195
  %v205 = vmul.f32 %v169, %v195
  %v206 = vmul.f32 %v173, %v195
  %v207 = vmul.f32 %v177, %v195
  %v208 = vmul.f32 %v181, %v195
  %v209 = vmul.f32 %v185, %v195
  %v210 = vmul.f32 %v189, %v195
  %v211 = vmul.f32 %v193, %v195
  %v212 = vadd.f32 %v115, %v196
  %v213 = vadd.f32 %v116, %v197
  %v214 = vadd.f32 %v117, %v198
  %v215 = vadd.f32 %v118, %v199
  %v216 = vadd.f32 %v119, %v200
  %v217 = vadd.f32 %v120, %v201
  %v218 = vadd.f32 %v121, %v202
  %v219 = vadd.f32 %v122, %v203
  %v220 = vadd.f32 %v123, %v204
  %v221 = vadd.f32 %v124, %v205
  %v222 = vadd.f32 %v125, %v206
  %v223 = vadd.f32 %v126, %v207
  %v224 = vadd.f32 %v127, %v208
  %v225 = vadd.f32 %v128, %v209
  %v226 = vadd.f32 %v129, %v210
  %v227 = vadd.f32 %v130, %v211
  %v228 = vperm.slane %v33, 0
  %v229 = vadd.f32 %v212, %v228
  %v230 = vadd.f32 %v213, %v228
  %v231 = vadd.f32 %v214, %v228
  %v232 = vadd.f32 %v215, %v228
  %v233 = vadd.f32 %v216, %v228
  %v234 = vadd.f32 %v217, %v228
  %v235 = vadd.f32 %v218, %v228
  %v236 = vadd.f32 %v219, %v228
  %v237 = vadd.f32 %v220, %v228
  %v238 = vadd.f32 %v221, %v228
  %v239 = vadd.f32 %v222, %v228
  %v240 = vadd.f32 %v223, %v228
  %v241 = vadd.f32 %v224, %v228
  %v242 = vadd.f32 %v225, %v228
  %v243 = vadd.f32 %v226, %v228
  %v244 = vadd.f32 %v227, %v228
  %v245 = vpack.c.bf16 %v229, %v229
  %v246 = vpack.c.bf16 %v230, %v230
  %v247 = vpack.c.bf16 %v231, %v231
  %v248 = vpack.c.bf16 %v232, %v232
  %v249 = vpack.c.bf16 %v233, %v233
  %v250 = vpack.c.bf16 %v234, %v234
  %v251 = vpack.c.bf16 %v235, %v235
  %v252 = vpack.c.bf16 %v236, %v236
  %v253 = vpack.c.bf16 %v237, %v237
  %v254 = vpack.c.bf16 %v238, %v238
  %v255 = vpack.c.bf16 %v239, %v239
  %v256 = vpack.c.bf16 %v240, %v240
  %v257 = vpack.c.bf16 %v241, %v241
  %v258 = vpack.c.bf16 %v242, %v242
  %v259 = vpack.c.bf16 %v243, %v243
  %v260 = vpack.c.bf16 %v244, %v244
  %vm261 = vcmask 257024
  %262 = vst.msk [vmem:[%s3] sm:$0xf] %vm261, %v245
  %263 = vst.msk [vmem:[%s3 + $0x4] sm:$0xf] %vm261, %v246
  %264 = vst.msk [vmem:[%s3 + $0x8] sm:$0xf] %vm261, %v247
  %265 = vst.msk [vmem:[%s3 + $0xc] sm:$0xf] %vm261, %v248
  %266 = vst.msk [vmem:[%s3 + $0x10] sm:$0xf] %vm261, %v249
  %267 = vst.msk [vmem:[%s3 + $0x14] sm:$0xf] %vm261, %v250
  %268 = vst.msk [vmem:[%s3 + $0x18] sm:$0xf] %vm261, %v251
  %269 = vst.msk [vmem:[%s3 + $0x1c] sm:$0xf] %vm261, %v252
  %270 = vst.msk [vmem:[%s3 + $0x20] sm:$0xf] %vm261, %v253
  %271 = vst.msk [vmem:[%s3 + $0x24] sm:$0xf] %vm261, %v254
  %272 = vst.msk [vmem:[%s3 + $0x28] sm:$0xf] %vm261, %v255
  %273 = vst.msk [vmem:[%s3 + $0x2c] sm:$0xf] %vm261, %v256
  %274 = vst.msk [vmem:[%s3 + $0x30] sm:$0xf] %vm261, %v257
  %275 = vst.msk [vmem:[%s3 + $0x34] sm:$0xf] %vm261, %v258
  %276 = vst.msk [vmem:[%s3 + $0x38] sm:$0xf] %vm261, %v259
  %277 = vst.msk [vmem:[%s3 + $0x3c] sm:$0xf] %vm261, %v260
  %278 = vset.pattern.permute.xlu0 1
  %279 = vperm.xlu0 %278, %v16
  %v280 = vpop.permute.xlu0 %279
  %282 = vset.pattern.permute.xlu0 1
  %283 = vperm.xlu0 %282, %v17
  %v284 = vpop.permute.xlu0 %283
  %286 = vset.pattern.permute.xlu0 1
  %287 = vperm.xlu0 %286, %v18
  %v288 = vpop.permute.xlu0 %287
  %290 = vset.pattern.permute.xlu0 1
  %291 = vperm.xlu0 %290, %v19
  %v292 = vpop.permute.xlu0 %291
  %294 = vset.pattern.permute.xlu0 1
  %295 = vperm.xlu0 %294, %v20
  %v296 = vpop.permute.xlu0 %295
  %298 = vset.pattern.permute.xlu0 1
  %299 = vperm.xlu0 %298, %v21
  %v300 = vpop.permute.xlu0 %299
  %302 = vset.pattern.permute.xlu0 1
  %303 = vperm.xlu0 %302, %v22
  %v304 = vpop.permute.xlu0 %303
  %306 = vset.pattern.permute.xlu0 1
  %307 = vperm.xlu0 %306, %v23
  %v308 = vpop.permute.xlu0 %307
  %310 = vset.pattern.permute.xlu0 1
  %311 = vperm.xlu0 %310, %v24
  %v312 = vpop.permute.xlu0 %311
  %314 = vset.pattern.permute.xlu0 1
  %315 = vperm.xlu0 %314, %v25
  %v316 = vpop.permute.xlu0 %315
  %318 = vset.pattern.permute.xlu0 1
  %319 = vperm.xlu0 %318, %v26
  %v320 = vpop.permute.xlu0 %319
  %322 = vset.pattern.permute.xlu0 1
  %323 = vperm.xlu0 %322, %v27
  %v324 = vpop.permute.xlu0 %323
  %326 = vset.pattern.permute.xlu0 1
  %327 = vperm.xlu0 %326, %v28
  %v328 = vpop.permute.xlu0 %327
  %330 = vset.pattern.permute.xlu0 1
  %331 = vperm.xlu0 %330, %v29
  %v332 = vpop.permute.xlu0 %331
  %334 = vset.pattern.permute.xlu0 1
  %335 = vperm.xlu0 %334, %v30
  %v336 = vpop.permute.xlu0 %335
  %338 = vset.pattern.permute.xlu0 1
  %339 = vperm.xlu0 %338, %v31
  %v340 = vpop.permute.xlu0 %339
  %v342 = vperm.slane %v32, 2
  %v343 = vmul.f32 %v280, %v342
  %v344 = vmul.f32 %v284, %v342
  %v345 = vmul.f32 %v288, %v342
  %v346 = vmul.f32 %v292, %v342
  %v347 = vmul.f32 %v296, %v342
  %v348 = vmul.f32 %v300, %v342
  %v349 = vmul.f32 %v304, %v342
  %v350 = vmul.f32 %v308, %v342
  %v351 = vmul.f32 %v312, %v342
  %v352 = vmul.f32 %v316, %v342
  %v353 = vmul.f32 %v320, %v342
  %v354 = vmul.f32 %v324, %v342
  %v355 = vmul.f32 %v328, %v342
  %v356 = vmul.f32 %v332, %v342
  %v357 = vmul.f32 %v336, %v342
  %v358 = vmul.f32 %v340, %v342
  %v359 = vperm.slane %v32, 3
  %v360 = vmul.f32 %v133, %v359
  %v361 = vmul.f32 %v137, %v359
  %v362 = vmul.f32 %v141, %v359
  %v363 = vmul.f32 %v145, %v359
  %v364 = vmul.f32 %v149, %v359
  %v365 = vmul.f32 %v153, %v359
  %v366 = vmul.f32 %v157, %v359
  %v367 = vmul.f32 %v161, %v359
  %v368 = vmul.f32 %v165, %v359
  %v369 = vmul.f32 %v169, %v359
  %v370 = vmul.f32 %v173, %v359
  %v371 = vmul.f32 %v177, %v359
  %v372 = vmul.f32 %v181, %v359
  %v373 = vmul.f32 %v185, %v359
  %v374 = vmul.f32 %v189, %v359
  %v375 = vmul.f32 %v193, %v359
  %v376 = vadd.f32 %v343, %v360
  %v377 = vadd.f32 %v344, %v361
  %v378 = vadd.f32 %v345, %v362
  %v379 = vadd.f32 %v346, %v363
  %v380 = vadd.f32 %v347, %v364
  %v381 = vadd.f32 %v348, %v365
  %v382 = vadd.f32 %v349, %v366
  %v383 = vadd.f32 %v350, %v367
  %v384 = vadd.f32 %v351, %v368
  %v385 = vadd.f32 %v352, %v369
  %v386 = vadd.f32 %v353, %v370
  %v387 = vadd.f32 %v354, %v371
  %v388 = vadd.f32 %v355, %v372
  %v389 = vadd.f32 %v356, %v373
  %v390 = vadd.f32 %v357, %v374
  %v391 = vadd.f32 %v358, %v375
  %v392 = vperm.slane %v33, 1
  %v393 = vadd.f32 %v376, %v392
  %v394 = vadd.f32 %v377, %v392
  %v395 = vadd.f32 %v378, %v392
  %v396 = vadd.f32 %v379, %v392
  %v397 = vadd.f32 %v380, %v392
  %v398 = vadd.f32 %v381, %v392
  %v399 = vadd.f32 %v382, %v392
  %v400 = vadd.f32 %v383, %v392
  %v401 = vadd.f32 %v384, %v392
  %v402 = vadd.f32 %v385, %v392
  %v403 = vadd.f32 %v386, %v392
  %v404 = vadd.f32 %v387, %v392
  %v405 = vadd.f32 %v388, %v392
  %v406 = vadd.f32 %v389, %v392
  %v407 = vadd.f32 %v390, %v392
  %v408 = vadd.f32 %v391, %v392
  %v409 = vpack.c.bf16 %v393, %v393
  %v410 = vpack.c.bf16 %v394, %v394
  %v411 = vpack.c.bf16 %v395, %v395
  %v412 = vpack.c.bf16 %v396, %v396
  %v413 = vpack.c.bf16 %v397, %v397
  %v414 = vpack.c.bf16 %v398, %v398
  %v415 = vpack.c.bf16 %v399, %v399
  %v416 = vpack.c.bf16 %v400, %v400
  %v417 = vpack.c.bf16 %v401, %v401
  %v418 = vpack.c.bf16 %v402, %v402
  %v419 = vpack.c.bf16 %v403, %v403
  %v420 = vpack.c.bf16 %v404, %v404
  %v421 = vpack.c.bf16 %v405, %v405
  %v422 = vpack.c.bf16 %v406, %v406
  %v423 = vpack.c.bf16 %v407, %v407
  %v424 = vpack.c.bf16 %v408, %v408
  %425 = vst.msk [vmem:[%s4] sm:$0xf] %vm261, %v409
  %426 = vst.msk [vmem:[%s4 + $0x4] sm:$0xf] %vm261, %v410
  %427 = vst.msk [vmem:[%s4 + $0x8] sm:$0xf] %vm261, %v411
  %428 = vst.msk [vmem:[%s4 + $0xc] sm:$0xf] %vm261, %v412
  %429 = vst.msk [vmem:[%s4 + $0x10] sm:$0xf] %vm261, %v413
  %430 = vst.msk [vmem:[%s4 + $0x14] sm:$0xf] %vm261, %v414
  %431 = vst.msk [vmem:[%s4 + $0x18] sm:$0xf] %vm261, %v415
  %432 = vst.msk [vmem:[%s4 + $0x1c] sm:$0xf] %vm261, %v416
  %433 = vst.msk [vmem:[%s4 + $0x20] sm:$0xf] %vm261, %v417
  %434 = vst.msk [vmem:[%s4 + $0x24] sm:$0xf] %vm261, %v418
  %435 = vst.msk [vmem:[%s4 + $0x28] sm:$0xf] %vm261, %v419
  %436 = vst.msk [vmem:[%s4 + $0x2c] sm:$0xf] %vm261, %v420
  %437 = vst.msk [vmem:[%s4 + $0x30] sm:$0xf] %vm261, %v421
  %438 = vst.msk [vmem:[%s4 + $0x34] sm:$0xf] %vm261, %v422
  %439 = vst.msk [vmem:[%s4 + $0x38] sm:$0xf] %vm261, %v423
  %440 = vst.msk [vmem:[%s4 + $0x3c] sm:$0xf] %vm261, %v424
  // Predicated region
  $region14: #{melnet_tier_forward.12} parent=0 // pred_check
    _
  $region15: #{melnet_tier_forward.12} parent=0 // pred_check_branch
    %442 = sbr.rel (0) target = $region17
  $region16: #{melnet_tier_forward.12} parent=0 // pred_region
    _
  $region17: #{melnet_tier_forward.12} parent=0 // pred_fallthru
    _
  // Predicated region
  $region18: #{melnet_tier_forward.12} parent=0 // pred_check
    _
  $region19: #{melnet_tier_forward.12} parent=0 // pred_check_branch
    %444 = sbr.rel (0) target = $region21
  $region20: #{melnet_tier_forward.12} parent=0 // pred_region
    _
  $region21: #{melnet_tier_forward.12} parent=0 // pred_fallthru
    _
  // Predicated region
  $region22: #{melnet_tier_forward.12} parent=0 // pred_check
    _
  $region23: #{melnet_tier_forward.12} parent=0 // pred_check_branch
    %446 = sbr.rel (0) target = $region25
  $region24: #{melnet_tier_forward.12} parent=0 // pred_region
    _
  $region25: #{melnet_tier_forward.12} parent=0 // pred_fallthru
    _
  // Predicated region
  $region26: #{melnet_tier_forward.12} parent=0 // pred_check
    _
  $region27: #{melnet_tier_forward.12} parent=0 // pred_check_branch
    %448 = sbr.rel (0) target = $region29
  $region28: #{melnet_tier_forward.12} parent=0 // pred_region
    _
  $region29: #{melnet_tier_forward.12} parent=0 // pred_fallthru
    _

// kernel: melnet_tier_forward.13
$region0: #{melnet_tier_forward.13}
  #allocation0 [shape = 'u32[]', space=smem, size = 0x4, offset = 0x4, fixed_abs, tag = 'smem constant byte address 0x4 - core index']
  #allocation1 [shape = 'u32[72,128]{1,0:T(1,128)}', space=vmem, size = 0x9000, scoped, tag = 'internal scratch']
  #allocation2 [shape = 'bf16[1,8,8,96]{3,2,1,0:T(8,128)(2,1)}', space=vmem, size = 0x4000, scoped, tag = 'scratch operand']
  #allocation3 [shape = 'bf16[1,8,32]{2,1,0:T(8,128)(2,1)}', space=vmem, size = 0x800, scoped, tag = 'scratch operand']
  %s0 = inlined_call_operand.vmem [shape: bf16[2,8,8,32], index: 0, kind: input, shape index: {}]
  %s1 = inlined_call_operand.vmem [shape: bf16[1,32,96], index: 1, kind: input, shape index: {}]
  %s2 = inlined_call_operand.vmem [shape: bf16[1,32,96], index: 2, kind: input, shape index: {}]
  %s3 = inlined_call_operand.vmem [shape: f32[1,1,96], index: 3, kind: input, shape index: {}]
  %s4 = inlined_call_operand.vmem [shape: f32[1,1,32], index: 4, kind: input, shape index: {}]
  %s5 = inlined_call_operand.vmem [shape: bf16[2,8,8,32], index: 5, kind: output, shape index: {}]
  %s6 = sld [smem:[#allocation0]]
  $region60: #{melnet_tier_forward.13} parent=0
    _
  %s8 = ssub.s32 1, %s6
  %s9 = scalar_select 0, %s8, %s6
  loop: start=0, step=1, limit=4
  $region2: #{melnet_tier_forward.13} parent=0 // loop_pre_header
    _
  $region3: #{melnet_tier_forward.13} parent=0 // loop_header
    %s11 = sphi 0, %s15
    %p12 = scmp.ge.s32.totalorder %s11, 4
    %s18 = sphi 0, %s30
    %s19 = sphi 0, %s26
    %s20 = sphi 0, %s18
    %s21 = sphi 0, %s19
    %s22 = sphi 0, %s20
    %s23 = sphi 0, %s21
    %s35 = sphi 0, %s37
    %s38 = sphi 0, %s35
    %s39 = sphi 0, %s38
    %s55 = sphi 0, %s39
    %s59 = sphi 0, %s59
    %s61 = sphi 0, %s59
    %s62 = sphi 0, %s61
    %s76 = sphi 0, %s62
    %s80 = sphi 0, %s80
    %s82 = sphi 0, %s80
    %s83 = sphi 0, %s82
    %s97 = sphi 0, %s83
    %s101 = sphi 0, %s101
    %s103 = sphi 0, %s101
    %s104 = sphi 0, %s103
    %s118 = sphi 0, %s104
    %s122 = sphi 0, %s122
    %s124 = sphi 0, %s122
    %s125 = sphi 0, %s124
    %s139 = sphi 0, %s125
    %s147 = sphi 0, %s149
    %s150 = sphi 0, %s147
    %s151 = sphi 0, %s150
    %s167 = sphi 0, %s151
  $region4: #{melnet_tier_forward.13} parent=0 // loop_header_branch
    %14 = sbr.rel (%p12) target = $region8
  $region5: #{melnet_tier_forward.13} parent=0 // loop_body
    %s16 = ssub.s32 %s11, 1
    %s17 = ssub.s32 %s11, 2
    %s24 = sadd.s32 1, %s19
    %p25 = scmp.ge.s32.totalorder %s24, 1
    %s26 = scalar_select %p25, 0, %s24
    %s27 = sadd.s32 1, %s18
    %s28 = scalar_select %p25, %s27, %s18
    %p29 = scmp.ge.s32.totalorder %s28, 2
    %s30 = scalar_select %p29, 0, %s28
    %s31 = ssub.s32 %s18, %s30
    %s32 = ssub.s32 %s19, %s26
    %s33 = sor.u32 %s31, %s32
    %p34 = scmp.eq.s32.totalorder %s33, 0
    %s36 = sadd.s32 %s35, 1
    %s37 = scalar_select %p34, %s35, %s36
    %p40 = pneg %p34
    %p41 = scmp.eq.s32.totalorder %s11, 1
    %p42 = por %p40, %p41
    %p43 = scmp.ne.s32.totalorder %s35, %s38
    %p44 = scmp.eq.s32.totalorder %s11, 0
    %p45 = por %p43, %p44
    %p46 = scmp.ne.s32.totalorder %s35, %s38
    %p47 = scmp.eq.s32.totalorder %s16, 1
    %p48 = por %p46, %p47
    %p49 = scmp.ne.s32.totalorder %s38, %s39
    %p50 = scmp.eq.s32.totalorder %s16, 0
    %p51 = por %p49, %p50
    %p52 = scmp.ne.s32.totalorder %s38, %s39
    %p53 = scmp.eq.s32.totalorder %s17, 1
    %p54 = por %p52, %p53
    %p56 = scmp.ne.s32.totalorder %s39, %s55
    %p57 = scmp.eq.s32.totalorder %s17, 0
    %p58 = por %p56, %p57
    %s60 = sadd.s32 %s59, 1
    %p63 = scmp.eq.s32.totalorder %s11, 1
    %p64 = scmp.ne.s32.totalorder %s59, %s61
    %p65 = scmp.eq.s32.totalorder %s11, 0
    %p66 = por %p64, %p65
    %p67 = scmp.ne.s32.totalorder %s59, %s61
    %p68 = scmp.eq.s32.totalorder %s16, 1
    %p69 = por %p67, %p68
    %p70 = scmp.ne.s32.totalorder %s61, %s62
    %p71 = scmp.eq.s32.totalorder %s16, 0
    %p72 = por %p70, %p71
    %p73 = scmp.ne.s32.totalorder %s61, %s62
    %p74 = scmp.eq.s32.totalorder %s17, 1
    %p75 = por %p73, %p74
    %p77 = scmp.ne.s32.totalorder %s62, %s76
    %p78 = scmp.eq.s32.totalorder %s17, 0
    %p79 = por %p77, %p78
    %s81 = sadd.s32 %s80, 1
    %p84 = scmp.eq.s32.totalorder %s11, 1
    %p85 = scmp.ne.s32.totalorder %s80, %s82
    %p86 = scmp.eq.s32.totalorder %s11, 0
    %p87 = por %p85, %p86
    %p88 = scmp.ne.s32.totalorder %s80, %s82
    %p89 = scmp.eq.s32.totalorder %s16, 1
    %p90 = por %p88, %p89
    %p91 = scmp.ne.s32.totalorder %s82, %s83
    %p92 = scmp.eq.s32.totalorder %s16, 0
    %p93 = por %p91, %p92
    %p94 = scmp.ne.s32.totalorder %s82, %s83
    %p95 = scmp.eq.s32.totalorder %s17, 1
    %p96 = por %p94, %p95
    %p98 = scmp.ne.s32.totalorder %s83, %s97
    %p99 = scmp.eq.s32.totalorder %s17, 0
    %p100 = por %p98, %p99
    %s102 = sadd.s32 %s101, 1
    %p105 = scmp.eq.s32.totalorder %s11, 1
    %p106 = scmp.ne.s32.totalorder %s101, %s103
    %p107 = scmp.eq.s32.totalorder %s11, 0
    %p108 = por %p106, %p107
    %p109 = scmp.ne.s32.totalorder %s101, %s103
    %p110 = scmp.eq.s32.totalorder %s16, 1
    %p111 = por %p109, %p110
    %p112 = scmp.ne.s32.totalorder %s103, %s104
    %p113 = scmp.eq.s32.totalorder %s16, 0
    %p114 = por %p112, %p113
    %p115 = scmp.ne.s32.totalorder %s103, %s104
    %p116 = scmp.eq.s32.totalorder %s17, 1
    %p117 = por %p115, %p116
    %p119 = scmp.ne.s32.totalorder %s104, %s118
    %p120 = scmp.eq.s32.totalorder %s17, 0
    %p121 = por %p119, %p120
    %s123 = sadd.s32 %s122, 1
    %p126 = scmp.eq.s32.totalorder %s11, 1
    %p127 = scmp.ne.s32.totalorder %s122, %s124
    %p128 = scmp.eq.s32.totalorder %s11, 0
    %p129 = por %p127, %p128
    %p130 = scmp.ne.s32.totalorder %s122, %s124
    %p131 = scmp.eq.s32.totalorder %s16, 1
    %p132 = por %p130, %p131
    %p133 = scmp.ne.s32.totalorder %s124, %s125
    %p134 = scmp.eq.s32.totalorder %s16, 0
    %p135 = por %p133, %p134
    %p136 = scmp.ne.s32.totalorder %s124, %s125
    %p137 = scmp.eq.s32.totalorder %s17, 1
    %p138 = por %p136, %p137
    %p140 = scmp.ne.s32.totalorder %s125, %s139
    %p141 = scmp.eq.s32.totalorder %s17, 0
    %p142 = por %p140, %p141
    %s143 = ssub.s32 %s18, %s30
    %s144 = ssub.s32 %s19, %s26
    %s145 = sor.u32 %s143, %s144
    %p146 = scmp.eq.s32.totalorder %s145, 0
    %s148 = sadd.s32 %s147, 1
    %s149 = scalar_select %p146, %s147, %s148
    %p152 = pneg %p146
    %p153 = scmp.eq.s32.totalorder %s11, 1
    %p154 = por %p152, %p153
    %p155 = scmp.ne.s32.totalorder %s147, %s150
    %p156 = scmp.eq.s32.totalorder %s11, 0
    %p157 = por %p155, %p156
    %p158 = scmp.ne.s32.totalorder %s147, %s150
    %p159 = scmp.eq.s32.totalorder %s16, 1
    %p160 = por %p158, %p159
    %p161 = scmp.ne.s32.totalorder %s150, %s151
    %p162 = scmp.eq.s32.totalorder %s16, 0
    %p163 = por %p161, %p162
    %p164 = scmp.ne.s32.totalorder %s150, %s151
    %p165 = scmp.eq.s32.totalorder %s17, 1
    %p166 = por %p164, %p165
    %p168 = scmp.ne.s32.totalorder %s151, %s167
    %p169 = scmp.eq.s32.totalorder %s17, 0
    %p170 = por %p168, %p169
    %p171 = scmp.le.s32.totalorder 1, %s11
    %p172 = scmp.lt.s32.totalorder %s11, 3
    %p173 = pnand %p171, %p172
    %p174 = pneg %p173
    // Predicated region
    $region9: #{melnet_tier_forward.13} parent=5 // pred_check
      _
    $region10: #{melnet_tier_forward.13} parent=5 // pred_check_branch
      %176 = sbr.rel (%p173) target = $region12
    $region11: #{melnet_tier_forward.13} parent=5 // pred_region
      %s177 = ssub.s32 %s11, 1
      // Predicated region
      $region13: #{melnet_tier_forward.13} parent=11 // pred_check
        %p178 = pneg %p72
      $region14: #{melnet_tier_forward.13} parent=11 // pred_check_branch
        %180 = sbr.rel (%p178) target = $region16
      $region15: #{melnet_tier_forward.13} parent=11 // pred_region
        _
      $region16: #{melnet_tier_forward.13} parent=11 // pred_fallthru
        _
      // Predicated region
      $region17: #{melnet_tier_forward.13} parent=11 // pred_check
        %p181 = pneg %p93
      $region18: #{melnet_tier_forward.13} parent=11 // pred_check_branch
        %183 = sbr.rel (%p181) target = $region20
      $region19: #{melnet_tier_forward.13} parent=11 // pred_region
        _
      $region20: #{melnet_tier_forward.13} parent=11 // pred_fallthru
        _
      // Predicated region
      $region21: #{melnet_tier_forward.13} parent=11 // pred_check
        %p184 = pneg %p114
      $region22: #{melnet_tier_forward.13} parent=11 // pred_check_branch
        %186 = sbr.rel (%p184) target = $region24
      $region23: #{melnet_tier_forward.13} parent=11 // pred_region
        _
      $region24: #{melnet_tier_forward.13} parent=11 // pred_fallthru
        _
      // Predicated region
      $region25: #{melnet_tier_forward.13} parent=11 // pred_check
        %p187 = pneg %p135
      $region26: #{melnet_tier_forward.13} parent=11 // pred_check_branch
        %189 = sbr.rel (%p187) target = $region28
      $region27: #{melnet_tier_forward.13} parent=11 // pred_region
        _
      $region28: #{melnet_tier_forward.13} parent=11 // pred_fallthru
        _
    $region12: #{melnet_tier_forward.13} parent=5 // pred_fallthru
      _
    %p190 = scmp.lt.s32.totalorder %s11, 2
    // Predicated region
    $region29: #{melnet_tier_forward.13} parent=5 // pred_check
      %p191 = pneg %p190
    $region30: #{melnet_tier_forward.13} parent=5 // pred_check_branch
      %193 = sbr.rel (%p191) target = $region32
    $region31: #{melnet_tier_forward.13} parent=5 // pred_region
      // Predicated region
      $region33: #{melnet_tier_forward.13} parent=31 // pred_check
        %p194 = pneg %p45
      $region34: #{melnet_tier_forward.13} parent=31 // pred_check_branch
        %196 = sbr.rel (%p194) target = $region36
      $region35: #{melnet_tier_forward.13} parent=31 // pred_region
        %p197 = scmp.lt.s32.totalorder %s18, 1
        %s198 = scalar_select %p197, %s18, 1
        %p199 = scmp.lt.s32.totalorder %s19, 0
        %s200 = scalar_select %p199, %s19, 0
        %s201 = smul.addr %s198, 8
        %s202 = sadd.s32 %s200, %s201
        %s203 = smul.addr %s202, 4
        %s204 = scalar_lea.vmem %s0, %s203
      $region36: #{melnet_tier_forward.13} parent=31 // pred_fallthru
        _
    $region32: #{melnet_tier_forward.13} parent=5 // pred_fallthru
      _
    %p205 = scmp.le.s32.totalorder 1, %s11
    %p206 = scmp.lt.s32.totalorder %s11, 3
    %p207 = pnand %p205, %p206
    %p208 = pneg %p207
    // Predicated region
    $region37: #{melnet_tier_forward.13} parent=5 // pred_check
      _
    $region38: #{melnet_tier_forward.13} parent=5 // pred_check_branch
      %210 = sbr.rel (%p207) target = $region40
    $region39: #{melnet_tier_forward.13} parent=5 // pred_region
      %s211 = ssub.s32 %s11, 1
      %p212 = scmp.lt.s32.totalorder %s20, 1
      %s213 = scalar_select %p212, %s20, 1
      %p214 = scmp.lt.s32.totalorder %s21, 0
      %s215 = scalar_select %p214, %s21, 0
      %s216 = smul.addr %s213, 8
      %s217 = sadd.s32 %s215, %s216
      %s218 = smul.addr %s217, 4
      %s219 = scalar_lea.vmem %s0, %s218
      %p220 = pneg %p51
      %p221 = pneg %p48
      %p222 = pneg %p72
      %p223 = pneg %p69
      %p224 = pneg %p93
      %p225 = pneg %p90
      %p226 = pneg %p114
      %p227 = pneg %p111
      %p228 = pneg %p135
      %p229 = pneg %p132
      %p230 = pneg %p163
      %p231 = pneg %p160
      %p232 = scmp.lt.s32.totalorder %s20, 1
      %s233 = scalar_select %p232, %s20, 1
      %p234 = scmp.lt.s32.totalorder %s21, 0
      %s235 = scalar_select %p234, %s21, 0
      %s236 = smul.addr %s233, 8
      %s237 = sadd.s32 %s235, %s236
      %s238 = smul.addr %s237, 4
      %s239 = scalar_lea.vmem %s5, %s238
      %p240 = scmp.lt.s32.totalorder %s20, 1
      %s241 = scalar_select %p240, %s20, 1
      %p242 = scmp.lt.s32.totalorder %s21, 0
      %s243 = scalar_select %p242, %s21, 0
      %s244 = smul.addr %s241, 8
      %s245 = sadd.s32 %s243, %s244
      %s246 = smul.addr %s245, 4
      %s247 = scalar_lea.vmem %s0, %s246
      %p248 = scmp.lt.s32.totalorder %s20, 1
      %s249 = scalar_select %p248, %s20, 1
      %p250 = scmp.lt.s32.totalorder %s21, 0
      %s251 = scalar_select %p250, %s21, 0
      %s252 = smul.addr %s249, 8
      %s253 = sadd.s32 %s251, %s252
      %s254 = smul.addr %s253, 4
      %s255 = scalar_lea.vmem %s5, %s254
      %v257 = vld [vmem:[%s247] sm:$0xf]
      %v258 = vld [vmem:[%s247 + $0x4] sm:$0xf]
      %v259 = vld [vmem:[%s247 + $0x8] sm:$0xf]
      %v260 = vld [vmem:[%s247 + $0xc] sm:$0xf]
      %v261 = vld [vmem:[%s247 + $0x10] sm:$0xf]
      %v262 = vld [vmem:[%s247 + $0x14] sm:$0xf]
      %v263 = vld [vmem:[%s247 + $0x18] sm:$0xf]
      %v264 = vld [vmem:[%s247 + $0x1c] sm:$0xf]
      %v265 = vld [vmem:[%s1] sm:$0xf]
      %v266 = vld [vmem:[%s1 + $0x4] sm:$0xf]
      %v267 = vld [vmem:[%s1 + $0x8] sm:$0xf]
      %v268 = vld [vmem:[%s1 + $0xc] sm:$0xf]
      %v269 = vld [vmem:[%s3] sm:$0x1]
      %v271 = vperm.slane %v269, 0
      %v281 = vunpack.c.l.b16 %v257
      %v282 = vunpack.c.l.b16 %v258
      %v283 = vunpack.c.l.b16 %v259
      %v284 = vunpack.c.l.b16 %v260
      %v285 = vunpack.c.l.b16 %v261
      %v286 = vunpack.c.l.b16 %v262
      %v287 = vunpack.c.l.b16 %v263
      %v288 = vunpack.c.l.b16 %v264
      %v289 = vpack.c.b16 %v282, %v281
      %v290 = vpack.c.b16 %v284, %v283
      %v291 = vpack.c.b16 %v286, %v285
      %v292 = vpack.c.b16 %v288, %v287
      %v297 = vunpack.c.l.b16 %v265
      %v298 = vunpack.c.l.b16 %v266
      %v299 = vunpack.c.l.b16 %v267
      %v300 = vunpack.c.l.b16 %v268
      %v301 = vpack.c.b16 %v298, %v297
      %v302 = vpack.c.b16 %v300, %v299
      %vm305 = vcmask 261120
      %v307 = vsel %vm305, %v289, 0
      %v310 = vsel %vm305, %v290, 0
      %v313 = vsel %vm305, %v291, 0
      %v316 = vsel %vm305, %v292, 0
      %318 = vmatpush.bf16.msra.mxu0 0
      %319 = vmatpush.bf16.msra.mxu0 0
      %320 = vmatpush.bf16.msra.mxu0 0
      %321 = vmatpush.bf16.msra.mxu0 0
      %322 = vmatpush.bf16.msra.mxu0 0
      %323 = vmatpush.bf16.msra.mxu0 0
      %324 = vmatpush.bf16.msra.mxu0 %v302
      %325 = vmatpush.bf16.msra.mxu0 %v301
      %326 = vmatmul.bf16.gmra.mxu0 %v307
      %v327 = vpop.f32.mrf.mxu0
      %v328 = vadd.f32 %v271, %v327
      %v329 = vpop.f32.mrf.mxu0
      %v330 = vadd.f32 %v271, %v329
      %331 = vmatmul.bf16.gmra.mxu0 %v310
      %v332 = vpop.f32.mrf.mxu0
      %v333 = vadd.f32 %v271, %v332
      %v334 = vpop.f32.mrf.mxu0
      %v335 = vadd.f32 %v271, %v334
      %336 = vmatmul.bf16.gmra.mxu0 %v313
      %v337 = vpop.f32.mrf.mxu0
      %v338 = vadd.f32 %v271, %v337
      %v339 = vpop.f32.mrf.mxu0
      %v340 = vadd.f32 %v271, %v339
      %341 = vmatmul.bf16.gmra.mxu0 %v316
      %v342 = vpop.f32.mrf.mxu0
      %v343 = vadd.f32 %v271, %v342
      %v344 = vpop.f32.mrf.mxu0
      %v345 = vadd.f32 %v271, %v344
      %346 = vdwg.mxu0
      %v347 = vpack.c.bf16 %v328, %v328
      %v348 = vpack.c.bf16 %v330, %v330
      %v349 = vpack.c.bf16 %v333, %v333
      %v350 = vpack.c.bf16 %v335, %v335
      %v351 = vpack.c.bf16 %v338, %v338
      %v352 = vpack.c.bf16 %v340, %v340
      %v353 = vpack.c.bf16 %v343, %v343
      %v354 = vpack.c.bf16 %v345, %v345
      %vm355 = vcmask 781312
      %356 = vst.msk [vmem:[#allocation2] sm:$0xf] %vm355, %v347
      %357 = vst.msk [vmem:[#allocation2 + $0x4] sm:$0xf] %vm355, %v348
      %358 = vst.msk [vmem:[#allocation2 + $0x8] sm:$0xf] %vm355, %v349
      %359 = vst.msk [vmem:[#allocation2 + $0xc] sm:$0xf] %vm355, %v350
      %360 = vst.msk [vmem:[#allocation2 + $0x10] sm:$0xf] %vm355, %v351
      %361 = vst.msk [vmem:[#allocation2 + $0x14] sm:$0xf] %vm355, %v352
      %362 = vst.msk [vmem:[#allocation2 + $0x18] sm:$0xf] %vm355, %v353
      %363 = vst.msk [vmem:[#allocation2 + $0x1c] sm:$0xf] %vm355, %v354
      %vm364 = vcmask 257024
      %365 = vst.msk [vmem:[#allocation3] sm:$0xf] %vm364, 0
      loop: start=0, step=1, limit=8
      $region41: #{melnet_tier_forward.13} parent=39 // loop_pre_header
        _
      $region42: #{melnet_tier_forward.13} parent=39 // loop_header
        %s367 = sphi 0, %s371
        %p368 = scmp.ge.s32.totalorder %s367, 8
      $region43: #{melnet_tier_forward.13} parent=39 // loop_header_branch
        %370 = sbr.rel (%p368) target = $region47
      $region44: #{melnet_tier_forward.13} parent=39 // loop_body
        %v372 = vld [vmem:[#allocation3] sm:$0xf]
        %v373 = vld [vmem:[%s2] sm:$0xf]
        %v374 = vld [vmem:[%s2 + $0x4] sm:$0xf]
        %v375 = vld [vmem:[%s2 + $0x8] sm:$0xf]
        %v376 = vld [vmem:[%s2 + $0xc] sm:$0xf]
        %v381 = vunpack.c.l.b16 %v373
        %v382 = vunpack.c.l.b16 %v374
        %v383 = vunpack.c.l.b16 %v375
        %v384 = vunpack.c.l.b16 %v376
        %v385 = vpack.c.b16 %v382, %v381
        %v386 = vpack.c.b16 %v384, %v383
        %v390 = vsel %vm305, %v372, 0
        %392 = vmatpush.bf16.msra.mxu0 0
        %393 = vmatpush.bf16.msra.mxu0 0
        %394 = vmatpush.bf16.msra.mxu0 0
        %395 = vmatpush.bf16.msra.mxu0 0
        %396 = vmatpush.bf16.msra.mxu0 0
        %397 = vmatpush.bf16.msra.mxu0 0
        %398 = vmatpush.bf16.msra.mxu0 %v386
        %399 = vmatpush.bf16.msra.mxu0 %v385
        %400 = vmatmul.bf16.gmra.mxu0 %v390
        %v401 = vpop.f32.mrf.mxu0
        %v402 = vadd.f32 0.0, %v401
        %v403 = vpop.f32.mrf.mxu0
        %404 = vdwg.mxu0
        %s405 = smul.addr %s367, 4
        %s406 = scalar_lea.vmem [#allocation2], %s405
        %v407 = vld [vmem:[%s406] sm:$0xf]
        %v408 = vunpack.c.l.bf16 %v407
        %v409 = vadd.f32 %v408, %v402
        %v410 = vxor.u32 %v409, 2147483648
        %v411 = vmul.f32 %v410, 1.442695
        %v412 = vpow.pop %v411
        %v413 = vadd.f32 %v412, 1.0
        %v414 = vrcp.pop %v413
        %v415 = vmul.f32 %v413, %v414
        %v416 = vsub.f32 1.0, %v415
        %v417 = vmul.f32 %v414, %v416
        %v418 = vadd.f32 %v414, %v417
        %vm419 = vweird.f32 %v413
        %vm420 = vweird.f32 %v414
        %vm421 = vmor %vm419, %vm420
        %v422 = vsel %vm421, %v414, %v418
        %v423 = vand.u32 2147483647, %v413
        %vm424 = vcmp.eq.f32.partialorder %v423, 8.507059e+37
        %v425 = vand.u32 %v413, 2147483648
        %v426 = vor.u32 1.1754944e-38, %v425
        %v427 = vsel %vm424, %v426, %v422
        %v428 = vmul.f32 1.0, %v427
        %v429 = vld [vmem:[%s4] sm:$0x1]
        %v431 = vperm.slane %v429, 0
        %432 = vrot.lane.b32.xlu0 %v431, 64
        %v433 = vpop.permute.xlu0 %432
        %v435 = vadd.f32 %v402, %v433
        %437 = vrot.lane.b32.xlu0 %v435, 64
        %v438 = vpop.permute.xlu0 %437
        %v440 = vmul.f32 %v428, %v438
        %442 = vrot.lane.b32.xlu0 %v440, 64
        %v443 = vpop.permute.xlu0 %442
        %v445 = vadd.f32 %v408, %v443
        %v446 = vtanh.pop %v445
        %v447 = vsub.f32 1.0, %v428
        %449 = vrot.lane.b32.xlu0 %v446, 96
        %v450 = vpop.permute.xlu0 %449
        %v452 = vmul.f32 %v447, %v450
        %v453 = vunpack.c.l.bf16 %v372
        %455 = vrot.lane.b32.xlu0 %v453, 32
        %v456 = vpop.permute.xlu0 %455
        %v458 = vmul.f32 %v428, %v456
        %v459 = vadd.f32 %v452, %v458
        %v460 = vpack.c.bf16 %v459, %v459
        %462 = vrot.lane.b32.xlu0 %v460, 96
        %v463 = vpop.permute.xlu0 %462
        %465 = vst.msk [vmem:[#allocation3] sm:$0xf] %vm364, %v463
        %s466 = smul.addr %s367, 4
        %s467 = scalar_lea.vmem %s255, %s466
        %468 = vst.msk [vmem:[%s467] sm:$0xf] %vm364, %v463
      $region45: #{melnet_tier_forward.13} parent=39 // loop_footer
        %s371 = sadd.s32 1, %s367
      $region46: #{melnet_tier_forward.13} parent=39 // loop_footer_branch
        %366 = sbr.rel target = $region42
      $region47: #{melnet_tier_forward.13} parent=39 // loop_exit
        _
      %p469 = scmp.lt.s32.totalorder %s20, 1
      %s470 = scalar_select %p469, %s20, 1
      %p471 = scmp.lt.s32.totalorder %s21, 0
      %s472 = scalar_select %p471, %s21, 0
      %s473 = smul.addr %s470, 8
      %s474 = sadd.s32 %s472, %s473
      %s475 = smul.addr %s474, 4
      %s476 = scalar_lea.vmem %s5, %s475
      // Predicated region
      $region48: #{melnet_tier_forward.13} parent=39 // pred_check
        %p477 = pneg %p160
      $region49: #{melnet_tier_forward.13} parent=39 // pred_check_branch
        %479 = sbr.rel (%p477) target = $region51
      $region50: #{melnet_tier_forward.13} parent=39 // pred_region
        _
      $region51: #{melnet_tier_forward.13} parent=39 // pred_fallthru
        _
    $region40: #{melnet_tier_forward.13} parent=5 // pred_fallthru
      _
    %p480 = scmp.le.s32.totalorder 2, %s11
    // Predicated region
    $region52: #{melnet_tier_forward.13} parent=5 // pred_check
      %p481 = pneg %p480
    $region53: #{melnet_tier_forward.13} parent=5 // pred_check_branch
      %483 = sbr.rel (%p481) target = $region55
    $region54: #{melnet_tier_forward.13} parent=5 // pred_region
      %s484 = ssub.s32 %s11, 2
      // Predicated region
      $region56: #{melnet_tier_forward.13} parent=54 // pred_check
        %p485 = pneg %p166
      $region57: #{melnet_tier_forward.13} parent=54 // pred_check_branch
        %487 = sbr.rel (%p485) target = $region59
      $region58: #{melnet_tier_forward.13} parent=54 // pred_region
        %p488 = scmp.lt.s32.totalorder %s22, 1
        %s489 = scalar_select %p488, %s22, 1
        %p490 = scmp.lt.s32.totalorder %s23, 0
        %s491 = scalar_select %p490, %s23, 0
        %s492 = smul.addr %s489, 8
        %s493 = sadd.s32 %s491, %s492
        %s494 = smul.addr %s493, 4
        %s495 = scalar_lea.vmem %s5, %s494
      $region59: #{melnet_tier_forward.13} parent=54 // pred_fallthru
        _
    $region55: #{melnet_tier_forward.13} parent=5 // pred_fallthru
      _
  $region6: #{melnet_tier_forward.13} parent=0 // loop_footer
    %s15 = sadd.s32 1, %s11
  $region7: #{melnet_tier_forward.13} parent=0 // loop_footer_branch
    %10 = sbr.rel target = $region3
  $region8: #{melnet_tier_forward.13} parent=0 // loop_exit
    _

// kernel: melnet_tier_forward.14
$region0: #{melnet_tier_forward.14}
  #allocation0 [shape = 'u32[]', space=smem, size = 0x4, offset = 0x4, fixed_abs, tag = 'smem constant byte address 0x4 - core index']
  #allocation1 [shape = 'u32[72,128]{1,0:T(1,128)}', space=vmem, size = 0x9000, scoped, tag = 'internal scratch']
  #allocation2 [shape = 'bf16[2,8,8,96]{3,2,1,0:T(8,128)(2,1)}', space=vmem, size = 0x8000, scoped, tag = 'scratch operand']
  #allocation3 [shape = 'bf16[2,8,32]{2,1,0:T(8,128)(2,1)}', space=vmem, size = 0x1000, scoped, tag = 'scratch operand']
  %s0 = inlined_call_operand.vmem [shape: bf16[2,8,8,32], index: 0, kind: input, shape index: {}]
  %s1 = inlined_call_operand.vmem [shape: bf16[2,32,96], index: 1, kind: input, shape index: {}]
  %s2 = inlined_call_operand.vmem [shape: bf16[2,32,96], index: 2, kind: input, shape index: {}]
  %s3 = inlined_call_operand.vmem [shape: f32[2,1,96], index: 3, kind: input, shape index: {}]
  %s4 = inlined_call_operand.vmem [shape: f32[2,1,32], index: 4, kind: input, shape index: {}]
  %s5 = inlined_call_operand.vmem [shape: bf16[2,8,8,32], index: 5, kind: output, shape index: {0}]
  %s6 = inlined_call_operand.vmem [shape: bf16[2,8,8,32], index: 6, kind: output, shape index: {1}]
  %7 = xla_tuple %s5, %s6
  %s8 = sld [smem:[#allocation0]]
  $region68: #{melnet_tier_forward.14} parent=0
    _
  %s10 = ssub.s32 1, %s8
  %s11 = scalar_select 0, %s10, %s8
  loop: start=0, step=1, limit=4
  $region2: #{melnet_tier_forward.14} parent=0 // loop_pre_header
    _
  $region3: #{melnet_tier_forward.14} parent=0 // loop_header
    %s13 = sphi 0, %s17
    %p14 = scmp.ge.s32.totalorder %s13, 4
    %s20 = sphi 0, %s32
    %s21 = sphi 0, %s28
    %s22 = sphi 0, %s20
    %s23 = sphi 0, %s21
    %s24 = sphi 0, %s22
    %s25 = sphi 0, %s23
    %s37 = sphi 0, %s39
    %s40 = sphi 0, %s37
    %s41 = sphi 0, %s40
    %s57 = sphi 0, %s41
    %s61 = sphi 0, %s61
    %s63 = sphi 0, %s61
    %s64 = sphi 0, %s63
    %s78 = sphi 0, %s64
    %s82 = sphi 0, %s82
    %s84 = sphi 0, %s82
    %s85 = sphi 0, %s84
    %s99 = sphi 0, %s85
    %s103 = sphi 0, %s103
    %s105 = sphi 0, %s103
    %s106 = sphi 0, %s105
    %s120 = sphi 0, %s106
    %s124 = sphi 0, %s124
    %s126 = sphi 0, %s124
    %s127 = sphi 0, %s126
    %s141 = sphi 0, %s127
    %s149 = sphi 0, %s151
    %s152 = sphi 0, %s149
    %s153 = sphi 0, %s152
    %s169 = sphi 0, %s153
    %s177 = sphi 0, %s179
    %s180 = sphi 0, %s177
    %s181 = sphi 0, %s180
    %s197 = sphi 0, %s181
  $region4: #{melnet_tier_forward.14} parent=0 // loop_header_branch
    %16 = sbr.rel (%p14) target = $region8
  $region5: #{melnet_tier_forward.14} parent=0 // loop_body
    %s18 = ssub.s32 %s13, 1
    %s19 = ssub.s32 %s13, 2
    %s26 = sadd.s32 1, %s21
    %p27 = scmp.ge.s32.totalorder %s26, 1
    %s28 = scalar_select %p27, 0, %s26
    %s29 = sadd.s32 1, %s20
    %s30 = scalar_select %p27, %s29, %s20
    %p31 = scmp.ge.s32.totalorder %s30, 2
    %s32 = scalar_select %p31, 0, %s30
    %s33 = ssub.s32 %s20, %s32
    %s34 = ssub.s32 %s21, %s28
    %s35 = sor.u32 %s33, %s34
    %p36 = scmp.eq.s32.totalorder %s35, 0
    %s38 = sadd.s32 %s37, 1
    %s39 = scalar_select %p36, %s37, %s38
    %p42 = pneg %p36
    %p43 = scmp.eq.s32.totalorder %s13, 1
    %p44 = por %p42, %p43
    %p45 = scmp.ne.s32.totalorder %s37, %s40
    %p46 = scmp.eq.s32.totalorder %s13, 0
    %p47 = por %p45, %p46
    %p48 = scmp.ne.s32.totalorder %s37, %s40
    %p49 = scmp.eq.s32.totalorder %s18, 1
    %p50 = por %p48, %p49
    %p51 = scmp.ne.s32.totalorder %s40, %s41
    %p52 = scmp.eq.s32.totalorder %s18, 0
    %p53 = por %p51, %p52
    %p54 = scmp.ne.s32.totalorder %s40, %s41
    %p55 = scmp.eq.s32.totalorder %s19, 1
    %p56 = por %p54, %p55
    %p58 = scmp.ne.s32.totalorder %s41, %s57
    %p59 = scmp.eq.s32.totalorder %s19, 0
    %p60 = por %p58, %p59
    %s62 = sadd.s32 %s61, 1
    %p65 = scmp.eq.s32.totalorder %s13, 1
    %p66 = scmp.ne.s32.totalorder %s61, %s63
    %p67 = scmp.eq.s32.totalorder %s13, 0
    %p68 = por %p66, %p67
    %p69 = scmp.ne.s32.totalorder %s61, %s63
    %p70 = scmp.eq.s32.totalorder %s18, 1
    %p71 = por %p69, %p70
    %p72 = scmp.ne.s32.totalorder %s63, %s64
    %p73 = scmp.eq.s32.totalorder %s18, 0
    %p74 = por %p72, %p73
    %p75 = scmp.ne.s32.totalorder %s63, %s64
    %p76 = scmp.eq.s32.totalorder %s19, 1
    %p77 = por %p75, %p76
    %p79 = scmp.ne.s32.totalorder %s64, %s78
    %p80 = scmp.eq.s32.totalorder %s19, 0
    %p81 = por %p79, %p80
    %s83 = sadd.s32 %s82, 1
    %p86 = scmp.eq.s32.totalorder %s13, 1
    %p87 = scmp.ne.s32.totalorder %s82, %s84
    %p88 = scmp.eq.s32.totalorder %s13, 0
    %p89 = por %p87, %p88
    %p90 = scmp.ne.s32.totalorder %s82, %s84
    %p91 = scmp.eq.s32.totalorder %s18, 1
    %p92 = por %p90, %p91
    %p93 = scmp.ne.s32.totalorder %s84, %s85
    %p94 = scmp.eq.s32.totalorder %s18, 0
    %p95 = por %p93, %p94
    %p96 = scmp.ne.s32.totalorder %s84, %s85
    %p97 = scmp.eq.s32.totalorder %s19, 1
    %p98 = por %p96, %p97
    %p100 = scmp.ne.s32.totalorder %s85, %s99
    %p101 = scmp.eq.s32.totalorder %s19, 0
    %p102 = por %p100, %p101
    %s104 = sadd.s32 %s103, 1
    %p107 = scmp.eq.s32.totalorder %s13, 1
    %p108 = scmp.ne.s32.totalorder %s103, %s105
    %p109 = scmp.eq.s32.totalorder %s13, 0
    %p110 = por %p108, %p109
    %p111 = scmp.ne.s32.totalorder %s103, %s105
    %p112 = scmp.eq.s32.totalorder %s18, 1
    %p113 = por %p111, %p112
    %p114 = scmp.ne.s32.totalorder %s105, %s106
    %p115 = scmp.eq.s32.totalorder %s18, 0
    %p116 = por %p114, %p115
    %p117 = scmp.ne.s32.totalorder %s105, %s106
    %p118 = scmp.eq.s32.totalorder %s19, 1
    %p119 = por %p117, %p118
    %p121 = scmp.ne.s32.totalorder %s106, %s120
    %p122 = scmp.eq.s32.totalorder %s19, 0
    %p123 = por %p121, %p122
    %s125 = sadd.s32 %s124, 1
    %p128 = scmp.eq.s32.totalorder %s13, 1
    %p129 = scmp.ne.s32.totalorder %s124, %s126
    %p130 = scmp.eq.s32.totalorder %s13, 0
    %p131 = por %p129, %p130
    %p132 = scmp.ne.s32.totalorder %s124, %s126
    %p133 = scmp.eq.s32.totalorder %s18, 1
    %p134 = por %p132, %p133
    %p135 = scmp.ne.s32.totalorder %s126, %s127
    %p136 = scmp.eq.s32.totalorder %s18, 0
    %p137 = por %p135, %p136
    %p138 = scmp.ne.s32.totalorder %s126, %s127
    %p139 = scmp.eq.s32.totalorder %s19, 1
    %p140 = por %p138, %p139
    %p142 = scmp.ne.s32.totalorder %s127, %s141
    %p143 = scmp.eq.s32.totalorder %s19, 0
    %p144 = por %p142, %p143
    %s145 = ssub.s32 %s20, %s32
    %s146 = ssub.s32 %s21, %s28
    %s147 = sor.u32 %s145, %s146
    %p148 = scmp.eq.s32.totalorder %s147, 0
    %s150 = sadd.s32 %s149, 1
    %s151 = scalar_select %p148, %s149, %s150
    %p154 = pneg %p148
    %p155 = scmp.eq.s32.totalorder %s13, 1
    %p156 = por %p154, %p155
    %p157 = scmp.ne.s32.totalorder %s149, %s152
    %p158 = scmp.eq.s32.totalorder %s13, 0
    %p159 = por %p157, %p158
    %p160 = scmp.ne.s32.totalorder %s149, %s152
    %p161 = scmp.eq.s32.totalorder %s18, 1
    %p162 = por %p160, %p161
    %p163 = scmp.ne.s32.totalorder %s152, %s153
    %p164 = scmp.eq.s32.totalorder %s18, 0
    %p165 = por %p163, %p164
    %p166 = scmp.ne.s32.totalorder %s152, %s153
    %p167 = scmp.eq.s32.totalorder %s19, 1
    %p168 = por %p166, %p167
    %p170 = scmp.ne.s32.totalorder %s153, %s169
    %p171 = scmp.eq.s32.totalorder %s19, 0
    %p172 = por %p170, %p171
    %s173 = ssub.s32 %s20, %s32
    %s174 = ssub.s32 %s21, %s28
    %s175 = sor.u32 %s173, %s174
    %p176 = scmp.eq.s32.totalorder %s175, 0
    %s178 = sadd.s32 %s177, 1
    %s179 = scalar_select %p176, %s177, %s178
    %p182 = pneg %p176
    %p183 = scmp.eq.s32.totalorder %s13, 1
    %p184 = por %p182, %p183
    %p185 = scmp.ne.s32.totalorder %s177, %s180
    %p186 = scmp.eq.s32.totalorder %s13, 0
    %p187 = por %p185, %p186
    %p188 = scmp.ne.s32.totalorder %s177, %s180
    %p189 = scmp.eq.s32.totalorder %s18, 1
    %p190 = por %p188, %p189
    %p191 = scmp.ne.s32.totalorder %s180, %s181
    %p192 = scmp.eq.s32.totalorder %s18, 0
    %p193 = por %p191, %p192
    %p194 = scmp.ne.s32.totalorder %s180, %s181
    %p195 = scmp.eq.s32.totalorder %s19, 1
    %p196 = por %p194, %p195
    %p198 = scmp.ne.s32.totalorder %s181, %s197
    %p199 = scmp.eq.s32.totalorder %s19, 0
    %p200 = por %p198, %p199
    %p201 = scmp.le.s32.totalorder 1, %s13
    %p202 = scmp.lt.s32.totalorder %s13, 3
    %p203 = pnand %p201, %p202
    %p204 = pneg %p203
    // Predicated region
    $region9: #{melnet_tier_forward.14} parent=5 // pred_check
      _
    $region10: #{melnet_tier_forward.14} parent=5 // pred_check_branch
      %206 = sbr.rel (%p203) target = $region12
    $region11: #{melnet_tier_forward.14} parent=5 // pred_region
      %s207 = ssub.s32 %s13, 1
      // Predicated region
      $region13: #{melnet_tier_forward.14} parent=11 // pred_check
        %p208 = pneg %p74
      $region14: #{melnet_tier_forward.14} parent=11 // pred_check_branch
        %210 = sbr.rel (%p208) target = $region16
      $region15: #{melnet_tier_forward.14} parent=11 // pred_region
        _
      $region16: #{melnet_tier_forward.14} parent=11 // pred_fallthru
        _
      // Predicated region
      $region17: #{melnet_tier_forward.14} parent=11 // pred_check
        %p211 = pneg %p95
      $region18: #{melnet_tier_forward.14} parent=11 // pred_check_branch
        %213 = sbr.rel (%p211) target = $region20
      $region19: #{melnet_tier_forward.14} parent=11 // pred_region
        _
      $region20: #{melnet_tier_forward.14} parent=11 // pred_fallthru
        _
      // Predicated region
      $region21: #{melnet_tier_forward.14} parent=11 // pred_check
        %p214 = pneg %p116
      $region22: #{melnet_tier_forward.14} parent=11 // pred_check_branch
        %216 = sbr.rel (%p214) target = $region24
      $region23: #{melnet_tier_forward.14} parent=11 // pred_region
        _
      $region24: #{melnet_tier_forward.14} parent=11 // pred_fallthru
        _
      // Predicated region
      $region25: #{melnet_tier_forward.14} parent=11 // pred_check
        %p217 = pneg %p137
      $region26: #{melnet_tier_forward.14} parent=11 // pred_check_branch
        %219 = sbr.rel (%p217) target = $region28
      $region27: #{melnet_tier_forward.14} parent=11 // pred_region
        _
      $region28: #{melnet_tier_forward.14} parent=11 // pred_fallthru
        _
    $region12: #{melnet_tier_forward.14} parent=5 // pred_fallthru
      _
    %p220 = scmp.lt.s32.totalorder %s13, 2
    // Predicated region
    $region29: #{melnet_tier_forward.14} parent=5 // pred_check
      %p221 = pneg %p220
    $region30: #{melnet_tier_forward.14} parent=5 // pred_check_branch
      %223 = sbr.rel (%p221) target = $region32
    $region31: #{melnet_tier_forward.14} parent=5 // pred_region
      // Predicated region
      $region33: #{melnet_tier_forward.14} parent=31 // pred_check
        %p224 = pneg %p47
      $region34: #{melnet_tier_forward.14} parent=31 // pred_check_branch
        %226 = sbr.rel (%p224) target = $region36
      $region35: #{melnet_tier_forward.14} parent=31 // pred_region
        %p227 = scmp.lt.s32.totalorder %s20, 1
        %s228 = scalar_select %p227, %s20, 1
        %p229 = scmp.lt.s32.totalorder %s21, 0
        %s230 = scalar_select %p229, %s21, 0
        %s231 = smul.addr %s228, 8
        %s232 = sadd.s32 %s230, %s231
        %s233 = smul.addr %s232, 4
        %s234 = scalar_lea.vmem %s0, %s233
      $region36: #{melnet_tier_forward.14} parent=31 // pred_fallthru
        _
    $region32: #{melnet_tier_forward.14} parent=5 // pred_fallthru
      _
    %p235 = scmp.le.s32.totalorder 1, %s13
    %p236 = scmp.lt.s32.totalorder %s13, 3
    %p237 = pnand %p235, %p236
    %p238 = pneg %p237
    // Predicated region
    $region37: #{melnet_tier_forward.14} parent=5 // pred_check
      _
    $region38: #{melnet_tier_forward.14} parent=5 // pred_check_branch
      %240 = sbr.rel (%p237) target = $region40
    $region39: #{melnet_tier_forward.14} parent=5 // pred_region
      %s241 = ssub.s32 %s13, 1
      %p242 = scmp.lt.s32.totalorder %s22, 1
      %s243 = scalar_select %p242, %s22, 1
      %p244 = scmp.lt.s32.totalorder %s23, 0
      %s245 = scalar_select %p244, %s23, 0
      %s246 = smul.addr %s243, 8
      %s247 = sadd.s32 %s245, %s246
      %s248 = smul.addr %s247, 4
      %s249 = scalar_lea.vmem %s0, %s248
      %p250 = pneg %p53
      %p251 = pneg %p50
      %p252 = pneg %p74
      %p253 = pneg %p71
      %p254 = pneg %p95
      %p255 = pneg %p92
      %p256 = pneg %p116
      %p257 = pneg %p113
      %p258 = pneg %p137
      %p259 = pneg %p134
      %p260 = pneg %p165
      %p261 = pneg %p162
      %p262 = scmp.lt.s32.totalorder %s22, 1
      %s263 = scalar_select %p262, %s22, 1
      %p264 = scmp.lt.s32.totalorder %s23, 0
      %s265 = scalar_select %p264, %s23, 0
      %s266 = smul.addr %s263, 8
      %s267 = sadd.s32 %s265, %s266
      %s268 = smul.addr %s267, 4
      %s269 = scalar_lea.vmem %s5, %s268
      %p270 = pneg %p193
      %p271 = pneg %p190
      %p272 = scmp.lt.s32.totalorder %s22, 1
      %s273 = scalar_select %p272, %s22, 1
      %p274 = scmp.lt.s32.totalorder %s23, 0
      %s275 = scalar_select %p274, %s23, 0
      %s276 = smul.addr %s273, 8
      %s277 = sadd.s32 %s275, %s276
      %s278 = smul.addr %s277, 4
      %s279 = scalar_lea.vmem %s6, %s278
      %p280 = scmp.lt.s32.totalorder %s22, 1
      %s281 = scalar_select %p280, %s22, 1
      %p282 = scmp.lt.s32.totalorder %s23, 0
      %s283 = scalar_select %p282, %s23, 0
      %s284 = smul.addr %s281, 8
      %s285 = sadd.s32 %s283, %s284
      %s286 = smul.addr %s285, 4
      %s287 = scalar_lea.vmem %s0, %s286
      %p288 = scmp.lt.s32.totalorder %s22, 1
      %s289 = scalar_select %p288, %s22, 1
      %p290 = scmp.lt.s32.totalorder %s23, 0
      %s291 = scalar_select %p290, %s23, 0
      %s292 = smul.addr %s289, 8
      %s293 = sadd.s32 %s291, %s292
      %s294 = smul.addr %s293, 4
      %s295 = scalar_lea.vmem %s5, %s294
      %p296 = scmp.lt.s32.totalorder %s22, 1
      %s297 = scalar_select %p296, %s22, 1
      %p298 = scmp.lt.s32.totalorder %s23, 0
      %s299 = scalar_select %p298, %s23, 0
      %s300 = smul.addr %s297, 8
      %s301 = sadd.s32 %s299, %s300
      %s302 = smul.addr %s301, 4
      %s303 = scalar_lea.vmem %s6, %s302
      %v305 = vld [vmem:[%s287] sm:$0xf]
      %v306 = vld [vmem:[%s287 + $0x4] sm:$0xf]
      %v307 = vld [vmem:[%s287 + $0x8] sm:$0xf]
      %v308 = vld [vmem:[%s287 + $0xc] sm:$0xf]
      %v309 = vld [vmem:[%s287 + $0x10] sm:$0xf]
      %v310 = vld [vmem:[%s287 + $0x14] sm:$0xf]
      %v311 = vld [vmem:[%s287 + $0x18] sm:$0xf]
      %v312 = vld [vmem:[%s287 + $0x1c] sm:$0xf]
      %v313 = vld [vmem:[%s1] sm:$0xf]
      %v314 = vld [vmem:[%s1 + $0x4] sm:$0xf]
      %v315 = vld [vmem:[%s1 + $0x8] sm:$0xf]
      %v316 = vld [vmem:[%s1 + $0xc] sm:$0xf]
      %v317 = vld [vmem:[%s3] sm:$0x1]
      %v319 = vperm.slane %v317, 0
      %v329 = vunpack.c.l.b16 %v305
      %v330 = vunpack.c.l.b16 %v306
      %v331 = vunpack.c.l.b16 %v307
      %v332 = vunpack.c.l.b16 %v308
      %v333 = vunpack.c.l.b16 %v309
      %v334 = vunpack.c.l.b16 %v310
      %v335 = vunpack.c.l.b16 %v311
      %v336 = vunpack.c.l.b16 %v312
      %v337 = vpack.c.b16 %v330, %v329
      %v338 = vpack.c.b16 %v332, %v331
      %v339 = vpack.c.b16 %v334, %v333
      %v340 = vpack.c.b16 %v336, %v335
      %v345 = vunpack.c.l.b16 %v313
      %v346 = vunpack.c.l.b16 %v314
      %v347 = vunpack.c.l.b16 %v315
      %v348 = vunpack.c.l.b16 %v316
      %v349 = vpack.c.b16 %v346, %v345
      %v350 = vpack.c.b16 %v348, %v347
      %vm353 = vcmask 261120
      %v355 = vsel %vm353, %v337, 0
      %v358 = vsel %vm353, %v338, 0
      %v361 = vsel %vm353, %v339, 0
      %v364 = vsel %vm353, %v340, 0
      %366 = vmatpush.bf16.msra.mxu0 0
      %367 = vmatpush.bf16.msra.mxu0 0
      %368 = vmatpush.bf16.msra.mxu0 0
      %369 = vmatpush.bf16.msra.mxu0 0
      %370 = vmatpush.bf16.msra.mxu0 0
      %371 = vmatpush.bf16.msra.mxu0 0
      %372 = vmatpush.bf16.msra.mxu0 %v350
      %373 = vmatpush.bf16.msra.mxu0 %v349
      %374 = vmatmul.bf16.gmra.mxu0 %v355
      %v375 = vpop.f32.mrf.mxu0
      %v376 = vadd.f32 %v319, %v375
      %v377 = vpop.f32.mrf.mxu0
      %v378 = vadd.f32 %v319, %v377
      %379 = vmatmul.bf16.gmra.mxu0 %v358
      %v380 = vpop.f32.mrf.mxu0
      %v381 = vadd.f32 %v319, %v380
      %v382 = vpop.f32.mrf.mxu0
      %v383 = vadd.f32 %v319, %v382
      %384 = vmatmul.bf16.gmra.mxu0 %v361
      %v385 = vpop.f32.mrf.mxu0
      %v386 = vadd.f32 %v319, %v385
      %v387 = vpop.f32.mrf.mxu0
      %v388 = vadd.f32 %v319, %v387
      %389 = vmatmul.bf16.gmra.mxu0 %v364
      %v390 = vpop.f32.mrf.mxu0
      %v391 = vadd.f32 %v319, %v390
      %v392 = vpop.f32.mrf.mxu0
      %v393 = vadd.f32 %v319, %v392
      %394 = vdwg.mxu0
      %v395 = vpack.c.bf16 %v376, %v376
      %v396 = vpack.c.bf16 %v378, %v378
      %v397 = vpack.c.bf16 %v381, %v381
      %v398 = vpack.c.bf16 %v383, %v383
      %v399 = vpack.c.bf16 %v386, %v386
      %v400 = vpack.c.bf16 %v388, %v388
      %v401 = vpack.c.bf16 %v391, %v391
      %v402 = vpack.c.bf16 %v393, %v393
      %vm403 = vcmask 781312
      %404 = vst.msk [vmem:[#allocation2] sm:$0xf] %vm403, %v395
      %405 = vst.msk [vmem:[#allocation2 + $0x4] sm:$0xf] %vm403, %v396
      %406 = vst.msk [vmem:[#allocation2 + $0x8] sm:$0xf] %vm403, %v397
      %407 = vst.msk [vmem:[#allocation2 + $0xc] sm:$0xf] %vm403, %v398
      %408 = vst.msk [vmem:[#allocation2 + $0x10] sm:$0xf] %vm403, %v399
      %409 = vst.msk [vmem:[#allocation2 + $0x14] sm:$0xf] %vm403, %v400
      %410 = vst.msk [vmem:[#allocation2 + $0x18] sm:$0xf] %vm403, %v401
      %411 = vst.msk [vmem:[#allocation2 + $0x1c] sm:$0xf] %vm403, %v402
      %s412 = scalar_lea.vmem %s1, 16
      %v413 = vld [vmem:[%s412] sm:$0xf]
      %v414 = vld [vmem:[%s412 + $0x4] sm:$0xf]
      %v415 = vld [vmem:[%s412 + $0x8] sm:$0xf]
      %v416 = vld [vmem:[%s412 + $0xc] sm:$0xf]
      %s417 = scalar_lea.vmem %s3, 1
      %v418 = vld [vmem:[%s417] sm:$0x1]
      %v420 = vperm.slane %v418, 0
      %v426 = vunpack.c.l.b16 %v413
      %v427 = vunpack.c.l.b16 %v414
      %v428 = vunpack.c.l.b16 %v415
      %v429 = vunpack.c.l.b16 %v416
      %v430 = vpack.c.b16 %v427, %v426
      %v431 = vpack.c.b16 %v429, %v428
      %434 = vmatpush.bf16.msra.mxu0 0
      %435 = vmatpush.bf16.msra.mxu0 0
      %436 = vmatpush.bf16.msra.mxu0 0
      %437 = vmatpush.bf16.msra.mxu0 0
      %438 = vmatpush.bf16.msra.mxu0 0
      %439 = vmatpush.bf16.msra.mxu0 0
      %440 = vmatpush.bf16.msra.mxu0 %v431
      %441 = vmatpush.bf16.msra.mxu0 %v430
      %442 = vmatmul.bf16.gmra.mxu0 %v355
      %v443 = vpop.f32.mrf.mxu0
      %v444 = vadd.f32 %v420, %v443
      %v445 = vpop.f32.mrf.mxu0
      %v446 = vadd.f32 %v420, %v445
      %447 = vmatmul.bf16.gmra.mxu0 %v358
      %v448 = vpop.f32.mrf.mxu0
      %v449 = vadd.f32 %v420, %v448
      %v450 = vpop.f32.mrf.mxu0
      %v451 = vadd.f32 %v420, %v450
      %452 = vmatmul.bf16.gmra.mxu0 %v361
      %v453 = vpop.f32.mrf.mxu0
      %v454 = vadd.f32 %v420, %v453
      %v455 = vpop.f32.mrf.mxu0
      %v456 = vadd.f32 %v420, %v455
      %457 = vmatmul.bf16.gmra.mxu0 %v364
      %v458 = vpop.f32.mrf.mxu0
      %v459 = vadd.f32 %v420, %v458
      %v460 = vpop.f32.mrf.mxu0
      %v461 = vadd.f32 %v420, %v460
      %462 = vdwg.mxu0
      %v463 = vpack.c.bf16 %v444, %v444
      %v464 = vpack.c.bf16 %v446, %v446
      %v465 = vpack.c.bf16 %v449, %v449
      %v466 = vpack.c.bf16 %v451, %v451
      %v467 = vpack.c.bf16 %v454, %v454
      %v468 = vpack.c.bf16 %v456, %v456
      %v469 = vpack.c.bf16 %v459, %v459
      %v470 = vpack.c.bf16 %v461, %v461
      %s471 = scalar_lea.vmem [#allocation2], 32
      %472 = vst.msk [vmem:[%s471] sm:$0xf] %vm403, %v463
      %473 = vst.msk [vmem:[%s471 + $0x4] sm:$0xf] %vm403, %v464
      %474 = vst.msk [vmem:[%s471 + $0x8] sm:$0xf] %vm403, %v465
      %475 = vst.msk [vmem:[%s471 + $0xc] sm:$0xf] %vm403, %v466
      %476 = vst.msk [vmem:[%s471 + $0x10] sm:$0xf] %vm403, %v467
      %477 = vst.msk [vmem:[%s471 + $0x14] sm:$0xf] %vm403, %v468
      %478 = vst.msk [vmem:[%s471 + $0x18] sm:$0xf] %vm403, %v469
      %479 = vst.msk [vmem:[%s471 + $0x1c] sm:$0xf] %vm403, %v470
      %vm480 = vcmask 257024
      %481 = vst.msk [vmem:[#allocation3] sm:$0xf] %vm480, 0
      %482 = vst.msk [vmem:[#allocation3 + $0x4] sm:$0xf] %vm480, 0
      loop: start=0, step=1, limit=8
      $region41: #{melnet_tier_forward.14} parent=39 // loop_pre_header
        _
      $region42: #{melnet_tier_forward.14} parent=39 // loop_header
        %s484 = sphi 0, %s488
        %p485 = scmp.ge.s32.totalorder %s484, 8
      $region43: #{melnet_tier_forward.14} parent=39 // loop_header_branch
        %487 = sbr.rel (%p485) target = $region47
      $region44: #{melnet_tier_forward.14} parent=39 // loop_body
        %v489 = vld [vmem:[#allocation3] sm:$0xf]
        %v490 = vld [vmem:[%s2] sm:$0xf]
        %v491 = vld [vmem:[%s2 + $0x4] sm:$0xf]
        %v492 = vld [vmem:[%s2 + $0x8] sm:$0xf]
        %v493 = vld [vmem:[%s2 + $0xc] sm:$0xf]
        %v498 = vunpack.c.l.b16 %v490
        %v499 = vunpack.c.l.b16 %v491
        %v500 = vunpack.c.l.b16 %v492
        %v501 = vunpack.c.l.b16 %v493
        %v502 = vpack.c.b16 %v499, %v498
        %v503 = vpack.c.b16 %v501, %v500
        %v507 = vsel %vm353, %v489, 0
        %509 = vmatpush.bf16.msra.mxu0 0
        %510 = vmatpush.bf16.msra.mxu0 0
        %511 = vmatpush.bf16.msra.mxu0 0
        %512 = vmatpush.bf16.msra.mxu0 0
        %513 = vmatpush.bf16.msra.mxu0 0
        %514 = vmatpush.bf16.msra.mxu0 0
        %515 = vmatpush.bf16.msra.mxu0 %v503
        %516 = vmatpush.bf16.msra.mxu0 %v502
        %517 = vmatmul.bf16.gmra.mxu0 %v507
        %v518 = vpop.f32.mrf.mxu0
        %v519 = vadd.f32 0.0, %v518
        %v520 = vpop.f32.mrf.mxu0
        %521 = vdwg.mxu0
        %s522 = smul.addr %s484, 4
        %s523 = scalar_lea.vmem [#allocation2], %s522
        %v524 = vld [vmem:[%s523] sm:$0xf]
        %v525 = vunpack.c.l.bf16 %v524
        %v526 = vadd.f32 %v525, %v519
        %v527 = vxor.u32 %v526, 2147483648
        %v528 = vmul.f32 %v527, 1.442695
        %v529 = vpow.pop %v528
        %v530 = vadd.f32 %v529, 1.0
        %v531 = vrcp.pop %v530
        %v532 = vmul.f32 %v530, %v531
        %v533 = vsub.f32 1.0, %v532
        %v534 = vmul.f32 %v531, %v533
        %v535 = vadd.f32 %v531, %v534
        %vm536 = vweird.f32 %v530
        %vm537 = vweird.f32 %v531
        %vm538 = vmor %vm536, %vm537
        %v539 = vsel %vm538, %v531, %v535
        %v540 = vand.u32 2147483647, %v530
        %vm541 = vcmp.eq.f32.partialorder %v540, 8.507059e+37
        %v542 = vand.u32 %v530, 2147483648
        %v543 = vor.u32 1.1754944e-38, %v542
        %v544 = vsel %vm541, %v543, %v539
        %v545 = vmul.f32 1.0, %v544
        %v546 = vld [vmem:[%s4] sm:$0x1]
        %v548 = vperm.slane %v546, 0
        %549 = vrot.lane.b32.xlu0 %v548, 64
        %v550 = vpop.permute.xlu0 %549
        %v552 = vadd.f32 %v519, %v550
        %554 = vrot.lane.b32.xlu0 %v552, 64
        %v555 = vpop.permute.xlu0 %554
        %v557 = vmul.f32 %v545, %v555
        %559 = vrot.lane.b32.xlu0 %v557, 64
        %v560 = vpop.permute.xlu0 %559
        %v562 = vadd.f32 %v525, %v560
        %v563 = vtanh.pop %v562
        %v564 = vsub.f32 1.0, %v545
        %566 = vrot.lane.b32.xlu0 %v563, 96
        %v567 = vpop.permute.xlu0 %566
        %v569 = vmul.f32 %v564, %v567
        %v570 = vunpack.c.l.bf16 %v489
        %572 = vrot.lane.b32.xlu0 %v570, 32
        %v573 = vpop.permute.xlu0 %572
        %v575 = vmul.f32 %v545, %v573
        %v576 = vadd.f32 %v569, %v575
        %v577 = vpack.c.bf16 %v576, %v576
        %579 = vrot.lane.b32.xlu0 %v577, 96
        %v580 = vpop.permute.xlu0 %579
        %582 = vst.msk [vmem:[#allocation3] sm:$0xf] %vm480, %v580
        %s583 = smul.addr %s484, 4
        %s584 = scalar_lea.vmem %s295, %s583
        %585 = vst.msk [vmem:[%s584] sm:$0xf] %vm480, %v580
        %s586 = ssub.s32 7, %s484
        %s587 = scalar_lea.vmem [#allocation3], 4
        %v588 = vld [vmem:[%s587] sm:$0xf]
        %s589 = scalar_lea.vmem %s2, 16
        %v590 = vld [vmem:[%s589] sm:$0xf]
        %v591 = vld [vmem:[%s589 + $0x4] sm:$0xf]
        %v592 = vld [vmem:[%s589 + $0x8] sm:$0xf]
        %v593 = vld [vmem:[%s589 + $0xc] sm:$0xf]
        %v598 = vunpack.c.l.b16 %v590
        %v599 = vunpack.c.l.b16 %v591
        %v600 = vunpack.c.l.b16 %v592
        %v601 = vunpack.c.l.b16 %v593
        %v602 = vpack.c.b16 %v599, %v598
        %v603 = vpack.c.b16 %v601, %v600
        %v607 = vsel %vm353, %v588, 0
        %609 = vmatpush.bf16.msra.mxu0 0
        %610 = vmatpush.bf16.msra.mxu0 0
        %611 = vmatpush.bf16.msra.mxu0 0
        %612 = vmatpush.bf16.msra.mxu0 0
        %613 = vmatpush.bf16.msra.mxu0 0
        %614 = vmatpush.bf16.msra.mxu0 0
        %615 = vmatpush.bf16.msra.mxu0 %v603
        %616 = vmatpush.bf16.msra.mxu0 %v602
        %617 = vmatmul.bf16.gmra.mxu0 %v607
        %v618 = vpop.f32.mrf.mxu0
        %v619 = vadd.f32 0.0, %v618
        %v620 = vpop.f32.mrf.mxu0
        %621 = vdwg.mxu0
        %s622 = sadd.s32 %s586, 8
        %s623 = smul.addr %s622, 4
        %s624 = scalar_lea.vmem [#allocation2], %s623
        %v625 = vld [vmem:[%s624] sm:$0xf]
        %v626 = vunpack.c.l.bf16 %v625
        %v627 = vadd.f32 %v626, %v619
        %v628 = vxor.u32 %v627, 2147483648
        %v629 = vmul.f32 %v628, 1.442695
        %v630 = vpow.pop %v629
        %v631 = vadd.f32 %v630, 1.0
        %v632 = vrcp.pop %v631
        %v633 = vmul.f32 %v631, %v632
        %v634 = vsub.f32 1.0, %v633
        %v635 = vmul.f32 %v632, %v634
        %v636 = vadd.f32 %v632, %v635
        %vm637 = vweird.f32 %v631
        %vm638 = vweird.f32 %v632
        %vm639 = vmor %vm637, %vm638
        %v640 = vsel %vm639, %v632, %v636
        %v641 = vand.u32 2147483647, %v631
        %vm642 = vcmp.eq.f32.partialorder %v641, 8.507059e+37
        %v643 = vand.u32 %v631, 2147483648
        %v644 = vor.u32 1.1754944e-38, %v643
        %v645 = vsel %vm642, %v644, %v640
        %v646 = vmul.f32 1.0, %v645
        %s647 = scalar_lea.vmem %s4, 1
        %v648 = vld [vmem:[%s647] sm:$0x1]
        %v650 = vperm.slane %v648, 0
        %651 = vrot.lane.b32.xlu0 %v650, 64
        %v652 = vpop.permute.xlu0 %651
        %v654 = vadd.f32 %v619, %v652
        %656 = vrot.lane.b32.xlu0 %v654, 64
        %v657 = vpop.permute.xlu0 %656
        %v659 = vmul.f32 %v646, %v657
        %661 = vrot.lane.b32.xlu0 %v659, 64
        %v662 = vpop.permute.xlu0 %661
        %v664 = vadd.f32 %v626, %v662
        %v665 = vtanh.pop %v664
        %v666 = vsub.f32 1.0, %v646
        %668 = vrot.lane.b32.xlu0 %v665, 96
        %v669 = vpop.permute.xlu0 %668
        %v671 = vmul.f32 %v666, %v669
        %v672 = vunpack.c.l.bf16 %v588
        %674 = vrot.lane.b32.xlu0 %v672, 32
        %v675 = vpop.permute.xlu0 %674
        %v677 = vmul.f32 %v646, %v675
        %v678 = vadd.f32 %v671, %v677
        %v679 = vpack.c.bf16 %v678, %v678
        %681 = vrot.lane.b32.xlu0 %v679, 96
        %v682 = vpop.permute.xlu0 %681
        %684 = vst.msk [vmem:[%s587] sm:$0xf] %vm480, %v682
        %s685 = smul.addr %s586, 4
        %s686 = scalar_lea.vmem %s303, %s685
        %687 = vst.msk [vmem:[%s686] sm:$0xf] %vm480, %v682
      $region45: #{melnet_tier_forward.14} parent=39 // loop_footer
        %s488 = sadd.s32 1, %s484
      $region46: #{melnet_tier_forward.14} parent=39 // loop_footer_branch
        %483 = sbr.rel target = $region42
      $region47: #{melnet_tier_forward.14} parent=39 // loop_exit
        _
      %p688 = scmp.lt.s32.totalorder %s22, 1
      %s689 = scalar_select %p688, %s22, 1
      %p690 = scmp.lt.s32.totalorder %s23, 0
      %s691 = scalar_select %p690, %s23, 0
      %s692 = smul.addr %s689, 8
      %s693 = sadd.s32 %s691, %s692
      %s694 = smul.addr %s693, 4
      %s695 = scalar_lea.vmem %s5, %s694
      %p696 = scmp.lt.s32.totalorder %s22, 1
      %s697 = scalar_select %p696, %s22, 1
      %p698 = scmp.lt.s32.totalorder %s23, 0
      %s699 = scalar_select %p698, %s23, 0
      %s700 = smul.addr %s697, 8
      %s701 = sadd.s32 %s699, %s700
      %s702 = smul.addr %s701, 4
      %s703 = scalar_lea.vmem %s6, %s702
      // Predicated region
      $region48: #{melnet_tier_forward.14} parent=39 // pred_check
        %p704 = pneg %p162
      $region49: #{melnet_tier_forward.14} parent=39 // pred_check_branch
        %706 = sbr.rel (%p704) target = $region51
      $region50: #{melnet_tier_forward.14} parent=39 // pred_region
        _
      $region51: #{melnet_tier_forward.14} parent=39 // pred_fallthru
        _
      // Predicated region
      $region52: #{melnet_tier_forward.14} parent=39 // pred_check
        %p707 = pneg %p190
      $region53: #{melnet_tier_forward.14} parent=39 // pred_check_branch
        %709 = sbr.rel (%p707) target = $region55
      $region54: #{melnet_tier_forward.14} parent=39 // pred_region
        _
      $region55: #{melnet_tier_forward.14} parent=39 // pred_fallthru
        _
    $region40: #{melnet_tier_forward.14} parent=5 // pred_fallthru
      _
    %p710 = scmp.le.s32.totalorder 2, %s13
    // Predicated region
    $region56: #{melnet_tier_forward.14} parent=5 // pred_check
      %p711 = pneg %p710
    $region57: #{melnet_tier_forward.14} parent=5 // pred_check_branch
      %713 = sbr.rel (%p711) target = $region59
    $region58: #{melnet_tier_forward.14} parent=5 // pred_region
      %s714 = ssub.s32 %s13, 2
      // Predicated region
      $region60: #{melnet_tier_forward.14} parent=58 // pred_check
        %p715 = pneg %p168
      $region61: #{melnet_tier_forward.14} parent=58 // pred_check_branch
        %717 = sbr.rel (%p715) target = $region63
      $region62: #{melnet_tier_forward.14} parent=58 // pred_region
        %p718 = scmp.lt.s32.totalorder %s24, 1
        %s719 = scalar_select %p718, %s24, 1
        %p720 = scmp.lt.s32.totalorder %s25, 0
        %s721 = scalar_select %p720, %s25, 0
        %s722 = smul.addr %s719, 8
        %s723 = sadd.s32 %s721, %s722
        %s724 = smul.addr %s723, 4
        %s725 = scalar_lea.vmem %s5, %s724
      $region63: #{melnet_tier_forward.14} parent=58 // pred_fallthru
        _
      // Predicated region
      $region64: #{melnet_tier_forward.14} parent=58 // pred_check
        %p726 = pneg %p196
      $region65: #{melnet_tier_forward.14} parent=58 // pred_check_branch
        %728 = sbr.rel (%p726) target = $region67
      $region66: #{melnet_tier_forward.14} parent=58 // pred_region
        %p729 = scmp.lt.s32.totalorder %s24, 1
        %s730 = scalar_select %p729, %s24, 1
        %p731 = scmp.lt.s32.totalorder %s25, 0
        %s732 = scalar_select %p731, %s25, 0
        %s733 = smul.addr %s730, 8
        %s734 = sadd.s32 %s732, %s733
        %s735 = smul.addr %s734, 4
        %s736 = scalar_lea.vmem %s6, %s735
      $region67: #{melnet_tier_forward.14} parent=58 // pred_fallthru
        _
    $region59: #{melnet_tier_forward.14} parent=5 // pred_fallthru
      _
  $region6: #{melnet_tier_forward.14} parent=0 // loop_footer
    %s17 = sadd.s32 1, %s13
  $region7: #{melnet_tier_forward.14} parent=0 // loop_footer_branch
    %12 = sbr.rel target = $region3
  $region8: #{melnet_tier_forward.14} parent=0 // loop_exit
    _

// kernel: melnet_tier_forward.15
$region0: #{melnet_tier_forward.15}
  #allocation0 [shape = 'u32[]', space=smem, size = 0x4, offset = 0x4, fixed_abs, tag = 'smem constant byte address 0x4 - core index']
  #allocation1 [shape = 'u32[72,128]{1,0:T(1,128)}', space=vmem, size = 0x9000, scoped, tag = 'internal scratch']
  %s0 = inlined_call_operand.vmem [shape: bf16[2,8,8,32], index: 0, kind: input, shape index: {}]
  %s1 = inlined_call_operand.vmem [shape: bf16[2,8,8,32], index: 1, kind: input, shape index: {}]
  %s2 = inlined_call_operand.vmem [shape: bf16[2,8,8,32], index: 2, kind: input, shape index: {}]
  %s3 = inlined_call_operand.vmem [shape: bf16[2,8,8,32], index: 3, kind: input, shape index: {}]
  %s4 = inlined_call_operand.vmem [shape: bf16[2,8,8,32], index: 4, kind: input, shape index: {}]
  %s5 = inlined_call_operand.vmem [shape: bf16[3,32,32], index: 5, kind: input, shape index: {}]
  %s6 = inlined_call_operand.vmem [shape: f32[1,32], index: 6, kind: input, shape index: {}]
  %s7 = inlined_call_operand.vmem [shape: bf16[2,8,8,32], index: 7, kind: output, shape index: {0}]
  %s8 = inlined_call_operand.vmem [shape: bf16[2,8,8,32], index: 8, kind: output, shape index: {1}]
  %9 = xla_tuple %s7, %s8
  %s10 = sld [smem:[#allocation0]]
  $region69: #{melnet_tier_forward.15} parent=0
    _
  %s12 = ssub.s32 1, %s10
  %s13 = scalar_select 0, %s12, %s10
  loop: start=0, step=1, limit=4
  $region2: #{melnet_tier_forward.15} parent=0 // loop_pre_header
    _
  $region3: #{melnet_tier_forward.15} parent=0 // loop_header
    %s15 = sphi 0, %s19
    %p16 = scmp.ge.s32.totalorder %s15, 4
    %s22 = sphi 0, %s41
    %s23 = sphi 0, %s37
    %s24 = sphi 0, %s33
    %s25 = sphi 0, %s22
    %s26 = sphi 0, %s23
    %s27 = sphi 0, %s24
    %s28 = sphi 0, %s25
    %s29 = sphi 0, %s26
    %s30 = sphi 0, %s27
    %s48 = sphi 0, %s50
    %s51 = sphi 0, %s48
    %s52 = sphi 0, %s51
    %s68 = sphi 0, %s52
    %s78 = sphi 0, %s80
    %s81 = sphi 0, %s78
    %s82 = sphi 0, %s81
    %s98 = sphi 0, %s82
    %s108 = sphi 0, %s110
    %s111 = sphi 0, %s108
    %s112 = sphi 0, %s111
    %s128 = sphi 0, %s112
    %s138 = sphi 0, %s140
    %s141 = sphi 0, %s138
    %s142 = sphi 0, %s141
    %s158 = sphi 0, %s142
    %s168 = sphi 0, %s170
    %s171 = sphi 0, %s168
    %s172 = sphi 0, %s171
    %s188 = sphi 0, %s172
    %s192 = sphi 0, %s192
    %s194 = sphi 0, %s192
    %s195 = sphi 0, %s194
    %s209 = sphi 0, %s195
    %s213 = sphi 0, %s213
    %s215 = sphi 0, %s213
    %s216 = sphi 0, %s215
    %s230 = sphi 0, %s216
    %s240 = sphi 0, %s242
    %s243 = sphi 0, %s240
    %s244 = sphi 0, %s243
    %s260 = sphi 0, %s244
    %s270 = sphi 0, %s272
    %s273 = sphi 0, %s270
    %s274 = sphi 0, %s273
    %s290 = sphi 0, %s274
  $region4: #{melnet_tier_forward.15} parent=0 // loop_header_branch
    %18 = sbr.rel (%p16) target = $region8
  $region5: #{melnet_tier_forward.15} parent=0 // loop_body
    %s20 = ssub.s32 %s15, 1
    %s21 = ssub.s32 %s15, 2
    %s31 = sadd.s32 1, %s24
    %p32 = scmp.ge.s32.totalorder %s31, 1
    %s33 = scalar_select %p32, 0, %s31
    %s34 = sadd.s32 1, %s23
    %s35 = scalar_select %p32, %s34, %s23
    %p36 = scmp.ge.s32.totalorder %s35, 1
    %s37 = scalar_select %p36, 0, %s35
    %s38 = sadd.s32 1, %s22
    %s39 = scalar_select %p36, %s38, %s22
    %p40 = scmp.ge.s32.totalorder %s39, 2
    %s41 = scalar_select %p40, 0, %s39
    %s42 = ssub.s32 %s22, %s41
    %s43 = ssub.s32 %s23, %s37
    %s44 = sor.u32 %s42, %s43
    %s45 = ssub.s32 %s24, %s33
    %s46 = sor.u32 %s44, %s45
    %p47 = scmp.eq.s32.totalorder %s46, 0
    %s49 = sadd.s32 %s48, 1
    %s50 = scalar_select %p47, %s48, %s49
    %p53 = pneg %p47
    %p54 = scmp.eq.s32.totalorder %s15, 1
    %p55 = por %p53, %p54
    %p56 = scmp.ne.s32.totalorder %s48, %s51
    %p57 = scmp.eq.s32.totalorder %s15, 0
    %p58 = por %p56, %p57
    %p59 = scmp.ne.s32.totalorder %s48, %s51
    %p60 = scmp.eq.s32.totalorder %s20, 1
    %p61 = por %p59, %p60
    %p62 = scmp.ne.s32.totalorder %s51, %s52
    %p63 = scmp.eq.s32.totalorder %s20, 0
    %p64 = por %p62, %p63
    %p65 = scmp.ne.s32.totalorder %s51, %s52
    %p66 = scmp.eq.s32.totalorder %s21, 1
    %p67 = por %p65, %p66
    %p69 = scmp.ne.s32.totalorder %s52, %s68
    %p70 = scmp.eq.s32.totalorder %s21, 0
    %p71 = por %p69, %p70
    %s72 = ssub.s32 %s22, %s41
    %s73 = ssub.s32 %s23, %s37
    %s74 = sor.u32 %s72, %s73
    %s75 = ssub.s32 %s24, %s33
    %s76 = sor.u32 %s74, %s75
    %p77 = scmp.eq.s32.totalorder %s76, 0
    %s79 = sadd.s32 %s78, 1
    %s80 = scalar_select %p77, %s78, %s79
    %p83 = pneg %p77
    %p84 = scmp.eq.s32.totalorder %s15, 1
    %p85 = por %p83, %p84
    %p86 = scmp.ne.s32.totalorder %s78, %s81
    %p87 = scmp.eq.s32.totalorder %s15, 0
    %p88 = por %p86, %p87
    %p89 = scmp.ne.s32.totalorder %s78, %s81
    %p90 = scmp.eq.s32.totalorder %s20, 1
    %p91 = por %p89, %p90
    %p92 = scmp.ne.s32.totalorder %s81, %s82
    %p93 = scmp.eq.s32.totalorder %s20, 0
    %p94 = por %p92, %p93
    %p95 = scmp.ne.s32.totalorder %s81, %s82
    %p96 = scmp.eq.s32.totalorder %s21, 1
    %p97 = por %p95, %p96
    %p99 = scmp.ne.s32.totalorder %s82, %s98
    %p100 = scmp.eq.s32.totalorder %s21, 0
    %p101 = por %p99, %p100
    %s102 = ssub.s32 %s22, %s41
    %s103 = ssub.s32 %s23, %s37
    %s104 = sor.u32 %s102, %s103
    %s105 = ssub.s32 %s24, %s33
    %s106 = sor.u32 %s104, %s105
    %p107 = scmp.eq.s32.totalorder %s106, 0
    %s109 = sadd.s32 %s108, 1
    %s110 = scalar_select %p107, %s108, %s109
    %p113 = pneg %p107
    %p114 = scmp.eq.s32.totalorder %s15, 1
    %p115 = por %p113, %p114
    %p116 = scmp.ne.s32.totalorder %s108, %s111
    %p117 = scmp.eq.s32.totalorder %s15, 0
    %p118 = por %p116, %p117
    %p119 = scmp.ne.s32.totalorder %s108, %s111
    %p120 = scmp.eq.s32.totalorder %s20, 1
    %p121 = por %p119, %p120
    %p122 = scmp.ne.s32.totalorder %s111, %s112
    %p123 = scmp.eq.s32.totalorder %s20, 0
    %p124 = por %p122, %p123
    %p125 = scmp.ne.s32.totalorder %s111, %s112
    %p126 = scmp.eq.s32.totalorder %s21, 1
    %p127 = por %p125, %p126
    %p129 = scmp.ne.s32.totalorder %s112, %s128
    %p130 = scmp.eq.s32.totalorder %s21, 0
    %p131 = por %p129, %p130
    %s132 = ssub.s32 %s22, %s41
    %s133 = ssub.s32 %s23, %s37
    %s134 = sor.u32 %s132, %s133
    %s135 = ssub.s32 %s24, %s33
    %s136 = sor.u32 %s134, %s135
    %p137 = scmp.eq.s32.totalorder %s136, 0
    %s139 = sadd.s32 %s138, 1
    %s140 = scalar_select %p137, %s138, %s139
    %p143 = pneg %p137
    %p144 = scmp.eq.s32.totalorder %s15, 1
    %p145 = por %p143, %p144
    %p146 = scmp.ne.s32.totalorder %s138, %s141
    %p147 = scmp.eq.s32.totalorder %s15, 0
    %p148 = por %p146, %p147
    %p149 = scmp.ne.s32.totalorder %s138, %s141
    %p150 = scmp.eq.s32.totalorder %s20, 1
    %p151 = por %p149, %p150
    %p152 = scmp.ne.s32.totalorder %s141, %s142
    %p153 = scmp.eq.s32.totalorder %s20, 0
    %p154 = por %p152, %p153
    %p155 = scmp.ne.s32.totalorder %s141, %s142
    %p156 = scmp.eq.s32.totalorder %s21, 1
    %p157 = por %p155, %p156
    %p159 = scmp.ne.s32.totalorder %s142, %s158
    %p160 = scmp.eq.s32.totalorder %s21, 0
    %p161 = por %p159, %p160
    %s162 = ssub.s32 %s22, %s41
    %s163 = ssub.s32 %s23, %s37
    %s164 = sor.u32 %s162, %s163
    %s165 = ssub.s32 %s24, %s33
    %s166 = sor.u32 %s164, %s165
    %p167 = scmp.eq.s32.totalorder %s166, 0
    %s169 = sadd.s32 %s168, 1
    %s170 = scalar_select %p167, %s168, %s169
    %p173 = pneg %p167
    %p174 = scmp.eq.s32.totalorder %s15, 1
    %p175 = por %p173, %p174
    %p176 = scmp.ne.s32.totalorder %s168, %s171
    %p177 = scmp.eq.s32.totalorder %s15, 0
    %p178 = por %p176, %p177
    %p179 = scmp.ne.s32.totalorder %s168, %s171
    %p180 = scmp.eq.s32.totalorder %s20, 1
    %p181 = por %p179, %p180
    %p182 = scmp.ne.s32.totalorder %s171, %s172
    %p183 = scmp.eq.s32.totalorder %s20, 0
    %p184 = por %p182, %p183
    %p185 = scmp.ne.s32.totalorder %s171, %s172
    %p186 = scmp.eq.s32.totalorder %s21, 1
    %p187 = por %p185, %p186
    %p189 = scmp.ne.s32.totalorder %s172, %s188
    %p190 = scmp.eq.s32.totalorder %s21, 0
    %p191 = por %p189, %p190
    %s193 = sadd.s32 %s192, 1
    %p196 = scmp.eq.s32.totalorder %s15, 1
    %p197 = scmp.ne.s32.totalorder %s192, %s194
    %p198 = scmp.eq.s32.totalorder %s15, 0
    %p199 = por %p197, %p198
    %p200 = scmp.ne.s32.totalorder %s192, %s194
    %p201 = scmp.eq.s32.totalorder %s20, 1
    %p202 = por %p200, %p201
    %p203 = scmp.ne.s32.totalorder %s194, %s195
    %p204 = scmp.eq.s32.totalorder %s20, 0
    %p205 = por %p203, %p204
    %p206 = scmp.ne.s32.totalorder %s194, %s195
    %p207 = scmp.eq.s32.totalorder %s21, 1
    %p208 = por %p206, %p207
    %p210 = scmp.ne.s32.totalorder %s195, %s209
    %p211 = scmp.eq.s32.totalorder %s21, 0
    %p212 = por %p210, %p211
    %s214 = sadd.s32 %s213, 1
    %p217 = scmp.eq.s32.totalorder %s15, 1
    %p218 = scmp.ne.s32.totalorder %s213, %s215
    %p219 = scmp.eq.s32.totalorder %s15, 0
    %p220 = por %p218, %p219
    %p221 = scmp.ne.s32.totalorder %s213, %s215
    %p222 = scmp.eq.s32.totalorder %s20, 1
    %p223 = por %p221, %p222
    %p224 = scmp.ne.s32.totalorder %s215, %s216
    %p225 = scmp.eq.s32.totalorder %s20, 0
    %p226 = por %p224, %p225
    %p227 = scmp.ne.s32.totalorder %s215, %s216
    %p228 = scmp.eq.s32.totalorder %s21, 1
    %p229 = por %p227, %p228
    %p231 = scmp.ne.s32.totalorder %s216, %s230
    %p232 = scmp.eq.s32.totalorder %s21, 0
    %p233 = por %p231, %p232
    %s234 = ssub.s32 %s22, %s41
    %s235 = ssub.s32 %s23, %s37
    %s236 = sor.u32 %s234, %s235
    %s237 = ssub.s32 %s24, %s33
    %s238 = sor.u32 %s236, %s237
    %p239 = scmp.eq.s32.totalorder %s238, 0
    %s241 = sadd.s32 %s240, 1
    %s242 = scalar_select %p239, %s240, %s241
    %p245 = pneg %p239
    %p246 = scmp.eq.s32.totalorder %s15, 1
    %p247 = por %p245, %p246
    %p248 = scmp.ne.s32.totalorder %s240, %s243
    %p249 = scmp.eq.s32.totalorder %s15, 0
    %p250 = por %p248, %p249
    %p251 = scmp.ne.s32.totalorder %s240, %s243
    %p252 = scmp.eq.s32.totalorder %s20, 1
    %p253 = por %p251, %p252
    %p254 = scmp.ne.s32.totalorder %s243, %s244
    %p255 = scmp.eq.s32.totalorder %s20, 0
    %p256 = por %p254, %p255
    %p257 = scmp.ne.s32.totalorder %s243, %s244
    %p258 = scmp.eq.s32.totalorder %s21, 1
    %p259 = por %p257, %p258
    %p261 = scmp.ne.s32.totalorder %s244, %s260
    %p262 = scmp.eq.s32.totalorder %s21, 0
    %p263 = por %p261, %p262
    %s264 = ssub.s32 %s22, %s41
    %s265 = ssub.s32 %s23, %s37
    %s266 = sor.u32 %s264, %s265
    %s267 = ssub.s32 %s24, %s33
    %s268 = sor.u32 %s266, %s267
    %p269 = scmp.eq.s32.totalorder %s268, 0
    %s271 = sadd.s32 %s270, 1
    %s272 = scalar_select %p269, %s270, %s271
    %p275 = pneg %p269
    %p276 = scmp.eq.s32.totalorder %s15, 1
    %p277 = por %p275, %p276
    %p278 = scmp.ne.s32.totalorder %s270, %s273
    %p279 = scmp.eq.s32.totalorder %s15, 0
    %p280 = por %p278, %p279
    %p281 = scmp.ne.s32.totalorder %s270, %s273
    %p282 = scmp.eq.s32.totalorder %s20, 1
    %p283 = por %p281, %p282
    %p284 = scmp.ne.s32.totalorder %s273, %s274
    %p285 = scmp.eq.s32.totalorder %s20, 0
    %p286 = por %p284, %p285
    %p287 = scmp.ne.s32.totalorder %s273, %s274
    %p288 = scmp.eq.s32.totalorder %s21, 1
    %p289 = por %p287, %p288
    %p291 = scmp.ne.s32.totalorder %s274, %s290
    %p292 = scmp.eq.s32.totalorder %s21, 0
    %p293 = por %p291, %p292
    %p294 = scmp.le.s32.totalorder 1, %s15
    %p295 = scmp.lt.s32.totalorder %s15, 3
    %p296 = pnand %p294, %p295
    %p297 = pneg %p296
    // Predicated region
    $region9: #{melnet_tier_forward.15} parent=5 // pred_check
      _
    $region10: #{melnet_tier_forward.15} parent=5 // pred_check_branch
      %299 = sbr.rel (%p296) target = $region12
    $region11: #{melnet_tier_forward.15} parent=5 // pred_region
      %s300 = ssub.s32 %s15, 1
      // Predicated region
      $region13: #{melnet_tier_forward.15} parent=11 // pred_check
        %p301 = pneg %p205
      $region14: #{melnet_tier_forward.15} parent=11 // pred_check_branch
        %303 = sbr.rel (%p301) target = $region16
      $region15: #{melnet_tier_forward.15} parent=11 // pred_region
        _
      $region16: #{melnet_tier_forward.15} parent=11 // pred_fallthru
        _
      // Predicated region
      $region17: #{melnet_tier_forward.15} parent=11 // pred_check
        %p304 = pneg %p226
      $region18: #{melnet_tier_forward.15} parent=11 // pred_check_branch
        %306 = sbr.rel (%p304) target = $region20
      $region19: #{melnet_tier_forward.15} parent=11 // pred_region
        _
      $region20: #{melnet_tier_forward.15} parent=11 // pred_fallthru
        _
    $region12: #{melnet_tier_forward.15} parent=5 // pred_fallthru
      _
    %p307 = scmp.lt.s32.totalorder %s15, 2
    // Predicated region
    $region21: #{melnet_tier_forward.15} parent=5 // pred_check
      %p308 = pneg %p307
    $region22: #{melnet_tier_forward.15} parent=5 // pred_check_branch
      %310 = sbr.rel (%p308) target = $region24
    $region23: #{melnet_tier_forward.15} parent=5 // pred_region
      // Predicated region
      $region25: #{melnet_tier_forward.15} parent=23 // pred_check
        %p311 = pneg %p58
      $region26: #{melnet_tier_forward.15} parent=23 // pred_check_branch
        %313 = sbr.rel (%p311) target = $region28
      $region27: #{melnet_tier_forward.15} parent=23 // pred_region
        %s314 = smul.u32 8, %s23
        %p315 = scmp.lt.s32.totalorder %s22, 1
        %s316 = scalar_select %p315, %s22, 1
        %p317 = scmp.lt.s32.totalorder %s314, 7
        %s318 = scalar_select %p317, %s314, 7
        %p319 = scmp.lt.s32.totalorder %s24, 0
        %s320 = scalar_select %p319, %s24, 0
        %s321 = sadd.s32 %s320, %s318
        %s322 = smul.addr %s316, 8
        %s323 = sadd.s32 %s321, %s322
        %s324 = smul.addr %s323, 4
        %s325 = scalar_lea.vmem %s0, %s324
        %s326 = smul.u32 8, %s23
      $region28: #{melnet_tier_forward.15} parent=23 // pred_fallthru
        _
      // Predicated region
      $region29: #{melnet_tier_forward.15} parent=23 // pred_check
        %p327 = pneg %p88
      $region30: #{melnet_tier_forward.15} parent=23 // pred_check_branch
        %329 = sbr.rel (%p327) target = $region32
      $region31: #{melnet_tier_forward.15} parent=23 // pred_region
        %s330 = smul.u32 8, %s23
        %p331 = scmp.lt.s32.totalorder %s22, 1
        %s332 = scalar_select %p331, %s22, 1
        %p333 = scmp.lt.s32.totalorder %s330, 7
        %s334 = scalar_select %p333, %s330, 7
        %p335 = scmp.lt.s32.totalorder %s24, 0
        %s336 = scalar_select %p335, %s24, 0
        %s337 = sadd.s32 %s336, %s334
        %s338 = smul.addr %s332, 8
        %s339 = sadd.s32 %s337, %s338
        %s340 = smul.addr %s339, 4
        %s341 = scalar_lea.vmem %s1, %s340
        %s342 = smul.u32 8, %s23
      $region32: #{melnet_tier_forward.15} parent=23 // pred_fallthru
        _
      // Predicated region
      $region33: #{melnet_tier_forward.15} parent=23 // pred_check
        %p343 = pneg %p118
      $region34: #{melnet_tier_forward.15} parent=23 // pred_check_branch
        %345 = sbr.rel (%p343) target = $region36
      $region35: #{melnet_tier_forward.15} parent=23 // pred_region
        %s346 = smul.u32 8, %s23
        %p347 = scmp.lt.s32.totalorder %s22, 1
        %s348 = scalar_select %p347, %s22, 1
        %p349 = scmp.lt.s32.totalorder %s346, 7
        %s350 = scalar_select %p349, %s346, 7
        %p351 = scmp.lt.s32.totalorder %s24, 0
        %s352 = scalar_select %p351, %s24, 0
        %s353 = sadd.s32 %s352, %s350
        %s354 = smul.addr %s348, 8
        %s355 = sadd.s32 %s353, %s354
        %s356 = smul.addr %s355, 4
        %s357 = scalar_lea.vmem %s2, %s356
        %s358 = smul.u32 8, %s23
      $region36: #{melnet_tier_forward.15} parent=23 // pred_fallthru
        _
      // Predicated region
      $region37: #{melnet_tier_forward.15} parent=23 // pred_check
        %p359 = pneg %p148
      $region38: #{melnet_tier_forward.15} parent=23 // pred_check_branch
        %361 = sbr.rel (%p359) target = $region40
      $region39: #{melnet_tier_forward.15} parent=23 // pred_region
        %s362 = smul.u32 8, %s23
        %p363 = scmp.lt.s32.totalorder %s22, 1
        %s364 = scalar_select %p363, %s22, 1
        %p365 = scmp.lt.s32.totalorder %s362, 7
        %s366 = scalar_select %p365, %s362, 7
        %p367 = scmp.lt.s32.totalorder %s24, 0
        %s368 = scalar_select %p367, %s24, 0
        %s369 = sadd.s32 %s368, %s366
        %s370 = smul.addr %s364, 8
        %s371 = sadd.s32 %s369, %s370
        %s372 = smul.addr %s371, 4
        %s373 = scalar_lea.vmem %s3, %s372
        %s374 = smul.u32 8, %s23
      $region40: #{melnet_tier_forward.15} parent=23 // pred_fallthru
        _
      // Predicated region
      $region41: #{melnet_tier_forward.15} parent=23 // pred_check
        %p375 = pneg %p178
      $region42: #{melnet_tier_forward.15} parent=23 // pred_check_branch
        %377 = sbr.rel (%p375) target = $region44
      $region43: #{melnet_tier_forward.15} parent=23 // pred_region
        %s378 = smul.u32 8, %s23
        %p379 = scmp.lt.s32.totalorder %s22, 1
        %s380 = scalar_select %p379, %s22, 1
        %p381 = scmp.lt.s32.totalorder %s378, 7
        %s382 = scalar_select %p381, %s378, 7
        %p383 = scmp.lt.s32.totalorder %s24, 0
        %s384 = scalar_select %p383, %s24, 0
        %s385 = sadd.s32 %s384, %s382
        %s386 = smul.addr %s380, 8
        %s387 = sadd.s32 %s385, %s386
        %s388 = smul.addr %s387, 4
        %s389 = scalar_lea.vmem %s4, %s388
        %s390 = smul.u32 8, %s23
      $region44: #{melnet_tier_forward.15} parent=23 // pred_fallthru
        _
    $region24: #{melnet_tier_forward.15} parent=5 // pred_fallthru
      _
    %p391 = scmp.le.s32.totalorder 1, %s15
    %p392 = scmp.lt.s32.totalorder %s15, 3
    %p393 = pnand %p391, %p392
    %p394 = pneg %p393
    // Predicated region
    $region45: #{melnet_tier_forward.15} parent=5 // pred_check
      _
    $region46: #{melnet_tier_forward.15} parent=5 // pred_check_branch
      %396 = sbr.rel (%p393) target = $region48
    $region47: #{melnet_tier_forward.15} parent=5 // pred_region
      %s397 = ssub.s32 %s15, 1
      %s398 = smul.u32 8, %s26
      %p399 = scmp.lt.s32.totalorder %s25, 1
      %s400 = scalar_select %p399, %s25, 1
      %p401 = scmp.lt.s32.totalorder %s398, 7
      %s402 = scalar_select %p401, %s398, 7
      %p403 = scmp.lt.s32.totalorder %s27, 0
      %s404 = scalar_select %p403, %s27, 0
      %s405 = sadd.s32 %s404, %s402
      %s406 = smul.addr %s400, 8
      %s407 = sadd.s32 %s405, %s406
      %s408 = smul.addr %s407, 4
      %s409 = scalar_lea.vmem %s0, %s408
      %p410 = pneg %p64
      %p411 = pneg %p61
      %s412 = smul.u32 8, %s26
      %p413 = scmp.lt.s32.totalorder %s25, 1
      %s414 = scalar_select %p413, %s25, 1
      %p415 = scmp.lt.s32.totalorder %s412, 7
      %s416 = scalar_select %p415, %s412, 7
      %p417 = scmp.lt.s32.totalorder %s27, 0
      %s418 = scalar_select %p417, %s27, 0
      %s419 = sadd.s32 %s418, %s416
      %s420 = smul.addr %s414, 8
      %s421 = sadd.s32 %s419, %s420
      %s422 = smul.addr %s421, 4
      %s423 = scalar_lea.vmem %s1, %s422
      %p424 = pneg %p94
      %p425 = pneg %p91
      %s426 = smul.u32 8, %s26
      %p427 = scmp.lt.s32.totalorder %s25, 1
      %s428 = scalar_select %p427, %s25, 1
      %p429 = scmp.lt.s32.totalorder %s426, 7
      %s430 = scalar_select %p429, %s426, 7
      %p431 = scmp.lt.s32.totalorder %s27, 0
      %s432 = scalar_select %p431, %s27, 0
      %s433 = sadd.s32 %s432, %s430
      %s434 = smul.addr %s428, 8
      %s435 = sadd.s32 %s433, %s434
      %s436 = smul.addr %s435, 4
      %s437 = scalar_lea.vmem %s2, %s436
      %p438 = pneg %p124
      %p439 = pneg %p121
      %s440 = smul.u32 8, %s26
      %p441 = scmp.lt.s32.totalorder %s25, 1
      %s442 = scalar_select %p441, %s25, 1
      %p443 = scmp.lt.s32.totalorder %s440, 7
      %s444 = scalar_select %p443, %s440, 7
      %p445 = scmp.lt.s32.totalorder %s27, 0
      %s446 = scalar_select %p445, %s27, 0
      %s447 = sadd.s32 %s446, %s444
      %s448 = smul.addr %s442, 8
      %s449 = sadd.s32 %s447, %s448
      %s450 = smul.addr %s449, 4
      %s451 = scalar_lea.vmem %s3, %s450
      %p452 = pneg %p154
      %p453 = pneg %p151
      %s454 = smul.u32 8, %s26
      %p455 = scmp.lt.s32.totalorder %s25, 1
      %s456 = scalar_select %p455, %s25, 1
      %p457 = scmp.lt.s32.totalorder %s454, 7
      %s458 = scalar_select %p457, %s454, 7
      %p459 = scmp.lt.s32.totalorder %s27, 0
      %s460 = scalar_select %p459, %s27, 0
      %s461 = sadd.s32 %s460, %s458
      %s462 = smul.addr %s456, 8
      %s463 = sadd.s32 %s461, %s462
      %s464 = smul.addr %s463, 4
      %s465 = scalar_lea.vmem %s4, %s464
      %p466 = pneg %p184
      %p467 = pneg %p181
      %p468 = pneg %p205
      %p469 = pneg %p202
      %p470 = pneg %p226
      %p471 = pneg %p223
      %p472 = pneg %p256
      %p473 = pneg %p253
      %s474 = smul.u32 8, %s26
      %p475 = scmp.lt.s32.totalorder %s25, 1
      %s476 = scalar_select %p475, %s25, 1
      %p477 = scmp.lt.s32.totalorder %s474, 7
      %s478 = scalar_select %p477, %s474, 7
      %p479 = scmp.lt.s32.totalorder %s27, 0
      %s480 = scalar_select %p479, %s27, 0
      %s481 = sadd.s32 %s480, %s478
      %s482 = smul.addr %s476, 8
      %s483 = sadd.s32 %s481, %s482
      %s484 = smul.addr %s483, 4
      %s485 = scalar_lea.vmem %s7, %s484
      %p486 = pneg %p286
      %p487 = pneg %p283
      %s488 = smul.u32 8, %s26
      %p489 = scmp.lt.s32.totalorder %s25, 1
      %s490 = scalar_select %p489, %s25, 1
      %p491 = scmp.lt.s32.totalorder %s488, 7
      %s492 = scalar_select %p491, %s488, 7
      %p493 = scmp.lt.s32.totalorder %s27, 0
      %s494 = scalar_select %p493, %s27, 0
      %s495 = sadd.s32 %s494, %s492
      %s496 = smul.addr %s490, 8
      %s497 = sadd.s32 %s495, %s496
      %s498 = smul.addr %s497, 4
      %s499 = scalar_lea.vmem %s8, %s498
      %s500 = smul.u32 8, %s26
      %p501 = scmp.lt.s32.totalorder %s25, 1
      %s502 = scalar_select %p501, %s25, 1
      %p503 = scmp.lt.s32.totalorder %s500, 7
      %s504 = scalar_select %p503, %s500, 7
      %p505 = scmp.lt.s32.totalorder %s27, 0
      %s506 = scalar_select %p505, %s27, 0
      %s507 = sadd.s32 %s506, %s504
      %s508 = smul.addr %s502, 8
      %s509 = sadd.s32 %s507, %s508
      %s510 = smul.addr %s509, 4
      %s511 = scalar_lea.vmem %s0, %s510
      %s512 = smul.u32 8, %s26
      %s513 = smul.u32 8, %s26
      %p514 = scmp.lt.s32.totalorder %s25, 1
      %s515 = scalar_select %p514, %s25, 1
      %p516 = scmp.lt.s32.totalorder %s513, 7
      %s517 = scalar_select %p516, %s513, 7
      %p518 = scmp.lt.s32.totalorder %s27, 0
      %s519 = scalar_select %p518, %s27, 0
      %s520 = sadd.s32 %s519, %s517
      %s521 = smul.addr %s515, 8
      %s522 = sadd.s32 %s520, %s521
      %s523 = smul.addr %s522, 4
      %s524 = scalar_lea.vmem %s1, %s523
      %s525 = smul.u32 8, %s26
      %s526 = smul.u32 8, %s26
      %p527 = scmp.lt.s32.totalorder %s25, 1
      %s528 = scalar_select %p527, %s25, 1
      %p529 = scmp.lt.s32.totalorder %s526, 7
      %s530 = scalar_select %p529, %s526, 7
      %p531 = scmp.lt.s32.totalorder %s27, 0
      %s532 = scalar_select %p531, %s27, 0
      %s533 = sadd.s32 %s532, %s530
      %s534 = smul.addr %s528, 8
      %s535 = sadd.s32 %s533, %s534
      %s536 = smul.addr %s535, 4
      %s537 = scalar_lea.vmem %s2, %s536
      %s538 = smul.u32 8, %s26
      %s539 = smul.u32 8, %s26
      %p540 = scmp.lt.s32.totalorder %s25, 1
      %s541 = scalar_select %p540, %s25, 1
      %p542 = scmp.lt.s32.totalorder %s539, 7
      %s543 = scalar_select %p542, %s539, 7
      %p544 = scmp.lt.s32.totalorder %s27, 0
      %s545 = scalar_select %p544, %s27, 0
      %s546 = sadd.s32 %s545, %s543
      %s547 = smul.addr %s541, 8
      %s548 = sadd.s32 %s546, %s547
      %s549 = smul.addr %s548, 4
      %s550 = scalar_lea.vmem %s3, %s549
      %s551 = smul.u32 8, %s26
      %s552 = smul.u32 8, %s26
      %p553 = scmp.lt.s32.totalorder %s25, 1
      %s554 = scalar_select %p553, %s25, 1
      %p555 = scmp.lt.s32.totalorder %s552, 7
      %s556 = scalar_select %p555, %s552, 7
      %p557 = scmp.lt.s32.totalorder %s27, 0
      %s558 = scalar_select %p557, %s27, 0
      %s559 = sadd.s32 %s558, %s556
      %s560 = smul.addr %s554, 8
      %s561 = sadd.s32 %s559, %s560
      %s562 = smul.addr %s561, 4
      %s563 = scalar_lea.vmem %s4, %s562
      %s564 = smul.u32 8, %s26
      %s565 = smul.u32 8, %s26
      %p566 = scmp.lt.s32.totalorder %s25, 1
      %s567 = scalar_select %p566, %s25, 1
      %p568 = scmp.lt.s32.totalorder %s565, 7
      %s569 = scalar_select %p568, %s565, 7
      %p570 = scmp.lt.s32.totalorder %s27, 0
      %s571 = scalar_select %p570, %s27, 0
      %s572 = sadd.s32 %s571, %s569
      %s573 = smul.addr %s567, 8
      %s574 = sadd.s32 %s572, %s573
      %s575 = smul.addr %s574, 4
      %s576 = scalar_lea.vmem %s7, %s575
      %s577 = smul.u32 8, %s26
      %s578 = smul.u32 8, %s26
      %p579 = scmp.lt.s32.totalorder %s25, 1
      %s580 = scalar_select %p579, %s25, 1
      %p581 = scmp.lt.s32.totalorder %s578, 7
      %s582 = scalar_select %p581, %s578, 7
      %p583 = scmp.lt.s32.totalorder %s27, 0
      %s584 = scalar_select %p583, %s27, 0
      %s585 = sadd.s32 %s584, %s582
      %s586 = smul.addr %s580, 8
      %s587 = sadd.s32 %s585, %s586
      %s588 = smul.addr %s587, 4
      %s589 = scalar_lea.vmem %s8, %s588
      %s590 = smul.u32 8, %s26
      %v592 = vld [vmem:[%s511] sm:$0xf]
      %v593 = vld [vmem:[%s511 + $0x4] sm:$0xf]
      %v594 = vld [vmem:[%s511 + $0x8] sm:$0xf]
      %v595 = vld [vmem:[%s511 + $0xc] sm:$0xf]
      %v596 = vld [vmem:[%s511 + $0x10] sm:$0xf]
      %v597 = vld [vmem:[%s511 + $0x14] sm:$0xf]
      %v598 = vld [vmem:[%s511 + $0x18] sm:$0xf]
      %v599 = vld [vmem:[%s511 + $0x1c] sm:$0xf]
      %v600 = vld [vmem:[%s524] sm:$0xf]
      %v601 = vld [vmem:[%s524 + $0x4] sm:$0xf]
      %v602 = vld [vmem:[%s524 + $0x8] sm:$0xf]
      %v603 = vld [vmem:[%s524 + $0xc] sm:$0xf]
      %v604 = vld [vmem:[%s524 + $0x10] sm:$0xf]
      %v605 = vld [vmem:[%s524 + $0x14] sm:$0xf]
      %v606 = vld [vmem:[%s524 + $0x18] sm:$0xf]
      %v607 = vld [vmem:[%s524 + $0x1c] sm:$0xf]
      %v608 = vld [vmem:[%s537] sm:$0xf]
      %v609 = vld [vmem:[%s537 + $0x4] sm:$0xf]
      %v610 = vld [vmem:[%s537 + $0x8] sm:$0xf]
      %v611 = vld [vmem:[%s537 + $0xc] sm:$0xf]
      %v612 = vld [vmem:[%s537 + $0x10] sm:$0xf]
      %v613 = vld [vmem:[%s537 + $0x14] sm:$0xf]
      %v614 = vld [vmem:[%s537 + $0x18] sm:$0xf]
      %v615 = vld [vmem:[%s537 + $0x1c] sm:$0xf]
      %v616 = vld [vmem:[%s5] sm:$0xf]
      %v617 = vld [vmem:[%s5 + $0x4] sm:$0xf]
      %v618 = vld [vmem:[%s5 + $0x8] sm:$0xf]
      %v619 = vld [vmem:[%s5 + $0xc] sm:$0xf]
      %s620 = scalar_lea.vmem %s5, 16
      %v621 = vld [vmem:[%s620] sm:$0xf]
      %v622 = vld [vmem:[%s620 + $0x4] sm:$0xf]
      %v623 = vld [vmem:[%s620 + $0x8] sm:$0xf]
      %v624 = vld [vmem:[%s620 + $0xc] sm:$0xf]
      %v633 = vunpack.c.l.b16 %v600
      %v634 = vunpack.c.l.b16 %v601
      %v635 = vunpack.c.l.b16 %v602
      %v636 = vunpack.c.l.b16 %v603
      %v637 = vunpack.c.l.b16 %v604
      %v638 = vunpack.c.l.b16 %v605
      %v639 = vunpack.c.l.b16 %v606
      %v640 = vunpack.c.l.b16 %v607
      %v641 = vpack.c.b16 %v634, %v633
      %v642 = vpack.c.b16 %v636, %v635
      %v643 = vpack.c.b16 %v638, %v637
      %v644 = vpack.c.b16 %v640, %v639
      %v649 = vunpack.c.l.b16 %v621
      %v650 = vunpack.c.l.b16 %v622
      %v651 = vunpack.c.l.b16 %v623
      %v652 = vunpack.c.l.b16 %v624
      %v653 = vpack.c.b16 %v650, %v649
      %v654 = vpack.c.b16 %v652, %v651
      %vm657 = vcmask 261120
      %v659 = vsel %vm657, %v641, 0
      %v662 = vsel %vm657, %v642, 0
      %v665 = vsel %vm657, %v643, 0
      %v668 = vsel %vm657, %v644, 0
      %670 = vmatpush.bf16.msra.mxu0 0
      %671 = vmatpush.bf16.msra.mxu0 0
      %672 = vmatpush.bf16.msra.mxu0 0
      %673 = vmatpush.bf16.msra.mxu0 0
      %674 = vmatpush.bf16.msra.mxu0 0
      %675 = vmatpush.bf16.msra.mxu0 0
      %676 = vmatpush.bf16.msra.mxu0 %v654
      %677 = vmatpush.bf16.msra.mxu0 %v653
      %678 = vmatmul.bf16.gmra.mxu0 %v659
      %v679 = vpop.f32.mrf.mxu0
      %v680 = vadd.f32 0.0, %v679
      %v681 = vpop.f32.mrf.mxu0
      %v682 = vadd.f32 0.0, %v681
      %683 = vmatmul.bf16.gmra.mxu0 %v662
      %v684 = vpop.f32.mrf.mxu0
      %v685 = vadd.f32 0.0, %v684
      %v686 = vpop.f32.mrf.mxu0
      %v687 = vadd.f32 0.0, %v686
      %688 = vmatmul.bf16.gmra.mxu0 %v665
      %v689 = vpop.f32.mrf.mxu0
      %v690 = vadd.f32 0.0, %v689
      %v691 = vpop.f32.mrf.mxu0
      %v692 = vadd.f32 0.0, %v691
      %693 = vmatmul.bf16.gmra.mxu0 %v668
      %v694 = vpop.f32.mrf.mxu0
      %v695 = vadd.f32 0.0, %v694
      %v696 = vpop.f32.mrf.mxu0
      %v697 = vadd.f32 0.0, %v696
      %698 = vdwg.mxu0
      %v707 = vunpack.c.l.b16 %v592
      %v708 = vunpack.c.l.b16 %v593
      %v709 = vunpack.c.l.b16 %v594
      %v710 = vunpack.c.l.b16 %v595
      %v711 = vunpack.c.l.b16 %v596
      %v712 = vunpack.c.l.b16 %v597
      %v713 = vunpack.c.l.b16 %v598
      %v714 = vunpack.c.l.b16 %v599
      %v715 = vpack.c.b16 %v708, %v707
      %v716 = vpack.c.b16 %v710, %v709
      %v717 = vpack.c.b16 %v712, %v711
      %v718 = vpack.c.b16 %v714, %v713
      %v723 = vunpack.c.l.b16 %v616
      %v724 = vunpack.c.l.b16 %v617
      %v725 = vunpack.c.l.b16 %v618
      %v726 = vunpack.c.l.b16 %v619
      %v727 = vpack.c.b16 %v724, %v723
      %v728 = vpack.c.b16 %v726, %v725
      %v732 = vsel %vm657, %v715, 0
      %v735 = vsel %vm657, %v716, 0
      %v738 = vsel %vm657, %v717, 0
      %v741 = vsel %vm657, %v718, 0
      %743 = vmatpush.bf16.msra.mxu0 0
      %744 = vmatpush.bf16.msra.mxu0 0
      %745 = vmatpush.bf16.msra.mxu0 0
      %746 = vmatpush.bf16.msra.mxu0 0
      %747 = vmatpush.bf16.msra.mxu0 0
      %748 = vmatpush.bf16.msra.mxu0 0
      %749 = vmatpush.bf16.msra.mxu0 %v728
      %750 = vmatpush.bf16.msra.mxu0 %v727
      %751 = vmatmul.bf16.gmra.mxu0 %v732
      %v752 = vpop.f32.mrf.mxu0
      %v753 = vadd.f32 %v680, %v752
      %v754 = vpop.f32.mrf.mxu0
      %v755 = vadd.f32 %v682, %v754
      %756 = vmatmul.bf16.gmra.mxu0 %v735
      %v757 = vpop.f32.mrf.mxu0
      %v758 = vadd.f32 %v685, %v757
      %v759 = vpop.f32.mrf.mxu0
      %v760 = vadd.f32 %v687, %v759
      %761 = vmatmul.bf16.gmra.mxu0 %v738
      %v762 = vpop.f32.mrf.mxu0
      %v763 = vadd.f32 %v690, %v762
      %v764 = vpop.f32.mrf.mxu0
      %v765 = vadd.f32 %v692, %v764
      %766 = vmatmul.bf16.gmra.mxu0 %v741
      %v767 = vpop.f32.mrf.mxu0
      %v768 = vadd.f32 %v695, %v767
      %v769 = vpop.f32.mrf.mxu0
      %v770 = vadd.f32 %v697, %v769
      %771 = vdwg.mxu0
      %s772 = scalar_lea.vmem %s5, 32
      %v773 = vld [vmem:[%s772] sm:$0xf]
      %v774 = vld [vmem:[%s772 + $0x4] sm:$0xf]
      %v775 = vld [vmem:[%s772 + $0x8] sm:$0xf]
      %v776 = vld [vmem:[%s772 + $0xc] sm:$0xf]
      %v785 = vunpack.c.l.b16 %v608
      %v786 = vunpack.c.l.b16 %v609
      %v787 = vunpack.c.l.b16 %v610
      %v788 = vunpack.c.l.b16 %v611
      %v789 = vunpack.c.l.b16 %v612
      %v790 = vunpack.c.l.b16 %v613
      %v791 = vunpack.c.l.b16 %v614
      %v792 = vunpack.c.l.b16 %v615
      %v793 = vpack.c.b16 %v786, %v785
      %v794 = vpack.c.b16 %v788, %v787
      %v795 = vpack.c.b16 %v790, %v789
      %v796 = vpack.c.b16 %v792, %v791
      %v801 = vunpack.c.l.b16 %v773
      %v802 = vunpack.c.l.b16 %v774
      %v803 = vunpack.c.l.b16 %v775
      %v804 = vunpack.c.l.b16 %v776
      %v805 = vpack.c.b16 %v802, %v801
      %v806 = vpack.c.b16 %v804, %v803
      %v810 = vsel %vm657, %v793, 0
      %v813 = vsel %vm657, %v794, 0
      %v816 = vsel %vm657, %v795, 0
      %v819 = vsel %vm657, %v796, 0
      %821 = vmatpush.bf16.msra.mxu0 0
      %822 = vmatpush.bf16.msra.mxu0 0
      %823 = vmatpush.bf16.msra.mxu0 0
      %824 = vmatpush.bf16.msra.mxu0 0
      %825 = vmatpush.bf16.msra.mxu0 0
      %826 = vmatpush.bf16.msra.mxu0 0
      %827 = vmatpush.bf16.msra.mxu0 %v806
      %828 = vmatpush.bf16.msra.mxu0 %v805
      %829 = vmatmul.bf16.gmra.mxu0 %v810
      %v830 = vpop.f32.mrf.mxu0
      %v831 = vadd.f32 0.0, %v830
      %v832 = vpop.f32.mrf.mxu0
      %v833 = vadd.f32 0.0, %v832
      %834 = vmatmul.bf16.gmra.mxu0 %v813
      %v835 = vpop.f32.mrf.mxu0
      %v836 = vadd.f32 0.0, %v835
      %v837 = vpop.f32.mrf.mxu0
      %v838 = vadd.f32 0.0, %v837
      %839 = vmatmul.bf16.gmra.mxu0 %v816
      %v840 = vpop.f32.mrf.mxu0
      %v841 = vadd.f32 0.0, %v840
      %v842 = vpop.f32.mrf.mxu0
      %v843 = vadd.f32 0.0, %v842
      %844 = vmatmul.bf16.gmra.mxu0 %v819
      %v845 = vpop.f32.mrf.mxu0
      %v846 = vadd.f32 0.0, %v845
      %v847 = vpop.f32.mrf.mxu0
      %v848 = vadd.f32 0.0, %v847
      %849 = vdwg.mxu0
      %v850 = vadd.f32 %v753, %v831
      %v851 = vadd.f32 %v755, %v833
      %v852 = vadd.f32 %v758, %v836
      %v853 = vadd.f32 %v760, %v838
      %v854 = vadd.f32 %v763, %v841
      %v855 = vadd.f32 %v765, %v843
      %v856 = vadd.f32 %v768, %v846
      %v857 = vadd.f32 %v770, %v848
      %v858 = vld [vmem:[%s6] sm:$0x1]
      %v860 = vperm.slane %v858, 0
      %v862 = vadd.f32 %v850, %v860
      %v863 = vadd.f32 %v851, %v860
      %v864 = vadd.f32 %v852, %v860
      %v865 = vadd.f32 %v853, %v860
      %v866 = vadd.f32 %v854, %v860
      %v867 = vadd.f32 %v855, %v860
      %v868 = vadd.f32 %v856, %v860
      %v869 = vadd.f32 %v857, %v860
      %v870 = vld [vmem:[%s550] sm:$0xf]
      %v871 = vld [vmem:[%s550 + $0x4] sm:$0xf]
      %v872 = vld [vmem:[%s550 + $0x8] sm:$0xf]
      %v873 = vld [vmem:[%s550 + $0xc] sm:$0xf]
      %v874 = vld [vmem:[%s550 + $0x10] sm:$0xf]
      %v875 = vld [vmem:[%s550 + $0x14] sm:$0xf]
      %v876 = vld [vmem:[%s550 + $0x18] sm:$0xf]
      %v877 = vld [vmem:[%s550 + $0x1c] sm:$0xf]
      %v878 = vunpack.c.l.bf16 %v870
      %v879 = vunpack.c.l.bf16 %v871
      %v880 = vunpack.c.l.bf16 %v872
      %v881 = vunpack.c.l.bf16 %v873
      %v882 = vunpack.c.l.bf16 %v874
      %v883 = vunpack.c.l.bf16 %v875
      %v884 = vunpack.c.l.bf16 %v876
      %v885 = vunpack.c.l.bf16 %v877
      %v886 = vadd.f32 %v862, %v878
      %v887 = vadd.f32 %v863, %v879
      %v888 = vadd.f32 %v864, %v880
      %v889 = vadd.f32 %v865, %v881
      %v890 = vadd.f32 %v866, %v882
      %v891 = vadd.f32 %v867, %v883
      %v892 = vadd.f32 %v868, %v884
      %v893 = vadd.f32 %v869, %v885
      %v894 = vld [vmem:[%s563] sm:$0xf]
      %v895 = vld [vmem:[%s563 + $0x4] sm:$0xf]
      %v896 = vld [vmem:[%s563 + $0x8] sm:$0xf]
      %v897 = vld [vmem:[%s563 + $0xc] sm:$0xf]
      %v898 = vld [vmem:[%s563 + $0x10] sm:$0xf]
      %v899 = vld [vmem:[%s563 + $0x14] sm:$0xf]
      %v900 = vld [vmem:[%s563 + $0x18] sm:$0xf]
      %v901 = vld [vmem:[%s563 + $0x1c] sm:$0xf]
      %v902 = vunpack.c.l.bf16 %v894
      %v903 = vunpack.c.l.bf16 %v895
      %v904 = vunpack.c.l.bf16 %v896
      %v905 = vunpack.c.l.bf16 %v897
      %v906 = vunpack.c.l.bf16 %v898
      %v907 = vunpack.c.l.bf16 %v899
      %v908 = vunpack.c.l.bf16 %v900
      %v909 = vunpack.c.l.bf16 %v901
      %v910 = vadd.f32 %v886, %v902
      %v911 = vadd.f32 %v887, %v903
      %v912 = vadd.f32 %v888, %v904
      %v913 = vadd.f32 %v889, %v905
      %v914 = vadd.f32 %v890, %v906
      %v915 = vadd.f32 %v891, %v907
      %v916 = vadd.f32 %v892, %v908
      %v917 = vadd.f32 %v893, %v909
      %v918 = vpack.c.bf16 %v886, %v886
      %v919 = vpack.c.bf16 %v887, %v887
      %v920 = vpack.c.bf16 %v888, %v888
      %v921 = vpack.c.bf16 %v889, %v889
      %v922 = vpack.c.bf16 %v890, %v890
      %v923 = vpack.c.bf16 %v891, %v891
      %v924 = vpack.c.bf16 %v892, %v892
      %v925 = vpack.c.bf16 %v893, %v893
      %vm926 = vcmask 257024
      %927 = vst.msk [vmem:[%s576] sm:$0xf] %vm926, %v918
      %928 = vst.msk [vmem:[%s576 + $0x4] sm:$0xf] %vm926, %v919
      %929 = vst.msk [vmem:[%s576 + $0x8] sm:$0xf] %vm926, %v920
      %930 = vst.msk [vmem:[%s576 + $0xc] sm:$0xf] %vm926, %v921
      %931 = vst.msk [vmem:[%s576 + $0x10] sm:$0xf] %vm926, %v922
      %932 = vst.msk [vmem:[%s576 + $0x14] sm:$0xf] %vm926, %v923
      %933 = vst.msk [vmem:[%s576 + $0x18] sm:$0xf] %vm926, %v924
      %934 = vst.msk [vmem:[%s576 + $0x1c] sm:$0xf] %vm926, %v925
      %v935 = vpack.c.bf16 %v910, %v910
      %v936 = vpack.c.bf16 %v911, %v911
      %v937 = vpack.c.bf16 %v912, %v912
      %v938 = vpack.c.bf16 %v913, %v913
      %v939 = vpack.c.bf16 %v914, %v914
      %v940 = vpack.c.bf16 %v915, %v915
      %v941 = vpack.c.bf16 %v916, %v916
      %v942 = vpack.c.bf16 %v917, %v917
      %943 = vst.msk [vmem:[%s589] sm:$0xf] %vm926, %v935
      %944 = vst.msk [vmem:[%s589 + $0x4] sm:$0xf] %vm926, %v936
      %945 = vst.msk [vmem:[%s589 + $0x8] sm:$0xf] %vm926, %v937
      %946 = vst.msk [vmem:[%s589 + $0xc] sm:$0xf] %vm926, %v938
      %947 = vst.msk [vmem:[%s589 + $0x10] sm:$0xf] %vm926, %v939
      %948 = vst.msk [vmem:[%s589 + $0x14] sm:$0xf] %vm926, %v940
      %949 = vst.msk [vmem:[%s589 + $0x18] sm:$0xf] %vm926, %v941
      %950 = vst.msk [vmem:[%s589 + $0x1c] sm:$0xf] %vm926, %v942
      %s951 = smul.u32 8, %s26
      %p952 = scmp.lt.s32.totalorder %s25, 1
      %s953 = scalar_select %p952, %s25, 1
      %p954 = scmp.lt.s32.totalorder %s951, 7
      %s955 = scalar_select %p954, %s951, 7
      %p956 = scmp.lt.s32.totalorder %s27, 0
      %s957 = scalar_select %p956, %s27, 0
      %s958 = sadd.s32 %s957, %s955
      %s959 = smul.addr %s953, 8
      %s960 = sadd.s32 %s958, %s959
      %s961 = smul.addr %s960, 4
      %s962 = scalar_lea.vmem %s7, %s961
      %s963 = smul.u32 8, %s26
      %p964 = scmp.lt.s32.totalorder %s25, 1
      %s965 = scalar_select %p964, %s25, 1
      %p966 = scmp.lt.s32.totalorder %s963, 7
      %s967 = scalar_select %p966, %s963, 7
      %p968 = scmp.lt.s32.totalorder %s27, 0
      %s969 = scalar_select %p968, %s27, 0
      %s970 = sadd.s32 %s969, %s967
      %s971 = smul.addr %s965, 8
      %s972 = sadd.s32 %s970, %s971
      %s973 = smul.addr %s972, 4
      %s974 = scalar_lea.vmem %s8, %s973
      // Predicated region
      $region49: #{melnet_tier_forward.15} parent=47 // pred_check
        %p975 = pneg %p253
      $region50: #{melnet_tier_forward.15} parent=47 // pred_check_branch
        %977 = sbr.rel (%p975) target = $region52
      $region51: #{melnet_tier_forward.15} parent=47 // pred_region
        %s978 = smul.u32 8, %s26
      $region52: #{melnet_tier_forward.15} parent=47 // pred_fallthru
        _
      // Predicated region
      $region53: #{melnet_tier_forward.15} parent=47 // pred_check
        %p979 = pneg %p283
      $region54: #{melnet_tier_forward.15} parent=47 // pred_check_branch
        %981 = sbr.rel (%p979) target = $region56
      $region55: #{melnet_tier_forward.15} parent=47 // pred_region
        %s982 = smul.u32 8, %s26
      $region56: #{melnet_tier_forward.15} parent=47 // pred_fallthru
        _
    $region48: #{melnet_tier_forward.15} parent=5 // pred_fallthru
      _
    %p983 = scmp.le.s32.totalorder 2, %s15
    // Predicated region
    $region57: #{melnet_tier_forward.15} parent=5 // pred_check
      %p984 = pneg %p983
    $region58: #{melnet_tier_forward.15} parent=5 // pred_check_branch
      %986 = sbr.rel (%p984) target = $region60
    $region59: #{melnet_tier_forward.15} parent=5 // pred_region
      %s987 = ssub.s32 %s15, 2
      // Predicated region
      $region61: #{melnet_tier_forward.15} parent=59 // pred_check
        %p988 = pneg %p259
      $region62: #{melnet_tier_forward.15} parent=59 // pred_check_branch
        %990 = sbr.rel (%p988) target = $region64
      $region63: #{melnet_tier_forward.15} parent=59 // pred_region
        %s991 = smul.u32 8, %s29
        %p992 = scmp.lt.s32.totalorder %s28, 1
        %s993 = scalar_select %p992, %s28, 1
        %p994 = scmp.lt.s32.totalorder %s991, 7
        %s995 = scalar_select %p994, %s991, 7
        %p996 = scmp.lt.s32.totalorder %s30, 0
        %s997 = scalar_select %p996, %s30, 0
        %s998 = sadd.s32 %s997, %s995
        %s999 = smul.addr %s993, 8
        %s1000 = sadd.s32 %s998, %s999
        %s1001 = smul.addr %s1000, 4
        %s1002 = scalar_lea.vmem %s7, %s1001
      $region64: #{melnet_tier_forward.15} parent=59 // pred_fallthru
        _
      // Predicated region
      $region65: #{melnet_tier_forward.15} parent=59 // pred_check
        %p1003 = pneg %p289
      $region66: #{melnet_tier_forward.15} parent=59 // pred_check_branch
        %1005 = sbr.rel (%p1003) target = $region68
      $region67: #{melnet_tier_forward.15} parent=59 // pred_region
        %s1006 = smul.u32 8, %s29
        %p1007 = scmp.lt.s32.totalorder %s28, 1
        %s1008 = scalar_select %p1007, %s28, 1
        %p1009 = scmp.lt.s32.totalorder %s1006, 7
        %s1010 = scalar_select %p1009, %s1006, 7
        %p1011 = scmp.lt.s32.totalorder %s30, 0
        %s1012 = scalar_select %p1011, %s30, 0
        %s1013 = sadd.s32 %s1012, %s1010
        %s1014 = smul.addr %s1008, 8
        %s1015 = sadd.s32 %s1013, %s1014
        %s1016 = smul.addr %s1015, 4
        %s1017 = scalar_lea.vmem %s8, %s1016
      $region68: #{melnet_tier_forward.15} parent=59 // pred_fallthru
        _
    $region60: #{melnet_tier_forward.15} parent=5 // pred_fallthru
      _
  $region6: #{melnet_tier_forward.15} parent=0 // loop_footer
    %s19 = sadd.s32 1, %s15
  $region7: #{melnet_tier_forward.15} parent=0 // loop_footer_branch
    %14 = sbr.rel target = $region3
  $region8: #{melnet_tier_forward.15} parent=0 // loop_exit
    _

// kernel: melnet_tier_forward.17
$region0: #{melnet_tier_forward.17}
  #allocation0 [shape = 'u32[]', space=smem, size = 0x4, offset = 0x4, fixed_abs, tag = 'smem constant byte address 0x4 - core index']
  #allocation1 [shape = 'u32[72,128]{1,0:T(1,128)}', space=vmem, size = 0x9000, scoped, tag = 'internal scratch']
  %s0 = inlined_call_operand.vmem [shape: bf16[2,8,8,32], index: 0, kind: input, shape index: {}]
  %s1 = inlined_call_operand.vmem [shape: bf16[2,8,8,32], index: 1, kind: input, shape index: {}]
  %s2 = inlined_call_operand.vmem [shape: bf16[32,32], index: 2, kind: input, shape index: {}]
  %s3 = inlined_call_operand.vmem [shape: f32[1,32], index: 3, kind: input, shape index: {}]
  %s4 = inlined_call_operand.vmem [shape: bf16[2,8,8,32], index: 4, kind: output, shape index: {}]
  %s5 = sld [smem:[#allocation0]]
  $region49: #{melnet_tier_forward.17} parent=0
    _
  %s7 = ssub.s32 1, %s5
  %s8 = scalar_select 0, %s7, %s5
  loop: start=0, step=1, limit=4
  $region2: #{melnet_tier_forward.17} parent=0 // loop_pre_header
    _
  $region3: #{melnet_tier_forward.17} parent=0 // loop_header
    %s10 = sphi 0, %s14
    %p11 = scmp.ge.s32.totalorder %s10, 4
    %s17 = sphi 0, %s36
    %s18 = sphi 0, %s32
    %s19 = sphi 0, %s28
    %s20 = sphi 0, %s17
    %s21 = sphi 0, %s18
    %s22 = sphi 0, %s19
    %s23 = sphi 0, %s20
    %s24 = sphi 0, %s21
    %s25 = sphi 0, %s22
    %s43 = sphi 0, %s45
    %s46 = sphi 0, %s43
    %s47 = sphi 0, %s46
    %s63 = sphi 0, %s47
    %s73 = sphi 0, %s75
    %s76 = sphi 0, %s73
    %s77 = sphi 0, %s76
    %s93 = sphi 0, %s77
    %s97 = sphi 0, %s97
    %s99 = sphi 0, %s97
    %s100 = sphi 0, %s99
    %s114 = sphi 0, %s100
    %s118 = sphi 0, %s118
    %s120 = sphi 0, %s118
    %s121 = sphi 0, %s120
    %s135 = sphi 0, %s121
    %s145 = sphi 0, %s147
    %s148 = sphi 0, %s145
    %s149 = sphi 0, %s148
    %s165 = sphi 0, %s149
  $region4: #{melnet_tier_forward.17} parent=0 // loop_header_branch
    %13 = sbr.rel (%p11) target = $region8
  $region5: #{melnet_tier_forward.17} parent=0 // loop_body
    %s15 = ssub.s32 %s10, 1
    %s16 = ssub.s32 %s10, 2
    %s26 = sadd.s32 1, %s19
    %p27 = scmp.ge.s32.totalorder %s26, 1
    %s28 = scalar_select %p27, 0, %s26
    %s29 = sadd.s32 1, %s18
    %s30 = scalar_select %p27, %s29, %s18
    %p31 = scmp.ge.s32.totalorder %s30, 1
    %s32 = scalar_select %p31, 0, %s30
    %s33 = sadd.s32 1, %s17
    %s34 = scalar_select %p31, %s33, %s17
    %p35 = scmp.ge.s32.totalorder %s34, 2
    %s36 = scalar_select %p35, 0, %s34
    %s37 = ssub.s32 %s17, %s36
    %s38 = ssub.s32 %s18, %s32
    %s39 = sor.u32 %s37, %s38
    %s40 = ssub.s32 %s19, %s28
    %s41 = sor.u32 %s39, %s40
    %p42 = scmp.eq.s32.totalorder %s41, 0
    %s44 = sadd.s32 %s43, 1
    %s45 = scalar_select %p42, %s43, %s44
    %p48 = pneg %p42
    %p49 = scmp.eq.s32.totalorder %s10, 1
    %p50 = por %p48, %p49
    %p51 = scmp.ne.s32.totalorder %s43, %s46
    %p52 = scmp.eq.s32.totalorder %s10, 0
    %p53 = por %p51, %p52
    %p54 = scmp.ne.s32.totalorder %s43, %s46
    %p55 = scmp.eq.s32.totalorder %s15, 1
    %p56 = por %p54, %p55
    %p57 = scmp.ne.s32.totalorder %s46, %s47
    %p58 = scmp.eq.s32.totalorder %s15, 0
    %p59 = por %p57, %p58
    %p60 = scmp.ne.s32.totalorder %s46, %s47
    %p61 = scmp.eq.s32.totalorder %s16, 1
    %p62 = por %p60, %p61
    %p64 = scmp.ne.s32.totalorder %s47, %s63
    %p65 = scmp.eq.s32.totalorder %s16, 0
    %p66 = por %p64, %p65
    %s67 = ssub.s32 %s17, %s36
    %s68 = ssub.s32 %s18, %s32
    %s69 = sor.u32 %s67, %s68
    %s70 = ssub.s32 %s19, %s28
    %s71 = sor.u32 %s69, %s70
    %p72 = scmp.eq.s32.totalorder %s71, 0
    %s74 = sadd.s32 %s73, 1
    %s75 = scalar_select %p72, %s73, %s74
    %p78 = pneg %p72
    %p79 = scmp.eq.s32.totalorder %s10, 1
    %p80 = por %p78, %p79
    %p81 = scmp.ne.s32.totalorder %s73, %s76
    %p82 = scmp.eq.s32.totalorder %s10, 0
    %p83 = por %p81, %p82
    %p84 = scmp.ne.s32.totalorder %s73, %s76
    %p85 = scmp.eq.s32.totalorder %s15, 1
    %p86 = por %p84, %p85
    %p87 = scmp.ne.s32.totalorder %s76, %s77
    %p88 = scmp.eq.s32.totalorder %s15, 0
    %p89 = por %p87, %p88
    %p90 = scmp.ne.s32.totalorder %s76, %s77
    %p91 = scmp.eq.s32.totalorder %s16, 1
    %p92 = por %p90, %p91
    %p94 = scmp.ne.s32.totalorder %s77, %s93
    %p95 = scmp.eq.s32.totalorder %s16, 0
    %p96 = por %p94, %p95
    %s98 = sadd.s32 %s97, 1
    %p101 = scmp.eq.s32.totalorder %s10, 1
    %p102 = scmp.ne.s32.totalorder %s97, %s99
    %p103 = scmp.eq.s32.totalorder %s10, 0
    %p104 = por %p102, %p103
    %p105 = scmp.ne.s32.totalorder %s97, %s99
    %p106 = scmp.eq.s32.totalorder %s15, 1
    %p107 = por %p105, %p106
    %p108 = scmp.ne.s32.totalorder %s99, %s100
    %p109 = scmp.eq.s32.totalorder %s15, 0
    %p110 = por %p108, %p109
    %p111 = scmp.ne.s32.totalorder %s99, %s100
    %p112 = scmp.eq.s32.totalorder %s16, 1
    %p113 = por %p111, %p112
    %p115 = scmp.ne.s32.totalorder %s100, %s114
    %p116 = scmp.eq.s32.totalorder %s16, 0
    %p117 = por %p115, %p116
    %s119 = sadd.s32 %s118, 1
    %p122 = scmp.eq.s32.totalorder %s10, 1
    %p123 = scmp.ne.s32.totalorder %s118, %s120
    %p124 = scmp.eq.s32.totalorder %s10, 0
    %p125 = por %p123, %p124
    %p126 = scmp.ne.s32.totalorder %s118, %s120
    %p127 = scmp.eq.s32.totalorder %s15, 1
    %p128 = por %p126, %p127
    %p129 = scmp.ne.s32.totalorder %s120, %s121
    %p130 = scmp.eq.s32.totalorder %s15, 0
    %p131 = por %p129, %p130
    %p132 = scmp.ne.s32.totalorder %s120, %s121
    %p133 = scmp.eq.s32.totalorder %s16, 1
    %p134 = por %p132, %p133
    %p136 = scmp.ne.s32.totalorder %s121, %s135
    %p137 = scmp.eq.s32.totalorder %s16, 0
    %p138 = por %p136, %p137
    %s139 = ssub.s32 %s17, %s36
    %s140 = ssub.s32 %s18, %s32
    %s141 = sor.u32 %s139, %s140
    %s142 = ssub.s32 %s19, %s28
    %s143 = sor.u32 %s141, %s142
    %p144 = scmp.eq.s32.totalorder %s143, 0
    %s146 = sadd.s32 %s145, 1
    %s147 = scalar_select %p144, %s145, %s146
    %p150 = pneg %p144
    %p151 = scmp.eq.s32.totalorder %s10, 1
    %p152 = por %p150, %p151
    %p153 = scmp.ne.s32.totalorder %s145, %s148
    %p154 = scmp.eq.s32.totalorder %s10, 0
    %p155 = por %p153, %p154
    %p156 = scmp.ne.s32.totalorder %s145, %s148
    %p157 = scmp.eq.s32.totalorder %s15, 1
    %p158 = por %p156, %p157
    %p159 = scmp.ne.s32.totalorder %s148, %s149
    %p160 = scmp.eq.s32.totalorder %s15, 0
    %p161 = por %p159, %p160
    %p162 = scmp.ne.s32.totalorder %s148, %s149
    %p163 = scmp.eq.s32.totalorder %s16, 1
    %p164 = por %p162, %p163
    %p166 = scmp.ne.s32.totalorder %s149, %s165
    %p167 = scmp.eq.s32.totalorder %s16, 0
    %p168 = por %p166, %p167
    %p169 = scmp.le.s32.totalorder 1, %s10
    %p170 = scmp.lt.s32.totalorder %s10, 3
    %p171 = pnand %p169, %p170
    %p172 = pneg %p171
    // Predicated region
    $region9: #{melnet_tier_forward.17} parent=5 // pred_check
      _
    $region10: #{melnet_tier_forward.17} parent=5 // pred_check_branch
      %174 = sbr.rel (%p171) target = $region12
    $region11: #{melnet_tier_forward.17} parent=5 // pred_region
      %s175 = ssub.s32 %s10, 1
      // Predicated region
      $region13: #{melnet_tier_forward.17} parent=11 // pred_check
        %p176 = pneg %p110
      $region14: #{melnet_tier_forward.17} parent=11 // pred_check_branch
        %178 = sbr.rel (%p176) target = $region16
      $region15: #{melnet_tier_forward.17} parent=11 // pred_region
        _
      $region16: #{melnet_tier_forward.17} parent=11 // pred_fallthru
        _
      // Predicated region
      $region17: #{melnet_tier_forward.17} parent=11 // pred_check
        %p179 = pneg %p131
      $region18: #{melnet_tier_forward.17} parent=11 // pred_check_branch
        %181 = sbr.rel (%p179) target = $region20
      $region19: #{melnet_tier_forward.17} parent=11 // pred_region
        _
      $region20: #{melnet_tier_forward.17} parent=11 // pred_fallthru
        _
    $region12: #{melnet_tier_forward.17} parent=5 // pred_fallthru
      _
    %p182 = scmp.lt.s32.totalorder %s10, 2
    // Predicated region
    $region21: #{melnet_tier_forward.17} parent=5 // pred_check
      %p183 = pneg %p182
    $region22: #{melnet_tier_forward.17} parent=5 // pred_check_branch
      %185 = sbr.rel (%p183) target = $region24
    $region23: #{melnet_tier_forward.17} parent=5 // pred_region
      // Predicated region
      $region25: #{melnet_tier_forward.17} parent=23 // pred_check
        %p186 = pneg %p53
      $region26: #{melnet_tier_forward.17} parent=23 // pred_check_branch
        %188 = sbr.rel (%p186) target = $region28
      $region27: #{melnet_tier_forward.17} parent=23 // pred_region
        %s189 = smul.u32 8, %s18
        %p190 = scmp.lt.s32.totalorder %s17, 1
        %s191 = scalar_select %p190, %s17, 1
        %p192 = scmp.lt.s32.totalorder %s189, 7
        %s193 = scalar_select %p192, %s189, 7
        %p194 = scmp.lt.s32.totalorder %s19, 0
        %s195 = scalar_select %p194, %s19, 0
        %s196 = sadd.s32 %s195, %s193
        %s197 = smul.addr %s191, 8
        %s198 = sadd.s32 %s196, %s197
        %s199 = smul.addr %s198, 4
        %s200 = scalar_lea.vmem %s0, %s199
        %s201 = smul.u32 8, %s18
      $region28: #{melnet_tier_forward.17} parent=23 // pred_fallthru
        _
      // Predicated region
      $region29: #{melnet_tier_forward.17} parent=23 // pred_check
        %p202 = pneg %p83
      $region30: #{melnet_tier_forward.17} parent=23 // pred_check_branch
        %204 = sbr.rel (%p202) target = $region32
      $region31: #{melnet_tier_forward.17} parent=23 // pred_region
        %s205 = smul.u32 8, %s18
        %p206 = scmp.lt.s32.totalorder %s17, 1
        %s207 = scalar_select %p206, %s17, 1
        %p208 = scmp.lt.s32.totalorder %s205, 7
        %s209 = scalar_select %p208, %s205, 7
        %p210 = scmp.lt.s32.totalorder %s19, 0
        %s211 = scalar_select %p210, %s19, 0
        %s212 = sadd.s32 %s211, %s209
        %s213 = smul.addr %s207, 8
        %s214 = sadd.s32 %s212, %s213
        %s215 = smul.addr %s214, 4
        %s216 = scalar_lea.vmem %s1, %s215
        %s217 = smul.u32 8, %s18
      $region32: #{melnet_tier_forward.17} parent=23 // pred_fallthru
        _
    $region24: #{melnet_tier_forward.17} parent=5 // pred_fallthru
      _
    %p218 = scmp.le.s32.totalorder 1, %s10
    %p219 = scmp.lt.s32.totalorder %s10, 3
    %p220 = pnand %p218, %p219
    %p221 = pneg %p220
    // Predicated region
    $region33: #{melnet_tier_forward.17} parent=5 // pred_check
      _
    $region34: #{melnet_tier_forward.17} parent=5 // pred_check_branch
      %223 = sbr.rel (%p220) target = $region36
    $region35: #{melnet_tier_forward.17} parent=5 // pred_region
      %s224 = ssub.s32 %s10, 1
      %s225 = smul.u32 8, %s21
      %p226 = scmp.lt.s32.totalorder %s20, 1
      %s227 = scalar_select %p226, %s20, 1
      %p228 = scmp.lt.s32.totalorder %s225, 7
      %s229 = scalar_select %p228, %s225, 7
      %p230 = scmp.lt.s32.totalorder %s22, 0
      %s231 = scalar_select %p230, %s22, 0
      %s232 = sadd.s32 %s231, %s229
      %s233 = smul.addr %s227, 8
      %s234 = sadd.s32 %s232, %s233
      %s235 = smul.addr %s234, 4
      %s236 = scalar_lea.vmem %s0, %s235
      %p237 = pneg %p59
      %p238 = pneg %p56
      %s239 = smul.u32 8, %s21
      %p240 = scmp.lt.s32.totalorder %s20, 1
      %s241 = scalar_select %p240, %s20, 1
      %p242 = scmp.lt.s32.totalorder %s239, 7
      %s243 = scalar_select %p242, %s239, 7
      %p244 = scmp.lt.s32.totalorder %s22, 0
      %s245 = scalar_select %p244, %s22, 0
      %s246 = sadd.s32 %s245, %s243
      %s247 = smul.addr %s241, 8
      %s248 = sadd.s32 %s246, %s247
      %s249 = smul.addr %s248, 4
      %s250 = scalar_lea.vmem %s1, %s249
      %p251 = pneg %p89
      %p252 = pneg %p86
      %p253 = pneg %p110
      %p254 = pneg %p107
      %p255 = pneg %p131
      %p256 = pneg %p128
      %p257 = pneg %p161
      %p258 = pneg %p158
      %s259 = smul.u32 8, %s21
      %p260 = scmp.lt.s32.totalorder %s20, 1
      %s261 = scalar_select %p260, %s20, 1
      %p262 = scmp.lt.s32.totalorder %s259, 7
      %s263 = scalar_select %p262, %s259, 7
      %p264 = scmp.lt.s32.totalorder %s22, 0
      %s265 = scalar_select %p264, %s22, 0
      %s266 = sadd.s32 %s265, %s263
      %s267 = smul.addr %s261, 8
      %s268 = sadd.s32 %s266, %s267
      %s269 = smul.addr %s268, 4
      %s270 = scalar_lea.vmem %s4, %s269
      %s271 = smul.u32 8, %s21
      %p272 = scmp.lt.s32.totalorder %s20, 1
      %s273 = scalar_select %p272, %s20, 1
      %p274 = scmp.lt.s32.totalorder %s271, 7
      %s275 = scalar_select %p274, %s271, 7
      %p276 = scmp.lt.s32.totalorder %s22, 0
      %s277 = scalar_select %p276, %s22, 0
      %s278 = sadd.s32 %s277, %s275
      %s279 = smul.addr %s273, 8
      %s280 = sadd.s32 %s278, %s279
      %s281 = smul.addr %s280, 4
      %s282 = scalar_lea.vmem %s0, %s281
      %s283 = smul.u32 8, %s21
      %s284 = smul.u32 8, %s21
      %p285 = scmp.lt.s32.totalorder %s20, 1
      %s286 = scalar_select %p285, %s20, 1
      %p287 = scmp.lt.s32.totalorder %s284, 7
      %s288 = scalar_select %p287, %s284, 7
      %p289 = scmp.lt.s32.totalorder %s22, 0
      %s290 = scalar_select %p289, %s22, 0
      %s291 = sadd.s32 %s290, %s288
      %s292 = smul.addr %s286, 8
      %s293 = sadd.s32 %s291, %s292
      %s294 = smul.addr %s293, 4
      %s295 = scalar_lea.vmem %s1, %s294
      %s296 = smul.u32 8, %s21
      %s297 = smul.u32 8, %s21
      %p298 = scmp.lt.s32.totalorder %s20, 1
      %s299 = scalar_select %p298, %s20, 1
      %p300 = scmp.lt.s32.totalorder %s297, 7
      %s301 = scalar_select %p300, %s297, 7
      %p302 = scmp.lt.s32.totalorder %s22, 0
      %s303 = scalar_select %p302, %s22, 0
      %s304 = sadd.s32 %s303, %s301
      %s305 = smul.addr %s299, 8
      %s306 = sadd.s32 %s304, %s305
      %s307 = smul.addr %s306, 4
      %s308 = scalar_lea.vmem %s4, %s307
      %s309 = smul.u32 8, %s21
      %v311 = vld [vmem:[%s282] sm:$0xf]
      %v312 = vld [vmem:[%s282 + $0x4] sm:$0xf]
      %v313 = vld [vmem:[%s282 + $0x8] sm:$0xf]
      %v314 = vld [vmem:[%s282 + $0xc] sm:$0xf]
      %v315 = vld [vmem:[%s282 + $0x10] sm:$0xf]
      %v316 = vld [vmem:[%s282 + $0x14] sm:$0xf]
      %v317 = vld [vmem:[%s282 + $0x18] sm:$0xf]
      %v318 = vld [vmem:[%s282 + $0x1c] sm:$0xf]
      %v319 = vld [vmem:[%s2] sm:$0xf]
      %v320 = vld [vmem:[%s2 + $0x4] sm:$0xf]
      %v321 = vld [vmem:[%s2 + $0x8] sm:$0xf]
      %v322 = vld [vmem:[%s2 + $0xc] sm:$0xf]
      %v323 = vld [vmem:[%s3] sm:$0x1]
      %v325 = vperm.slane %v323, 0
      %v335 = vunpack.c.l.b16 %v311
      %v336 = vunpack.c.l.b16 %v312
      %v337 = vunpack.c.l.b16 %v313
      %v338 = vunpack.c.l.b16 %v314
      %v339 = vunpack.c.l.b16 %v315
      %v340 = vunpack.c.l.b16 %v316
      %v341 = vunpack.c.l.b16 %v317
      %v342 = vunpack.c.l.b16 %v318
      %v343 = vpack.c.b16 %v336, %v335
      %v344 = vpack.c.b16 %v338, %v337
      %v345 = vpack.c.b16 %v340, %v339
      %v346 = vpack.c.b16 %v342, %v341
      %v351 = vunpack.c.l.b16 %v319
      %v352 = vunpack.c.l.b16 %v320
      %v353 = vunpack.c.l.b16 %v321
      %v354 = vunpack.c.l.b16 %v322
      %v355 = vpack.c.b16 %v352, %v351
      %v356 = vpack.c.b16 %v354, %v353
      %vm359 = vcmask 261120
      %v361 = vsel %vm359, %v343, 0
      %v364 = vsel %vm359, %v344, 0
      %v367 = vsel %vm359, %v345, 0
      %v370 = vsel %vm359, %v346, 0
      %372 = vmatpush.bf16.msra.mxu0 0
      %373 = vmatpush.bf16.msra.mxu0 0
      %374 = vmatpush.bf16.msra.mxu0 0
      %375 = vmatpush.bf16.msra.mxu0 0
      %376 = vmatpush.bf16.msra.mxu0 0
      %377 = vmatpush.bf16.msra.mxu0 0
      %378 = vmatpush.bf16.msra.mxu0 %v356
      %379 = vmatpush.bf16.msra.mxu0 %v355
      %380 = vmatmul.bf16.gmra.mxu0 %v361
      %v381 = vpop.f32.mrf.mxu0
      %v382 = vadd.f32 %v325, %v381
      %v383 = vpop.f32.mrf.mxu0
      %v384 = vadd.f32 %v325, %v383
      %385 = vmatmul.bf16.gmra.mxu0 %v364
      %v386 = vpop.f32.mrf.mxu0
      %v387 = vadd.f32 %v325, %v386
      %v388 = vpop.f32.mrf.mxu0
      %v389 = vadd.f32 %v325, %v388
      %390 = vmatmul.bf16.gmra.mxu0 %v367
      %v391 = vpop.f32.mrf.mxu0
      %v392 = vadd.f32 %v325, %v391
      %v393 = vpop.f32.mrf.mxu0
      %v394 = vadd.f32 %v325, %v393
      %395 = vmatmul.bf16.gmra.mxu0 %v370
      %v396 = vpop.f32.mrf.mxu0
      %v397 = vadd.f32 %v325, %v396
      %v398 = vpop.f32.mrf.mxu0
      %v399 = vadd.f32 %v325, %v398
      %400 = vdwg.mxu0
      %v401 = vld [vmem:[%s295] sm:$0xf]
      %v402 = vld [vmem:[%s295 + $0x4] sm:$0xf]
      %v403 = vld [vmem:[%s295 + $0x8] sm:$0xf]
      %v404 = vld [vmem:[%s295 + $0xc] sm:$0xf]
      %v405 = vld [vmem:[%s295 + $0x10] sm:$0xf]
      %v406 = vld [vmem:[%s295 + $0x14] sm:$0xf]
      %v407 = vld [vmem:[%s295 + $0x18] sm:$0xf]
      %v408 = vld [vmem:[%s295 + $0x1c] sm:$0xf]
      %v409 = vunpack.c.l.bf16 %v401
      %v410 = vunpack.c.l.bf16 %v402
      %v411 = vunpack.c.l.bf16 %v403
      %v412 = vunpack.c.l.bf16 %v404
      %v413 = vunpack.c.l.bf16 %v405
      %v414 = vunpack.c.l.bf16 %v406
      %v415 = vunpack.c.l.bf16 %v407
      %v416 = vunpack.c.l.bf16 %v408
      %v417 = vadd.f32 %v382, %v409
      %v418 = vadd.f32 %v384, %v410
      %v419 = vadd.f32 %v387, %v411
      %v420 = vadd.f32 %v389, %v412
      %v421 = vadd.f32 %v392, %v413
      %v422 = vadd.f32 %v394, %v414
      %v423 = vadd.f32 %v397, %v415
      %v424 = vadd.f32 %v399, %v416
      %v425 = vpack.c.bf16 %v417, %v417
      %v426 = vpack.c.bf16 %v418, %v418
      %v427 = vpack.c.bf16 %v419, %v419
      %v428 = vpack.c.bf16 %v420, %v420
      %v429 = vpack.c.bf16 %v421, %v421
      %v430 = vpack.c.bf16 %v422, %v422
      %v431 = vpack.c.bf16 %v423, %v423
      %v432 = vpack.c.bf16 %v424, %v424
      %vm433 = vcmask 257024
      %434 = vst.msk [vmem:[%s308] sm:$0xf] %vm433, %v425
      %435 = vst.msk [vmem:[%s308 + $0x4] sm:$0xf] %vm433, %v426
      %436 = vst.msk [vmem:[%s308 + $0x8] sm:$0xf] %vm433, %v427
      %437 = vst.msk [vmem:[%s308 + $0xc] sm:$0xf] %vm433, %v428
      %438 = vst.msk [vmem:[%s308 + $0x10] sm:$0xf] %vm433, %v429
      %439 = vst.msk [vmem:[%s308 + $0x14] sm:$0xf] %vm433, %v430
      %440 = vst.msk [vmem:[%s308 + $0x18] sm:$0xf] %vm433, %v431
      %441 = vst.msk [vmem:[%s308 + $0x1c] sm:$0xf] %vm433, %v432
      %s442 = smul.u32 8, %s21
      %p443 = scmp.lt.s32.totalorder %s20, 1
      %s444 = scalar_select %p443, %s20, 1
      %p445 = scmp.lt.s32.totalorder %s442, 7
      %s446 = scalar_select %p445, %s442, 7
      %p447 = scmp.lt.s32.totalorder %s22, 0
      %s448 = scalar_select %p447, %s22, 0
      %s449 = sadd.s32 %s448, %s446
      %s450 = smul.addr %s444, 8
      %s451 = sadd.s32 %s449, %s450
      %s452 = smul.addr %s451, 4
      %s453 = scalar_lea.vmem %s4, %s452
      // Predicated region
      $region37: #{melnet_tier_forward.17} parent=35 // pred_check
        %p454 = pneg %p158
      $region38: #{melnet_tier_forward.17} parent=35 // pred_check_branch
        %456 = sbr.rel (%p454) target = $region40
      $region39: #{melnet_tier_forward.17} parent=35 // pred_region
        %s457 = smul.u32 8, %s21
      $region40: #{melnet_tier_forward.17} parent=35 // pred_fallthru
        _
    $region36: #{melnet_tier_forward.17} parent=5 // pred_fallthru
      _
    %p458 = scmp.le.s32.totalorder 2, %s10
    // Predicated region
    $region41: #{melnet_tier_forward.17} parent=5 // pred_check
      %p459 = pneg %p458
    $region42: #{melnet_tier_forward.17} parent=5 // pred_check_branch
      %461 = sbr.rel (%p459) target = $region44
    $region43: #{melnet_tier_forward.17} parent=5 // pred_region
      %s462 = ssub.s32 %s10, 2
      // Predicated region
      $region45: #{melnet_tier_forward.17} parent=43 // pred_check
        %p463 = pneg %p164
      $region46: #{melnet_tier_forward.17} parent=43 // pred_check_branch
        %465 = sbr.rel (%p463) target = $region48
      $region47: #{melnet_tier_forward.17} parent=43 // pred_region
        %s466 = smul.u32 8, %s24
        %p467 = scmp.lt.s32.totalorder %s23, 1
        %s468 = scalar_select %p467, %s23, 1
        %p469 = scmp.lt.s32.totalorder %s466, 7
        %s470 = scalar_select %p469, %s466, 7
        %p471 = scmp.lt.s32.totalorder %s25, 0
        %s472 = scalar_select %p471, %s25, 0
        %s473 = sadd.s32 %s472, %s470
        %s474 = smul.addr %s468, 8
        %s475 = sadd.s32 %s473, %s474
        %s476 = smul.addr %s475, 4
        %s477 = scalar_lea.vmem %s4, %s476
      $region48: #{melnet_tier_forward.17} parent=43 // pred_fallthru
        _
    $region44: #{melnet_tier_forward.17} parent=5 // pred_fallthru
      _
  $region6: #{melnet_tier_forward.17} parent=0 // loop_footer
    %s14 = sadd.s32 1, %s10
  $region7: #{melnet_tier_forward.17} parent=0 // loop_footer_branch
    %9 = sbr.rel target = $region3
  $region8: #{melnet_tier_forward.17} parent=0 // loop_exit
    _

// kernel: melnet_tier_forward.23
$region0: #{melnet_tier_forward.23}
  #allocation0 [shape = 'u32[]', space=smem, size = 0x4, offset = 0x4, fixed_abs, tag = 'smem constant byte address 0x4 - core index']
  #allocation1 [shape = 'u32[72,128]{1,0:T(1,128)}', space=vmem, size = 0x9000, scoped, tag = 'internal scratch']
  %s0 = inlined_call_operand.vmem [shape: bf16[16,8,32], index: 0, kind: input, shape index: {}]
  %s1 = inlined_call_operand.vmem [shape: bf16[16,8,32], index: 1, kind: input, shape index: {}]
  %s2 = inlined_call_operand.vmem [shape: f32[16,8], index: 2, kind: input, shape index: {}]
  %s3 = inlined_call_operand.vmem [shape: bf16[32,30], index: 3, kind: input, shape index: {}]
  %s4 = inlined_call_operand.vmem [shape: bf16[32,30], index: 4, kind: input, shape index: {}]
  %s5 = inlined_call_operand.vmem [shape: f32[1,30], index: 5, kind: input, shape index: {}]
  %s6 = inlined_call_operand.vmem [shape: f32[16,8], index: 6, kind: output, shape index: {}]
  %s7 = sld [smem:[#allocation0]]
  $region34: #{melnet_tier_forward.23} parent=0
    _
  %s9 = ssub.s32 1, %s7
  %s10 = scalar_select 0, %s9, %s7
  // Predicated region
  $region2: #{melnet_tier_forward.23} parent=0 // pred_check
    _
  $region3: #{melnet_tier_forward.23} parent=0 // pred_check_branch
    %12 = sbr.rel (0) target = $region5
  $region4: #{melnet_tier_forward.23} parent=0 // pred_region
    _
  $region5: #{melnet_tier_forward.23} parent=0 // pred_fallthru
    _
  // Predicated region
  $region6: #{melnet_tier_forward.23} parent=0 // pred_check
    _
  $region7: #{melnet_tier_forward.23} parent=0 // pred_check_branch
    %14 = sbr.rel (0) target = $region9
  $region8: #{melnet_tier_forward.23} parent=0 // pred_region
    _
  $region9: #{melnet_tier_forward.23} parent=0 // pred_fallthru
    _
  // Predicated region
  $region10: #{melnet_tier_forward.23} parent=0 // pred_check
    _
  $region11: #{melnet_tier_forward.23} parent=0 // pred_check_branch
    %16 = sbr.rel (0) target = $region13
  $region12: #{melnet_tier_forward.23} parent=0 // pred_region
    _
  $region13: #{melnet_tier_forward.23} parent=0 // pred_fallthru
    _
  // Predicated region
  $region14: #{melnet_tier_forward.23} parent=0 // pred_check
    _
  $region15: #{melnet_tier_forward.23} parent=0 // pred_check_branch
    %18 = sbr.rel (0) target = $region17
  $region16: #{melnet_tier_forward.23} parent=0 // pred_region
    _
  $region17: #{melnet_tier_forward.23} parent=0 // pred_fallthru
    _
  // Predicated region
  $region18: #{melnet_tier_forward.23} parent=0 // pred_check
    _
  $region19: #{melnet_tier_forward.23} parent=0 // pred_check_branch
    %20 = sbr.rel (0) target = $region21
  $region20: #{melnet_tier_forward.23} parent=0 // pred_region
    _
  $region21: #{melnet_tier_forward.23} parent=0 // pred_fallthru
    _
  // Predicated region
  $region22: #{melnet_tier_forward.23} parent=0 // pred_check
    _
  $region23: #{melnet_tier_forward.23} parent=0 // pred_check_branch
    %22 = sbr.rel (0) target = $region25
  $region24: #{melnet_tier_forward.23} parent=0 // pred_region
    _
  $region25: #{melnet_tier_forward.23} parent=0 // pred_fallthru
    _
  %v24 = vld [vmem:[%s0] sm:$0xf]
  %v25 = vld [vmem:[%s0 + $0x4] sm:$0xf]
  %v26 = vld [vmem:[%s0 + $0x8] sm:$0xf]
  %v27 = vld [vmem:[%s0 + $0xc] sm:$0xf]
  %v28 = vld [vmem:[%s0 + $0x10] sm:$0xf]
  %v29 = vld [vmem:[%s0 + $0x14] sm:$0xf]
  %v30 = vld [vmem:[%s0 + $0x18] sm:$0xf]
  %v31 = vld [vmem:[%s0 + $0x1c] sm:$0xf]
  %v32 = vld [vmem:[%s0 + $0x20] sm:$0xf]
  %v33 = vld [vmem:[%s0 + $0x24] sm:$0xf]
  %v34 = vld [vmem:[%s0 + $0x28] sm:$0xf]
  %v35 = vld [vmem:[%s0 + $0x2c] sm:$0xf]
  %v36 = vld [vmem:[%s0 + $0x30] sm:$0xf]
  %v37 = vld [vmem:[%s0 + $0x34] sm:$0xf]
  %v38 = vld [vmem:[%s0 + $0x38] sm:$0xf]
  %v39 = vld [vmem:[%s0 + $0x3c] sm:$0xf]
  %v40 = vld [vmem:[%s1] sm:$0xf]
  %v41 = vld [vmem:[%s1 + $0x4] sm:$0xf]
  %v42 = vld [vmem:[%s1 + $0x8] sm:$0xf]
  %v43 = vld [vmem:[%s1 + $0xc] sm:$0xf]
  %v44 = vld [vmem:[%s1 + $0x10] sm:$0xf]
  %v45 = vld [vmem:[%s1 + $0x14] sm:$0xf]
  %v46 = vld [vmem:[%s1 + $0x18] sm:$0xf]
  %v47 = vld [vmem:[%s1 + $0x1c] sm:$0xf]
  %v48 = vld [vmem:[%s1 + $0x20] sm:$0xf]
  %v49 = vld [vmem:[%s1 + $0x24] sm:$0xf]
  %v50 = vld [vmem:[%s1 + $0x28] sm:$0xf]
  %v51 = vld [vmem:[%s1 + $0x2c] sm:$0xf]
  %v52 = vld [vmem:[%s1 + $0x30] sm:$0xf]
  %v53 = vld [vmem:[%s1 + $0x34] sm:$0xf]
  %v54 = vld [vmem:[%s1 + $0x38] sm:$0xf]
  %v55 = vld [vmem:[%s1 + $0x3c] sm:$0xf]
  %v56 = vld [vmem:[%s3] sm:$0xf]
  %v57 = vld [vmem:[%s3 + $0x4] sm:$0xf]
  %v58 = vld [vmem:[%s3 + $0x8] sm:$0xf]
  %v59 = vld [vmem:[%s3 + $0xc] sm:$0xf]
  %v60 = vld [vmem:[%s4] sm:$0xf]
  %v61 = vld [vmem:[%s4 + $0x4] sm:$0xf]
  %v62 = vld [vmem:[%s4 + $0x8] sm:$0xf]
  %v63 = vld [vmem:[%s4 + $0xc] sm:$0xf]
  %v80 = vunpack.c.l.b16 %v40
  %v81 = vunpack.c.l.b16 %v41
  %v82 = vunpack.c.l.b16 %v42
  %v83 = vunpack.c.l.b16 %v43
  %v84 = vunpack.c.l.b16 %v44
  %v85 = vunpack.c.l.b16 %v45
  %v86 = vunpack.c.l.b16 %v46
  %v87 = vunpack.c.l.b16 %v47
  %v88 = vunpack.c.l.b16 %v48
  %v89 = vunpack.c.l.b16 %v49
  %v90 = vunpack.c.l.b16 %v50
  %v91 = vunpack.c.l.b16 %v51
  %v92 = vunpack.c.l.b16 %v52
  %v93 = vunpack.c.l.b16 %v53
  %v94 = vunpack.c.l.b16 %v54
  %v95 = vunpack.c.l.b16 %v55
  %v96 = vpack.c.b16 %v81, %v80
  %v97 = vpack.c.b16 %v83, %v82
  %v98 = vpack.c.b16 %v85, %v84
  %v99 = vpack.c.b16 %v87, %v86
  %v100 = vpack.c.b16 %v89, %v88
  %v101 = vpack.c.b16 %v91, %v90
  %v102 = vpack.c.b16 %v93, %v92
  %v103 = vpack.c.b16 %v95, %v94
  %v108 = vunpack.c.l.b16 %v60
  %v109 = vunpack.c.l.b16 %v61
  %v110 = vunpack.c.l.b16 %v62
  %v111 = vunpack.c.l.b16 %v63
  %v112 = vpack.c.b16 %v109, %v108
  %v113 = vpack.c.b16 %v111, %v110
  %vm116 = vcmask 261120
  %v118 = vsel %vm116, %v96, 0
  %v121 = vsel %vm116, %v97, 0
  %v124 = vsel %vm116, %v98, 0
  %v127 = vsel %vm116, %v99, 0
  %v130 = vsel %vm116, %v100, 0
  %v133 = vsel %vm116, %v101, 0
  %v136 = vsel %vm116, %v102, 0
  %v139 = vsel %vm116, %v103, 0
  %141 = vmatpush.bf16.msra.mxu0 0
  %142 = vmatpush.bf16.msra.mxu0 0
  %143 = vmatpush.bf16.msra.mxu0 0
  %144 = vmatpush.bf16.msra.mxu0 0
  %145 = vmatpush.bf16.msra.mxu0 0
  %146 = vmatpush.bf16.msra.mxu0 0
  %147 = vmatpush.bf16.msra.mxu0 %v113
  %148 = vmatpush.bf16.msra.mxu0 %v112
  %149 = vmatmul.bf16.gmra.mxu0 %v118
  %v150 = vpop.f32.mrf.mxu0
  %v151 = vadd.f32 0.0, %v150
  %v152 = vpop.f32.mrf.mxu0
  %v153 = vadd.f32 0.0, %v152
  %154 = vmatmul.bf16.gmra.mxu0 %v121
  %v155 = vpop.f32.mrf.mxu0
  %v156 = vadd.f32 0.0, %v155
  %v157 = vpop.f32.mrf.mxu0
  %v158 = vadd.f32 0.0, %v157
  %159 = vmatmul.bf16.gmra.mxu0 %v124
  %v160 = vpop.f32.mrf.mxu0
  %v161 = vadd.f32 0.0, %v160
  %v162 = vpop.f32.mrf.mxu0
  %v163 = vadd.f32 0.0, %v162
  %164 = vmatmul.bf16.gmra.mxu0 %v127
  %v165 = vpop.f32.mrf.mxu0
  %v166 = vadd.f32 0.0, %v165
  %v167 = vpop.f32.mrf.mxu0
  %v168 = vadd.f32 0.0, %v167
  %169 = vmatmul.bf16.gmra.mxu0 %v130
  %v170 = vpop.f32.mrf.mxu0
  %v171 = vadd.f32 0.0, %v170
  %v172 = vpop.f32.mrf.mxu0
  %v173 = vadd.f32 0.0, %v172
  %174 = vmatmul.bf16.gmra.mxu0 %v133
  %v175 = vpop.f32.mrf.mxu0
  %v176 = vadd.f32 0.0, %v175
  %v177 = vpop.f32.mrf.mxu0
  %v178 = vadd.f32 0.0, %v177
  %179 = vmatmul.bf16.gmra.mxu0 %v136
  %v180 = vpop.f32.mrf.mxu0
  %v181 = vadd.f32 0.0, %v180
  %v182 = vpop.f32.mrf.mxu0
  %v183 = vadd.f32 0.0, %v182
  %184 = vmatmul.bf16.gmra.mxu0 %v139
  %v185 = vpop.f32.mrf.mxu0
  %v186 = vadd.f32 0.0, %v185
  %v187 = vpop.f32.mrf.mxu0
  %v188 = vadd.f32 0.0, %v187
  %189 = vdwg.mxu0
  %v206 = vunpack.c.l.b16 %v24
  %v207 = vunpack.c.l.b16 %v25
  %v208 = vunpack.c.l.b16 %v26
  %v209 = vunpack.c.l.b16 %v27
  %v210 = vunpack.c.l.b16 %v28
  %v211 = vunpack.c.l.b16 %v29
  %v212 = vunpack.c.l.b16 %v30
  %v213 = vunpack.c.l.b16 %v31
  %v214 = vunpack.c.l.b16 %v32
  %v215 = vunpack.c.l.b16 %v33
  %v216 = vunpack.c.l.b16 %v34
  %v217 = vunpack.c.l.b16 %v35
  %v218 = vunpack.c.l.b16 %v36
  %v219 = vunpack.c.l.b16 %v37
  %v220 = vunpack.c.l.b16 %v38
  %v221 = vunpack.c.l.b16 %v39
  %v222 = vpack.c.b16 %v207, %v206
  %v223 = vpack.c.b16 %v209, %v208
  %v224 = vpack.c.b16 %v211, %v210
  %v225 = vpack.c.b16 %v213, %v212
  %v226 = vpack.c.b16 %v215, %v214
  %v227 = vpack.c.b16 %v217, %v216
  %v228 = vpack.c.b16 %v219, %v218
  %v229 = vpack.c.b16 %v221, %v220
  %v234 = vunpack.c.l.b16 %v56
  %v235 = vunpack.c.l.b16 %v57
  %v236 = vunpack.c.l.b16 %v58
  %v237 = vunpack.c.l.b16 %v59
  %v238 = vpack.c.b16 %v235, %v234
  %v239 = vpack.c.b16 %v237, %v236
  %v243 = vsel %vm116, %v222, 0
  %v246 = vsel %vm116, %v223, 0
  %v249 = vsel %vm116, %v224, 0
  %v252 = vsel %vm116, %v225, 0
  %v255 = vsel %vm116, %v226, 0
  %v258 = vsel %vm116, %v227, 0
  %v261 = vsel %vm116, %v228, 0
  %v264 = vsel %vm116, %v229, 0
  %266 = vmatpush.bf16.msra.mxu0 0
  %267 = vmatpush.bf16.msra.mxu0 0
  %268 = vmatpush.bf16.msra.mxu0 0
  %269 = vmatpush.bf16.msra.mxu0 0
  %270 = vmatpush.bf16.msra.mxu0 0
  %271 = vmatpush.bf16.msra.mxu0 0
  %272 = vmatpush.bf16.msra.mxu0 %v239
  %273 = vmatpush.bf16.msra.mxu0 %v238
  %274 = vmatmul.bf16.gmra.mxu0 %v243
  %v275 = vpop.f32.mrf.mxu0
  %v276 = vadd.f32 %v151, %v275
  %v277 = vpop.f32.mrf.mxu0
  %v278 = vadd.f32 %v153, %v277
  %279 = vmatmul.bf16.gmra.mxu0 %v246
  %v280 = vpop.f32.mrf.mxu0
  %v281 = vadd.f32 %v156, %v280
  %v282 = vpop.f32.mrf.mxu0
  %v283 = vadd.f32 %v158, %v282
  %284 = vmatmul.bf16.gmra.mxu0 %v249
  %v285 = vpop.f32.mrf.mxu0
  %v286 = vadd.f32 %v161, %v285
  %v287 = vpop.f32.mrf.mxu0
  %v288 = vadd.f32 %v163, %v287
  %289 = vmatmul.bf16.gmra.mxu0 %v252
  %v290 = vpop.f32.mrf.mxu0
  %v291 = vadd.f32 %v166, %v290
  %v292 = vpop.f32.mrf.mxu0
  %v293 = vadd.f32 %v168, %v292
  %294 = vmatmul.bf16.gmra.mxu0 %v255
  %v295 = vpop.f32.mrf.mxu0
  %v296 = vadd.f32 %v171, %v295
  %v297 = vpop.f32.mrf.mxu0
  %v298 = vadd.f32 %v173, %v297
  %299 = vmatmul.bf16.gmra.mxu0 %v258
  %v300 = vpop.f32.mrf.mxu0
  %v301 = vadd.f32 %v176, %v300
  %v302 = vpop.f32.mrf.mxu0
  %v303 = vadd.f32 %v178, %v302
  %304 = vmatmul.bf16.gmra.mxu0 %v261
  %v305 = vpop.f32.mrf.mxu0
  %v306 = vadd.f32 %v181, %v305
  %v307 = vpop.f32.mrf.mxu0
  %v308 = vadd.f32 %v183, %v307
  %309 = vmatmul.bf16.gmra.mxu0 %v264
  %v310 = vpop.f32.mrf.mxu0
  %v311 = vadd.f32 %v186, %v310
  %v312 = vpop.f32.mrf.mxu0
  %v313 = vadd.f32 %v188, %v312
  %314 = vdwg.mxu0
  %v315 = vld [vmem:[%s5] sm:$0x1]
  %v317 = vperm.slane %v315, 0
  %v319 = vadd.f32 %v276, %v317
  %v320 = vadd.f32 %v278, %v317
  %v321 = vadd.f32 %v281, %v317
  %v322 = vadd.f32 %v283, %v317
  %v323 = vadd.f32 %v286, %v317
  %v324 = vadd.f32 %v288, %v317
  %v325 = vadd.f32 %v291, %v317
  %v326 = vadd.f32 %v293, %v317
  %v327 = vadd.f32 %v296, %v317
  %v328 = vadd.f32 %v298, %v317
  %v329 = vadd.f32 %v301, %v317
  %v330 = vadd.f32 %v303, %v317
  %v331 = vadd.f32 %v306, %v317
  %v332 = vadd.f32 %v308, %v317
  %v333 = vadd.f32 %v311, %v317
  %v334 = vadd.f32 %v313, %v317
  %v335 = vmul.f32 %v319, %v319
  %v336 = vmul.f32 %v320, %v320
  %v337 = vmul.f32 %v321, %v321
  %v338 = vmul.f32 %v322, %v322
  %v339 = vmul.f32 %v323, %v323
  %v340 = vmul.f32 %v324, %v324
  %v341 = vmul.f32 %v325, %v325
  %v342 = vmul.f32 %v326, %v326
  %v343 = vmul.f32 %v327, %v327
  %v344 = vmul.f32 %v328, %v328
  %v345 = vmul.f32 %v329, %v329
  %v346 = vmul.f32 %v330, %v330
  %v347 = vmul.f32 %v331, %v331
  %v348 = vmul.f32 %v332, %v332
  %v349 = vmul.f32 %v333, %v333
  %v350 = vmul.f32 %v334, %v334
  %367 = vrot.lane.b32.xlu0 %v335, 118
  %v368 = vpop.permute.xlu0 %367
  %369 = vrot.lane.b32.xlu0 %v336, 118
  %v370 = vpop.permute.xlu0 %369
  %371 = vrot.lane.b32.xlu0 %v337, 118
  %v372 = vpop.permute.xlu0 %371
  %373 = vrot.lane.b32.xlu0 %v338, 118
  %v374 = vpop.permute.xlu0 %373
  %375 = vrot.lane.b32.xlu0 %v339, 118
  %v376 = vpop.permute.xlu0 %375
  %377 = vrot.lane.b32.xlu0 %v340, 118
  %v378 = vpop.permute.xlu0 %377
  %379 = vrot.lane.b32.xlu0 %v341, 118
  %v380 = vpop.permute.xlu0 %379
  %381 = vrot.lane.b32.xlu0 %v342, 118
  %v382 = vpop.permute.xlu0 %381
  %383 = vrot.lane.b32.xlu0 %v343, 118
  %v384 = vpop.permute.xlu0 %383
  %385 = vrot.lane.b32.xlu0 %v344, 118
  %v386 = vpop.permute.xlu0 %385
  %387 = vrot.lane.b32.xlu0 %v345, 118
  %v388 = vpop.permute.xlu0 %387
  %389 = vrot.lane.b32.xlu0 %v346, 118
  %v390 = vpop.permute.xlu0 %389
  %391 = vrot.lane.b32.xlu0 %v347, 118
  %v392 = vpop.permute.xlu0 %391
  %393 = vrot.lane.b32.xlu0 %v348, 118
  %v394 = vpop.permute.xlu0 %393
  %395 = vrot.lane.b32.xlu0 %v349, 118
  %v396 = vpop.permute.xlu0 %395
  %397 = vrot.lane.b32.xlu0 %v350, 118
  %v398 = vpop.permute.xlu0 %397
  %vm415 = vcmask 80896
  %v416 = vsel %vm415, %v368, 0.0
  %417 = vadd.xlane.f32.xlu0 %v416
  %v418 = vpop.xlane.xlu0 %417
  %v419 = vsel %vm415, %v370, 0.0
  %420 = vadd.xlane.f32.xlu0 %v419
  %v421 = vpop.xlane.xlu0 %420
  %v422 = vsel %vm415, %v372, 0.0
  %423 = vadd.xlane.f32.xlu0 %v422
  %v424 = vpop.xlane.xlu0 %423
  %v425 = vsel %vm415, %v374, 0.0
  %426 = vadd.xlane.f32.xlu0 %v425
  %v427 = vpop.xlane.xlu0 %426
  %v428 = vsel %vm415, %v376, 0.0
  %429 = vadd.xlane.f32.xlu0 %v428
  %v430 = vpop.xlane.xlu0 %429
  %v431 = vsel %vm415, %v378, 0.0
  %432 = vadd.xlane.f32.xlu0 %v431
  %v433 = vpop.xlane.xlu0 %432
  %v434 = vsel %vm415, %v380, 0.0
  %435 = vadd.xlane.f32.xlu0 %v434
  %v436 = vpop.xlane.xlu0 %435
  %v437 = vsel %vm415, %v382, 0.0
  %438 = vadd.xlane.f32.xlu0 %v437
  %v439 = vpop.xlane.xlu0 %438
  %v440 = vsel %vm415, %v384, 0.0
  %441 = vadd.xlane.f32.xlu0 %v440
  %v442 = vpop.xlane.xlu0 %441
  %v443 = vsel %vm415, %v386, 0.0
  %444 = vadd.xlane.f32.xlu0 %v443
  %v445 = vpop.xlane.xlu0 %444
  %v446 = vsel %vm415, %v388, 0.0
  %447 = vadd.xlane.f32.xlu0 %v446
  %v448 = vpop.xlane.xlu0 %447
  %v449 = vsel %vm415, %v390, 0.0
  %450 = vadd.xlane.f32.xlu0 %v449
  %v451 = vpop.xlane.xlu0 %450
  %v452 = vsel %vm415, %v392, 0.0
  %453 = vadd.xlane.f32.xlu0 %v452
  %v454 = vpop.xlane.xlu0 %453
  %v455 = vsel %vm415, %v394, 0.0
  %456 = vadd.xlane.f32.xlu0 %v455
  %v457 = vpop.xlane.xlu0 %456
  %v458 = vsel %vm415, %v396, 0.0
  %459 = vadd.xlane.f32.xlu0 %v458
  %v460 = vpop.xlane.xlu0 %459
  %v461 = vsel %vm415, %v398, 0.0
  %462 = vadd.xlane.f32.xlu0 %v461
  %v463 = vpop.xlane.xlu0 %462
  %v464 = vadd.f32 %v418, 1e-12
  %v465 = vadd.f32 %v421, 1e-12
  %v466 = vadd.f32 %v424, 1e-12
  %v467 = vadd.f32 %v427, 1e-12
  %v468 = vadd.f32 %v430, 1e-12
  %v469 = vadd.f32 %v433, 1e-12
  %v470 = vadd.f32 %v436, 1e-12
  %v471 = vadd.f32 %v439, 1e-12
  %v472 = vadd.f32 %v442, 1e-12
  %v473 = vadd.f32 %v445, 1e-12
  %v474 = vadd.f32 %v448, 1e-12
  %v475 = vadd.f32 %v451, 1e-12
  %v476 = vadd.f32 %v454, 1e-12
  %v477 = vadd.f32 %v457, 1e-12
  %v478 = vadd.f32 %v460, 1e-12
  %v479 = vadd.f32 %v463, 1e-12
  %v480 = vrsqrt.pop %v464
  %v481 = vmul.f32 %v480, %v464
  %v482 = vmul.f32 %v481, %v480
  %v483 = vmul.f32 0.5, %v482
  %v484 = vsub.f32 1.5, %v483
  %v485 = vmul.f32 %v480, %v484
  %vm486 = vweird.f32 %v464
  %vm487 = vweird.f32 %v480
  %vm488 = vmor %vm486, %vm487
  %v489 = vsel %vm488, %v480, %v485
  %v490 = vrsqrt.pop %v465
  %v491 = vmul.f32 %v490, %v465
  %v492 = vmul.f32 %v491, %v490
  %v493 = vmul.f32 0.5, %v492
  %v494 = vsub.f32 1.5, %v493
  %v495 = vmul.f32 %v490, %v494
  %vm496 = vweird.f32 %v465
  %vm497 = vweird.f32 %v490
  %vm498 = vmor %vm496, %vm497
  %v499 = vsel %vm498, %v490, %v495
  %v500 = vrsqrt.pop %v466
  %v501 = vmul.f32 %v500, %v466
  %v502 = vmul.f32 %v501, %v500
  %v503 = vmul.f32 0.5, %v502
  %v504 = vsub.f32 1.5, %v503
  %v505 = vmul.f32 %v500, %v504
  %vm506 = vweird.f32 %v466
  %vm507 = vweird.f32 %v500
  %vm508 = vmor %vm506, %vm507
  %v509 = vsel %vm508, %v500, %v505
  %v510 = vrsqrt.pop %v467
  %v511 = vmul.f32 %v510, %v467
  %v512 = vmul.f32 %v511, %v510
  %v513 = vmul.f32 0.5, %v512
  %v514 = vsub.f32 1.5, %v513
  %v515 = vmul.f32 %v510, %v514
  %vm516 = vweird.f32 %v467
  %vm517 = vweird.f32 %v510
  %vm518 = vmor %vm516, %vm517
  %v519 = vsel %vm518, %v510, %v515
  %v520 = vrsqrt.pop %v468
  %v521 = vmul.f32 %v520, %v468
  %v522 = vmul.f32 %v521, %v520
  %v523 = vmul.f32 0.5, %v522
  %v524 = vsub.f32 1.5, %v523
  %v525 = vmul.f32 %v520, %v524
  %vm526 = vweird.f32 %v468
  %vm527 = vweird.f32 %v520
  %vm528 = vmor %vm526, %vm527
  %v529 = vsel %vm528, %v520, %v525
  %v530 = vrsqrt.pop %v469
  %v531 = vmul.f32 %v530, %v469
  %v532 = vmul.f32 %v531, %v530
  %v533 = vmul.f32 0.5, %v532
  %v534 = vsub.f32 1.5, %v533
  %v535 = vmul.f32 %v530, %v534
  %vm536 = vweird.f32 %v469
  %vm537 = vweird.f32 %v530
  %vm538 = vmor %vm536, %vm537
  %v539 = vsel %vm538, %v530, %v535
  %v540 = vrsqrt.pop %v470
  %v541 = vmul.f32 %v540, %v470
  %v542 = vmul.f32 %v541, %v540
  %v543 = vmul.f32 0.5, %v542
  %v544 = vsub.f32 1.5, %v543
  %v545 = vmul.f32 %v540, %v544
  %vm546 = vweird.f32 %v470
  %vm547 = vweird.f32 %v540
  %vm548 = vmor %vm546, %vm547
  %v549 = vsel %vm548, %v540, %v545
  %v550 = vrsqrt.pop %v471
  %v551 = vmul.f32 %v550, %v471
  %v552 = vmul.f32 %v551, %v550
  %v553 = vmul.f32 0.5, %v552
  %v554 = vsub.f32 1.5, %v553
  %v555 = vmul.f32 %v550, %v554
  %vm556 = vweird.f32 %v471
  %vm557 = vweird.f32 %v550
  %vm558 = vmor %vm556, %vm557
  %v559 = vsel %vm558, %v550, %v555
  %v560 = vrsqrt.pop %v472
  %v561 = vmul.f32 %v560, %v472
  %v562 = vmul.f32 %v561, %v560
  %v563 = vmul.f32 0.5, %v562
  %v564 = vsub.f32 1.5, %v563
  %v565 = vmul.f32 %v560, %v564
  %vm566 = vweird.f32 %v472
  %vm567 = vweird.f32 %v560
  %vm568 = vmor %vm566, %vm567
  %v569 = vsel %vm568, %v560, %v565
  %v570 = vrsqrt.pop %v473
  %v571 = vmul.f32 %v570, %v473
  %v572 = vmul.f32 %v571, %v570
  %v573 = vmul.f32 0.5, %v572
  %v574 = vsub.f32 1.5, %v573
  %v575 = vmul.f32 %v570, %v574
  %vm576 = vweird.f32 %v473
  %vm577 = vweird.f32 %v570
  %vm578 = vmor %vm576, %vm577
  %v579 = vsel %vm578, %v570, %v575
  %v580 = vrsqrt.pop %v474
  %v581 = vmul.f32 %v580, %v474
  %v582 = vmul.f32 %v581, %v580
  %v583 = vmul.f32 0.5, %v582
  %v584 = vsub.f32 1.5, %v583
  %v585 = vmul.f32 %v580, %v584
  %vm586 = vweird.f32 %v474
  %vm587 = vweird.f32 %v580
  %vm588 = vmor %vm586, %vm587
  %v589 = vsel %vm588, %v580, %v585
  %v590 = vrsqrt.pop %v475
  %v591 = vmul.f32 %v590, %v475
  %v592 = vmul.f32 %v591, %v590
  %v593 = vmul.f32 0.5, %v592
  %v594 = vsub.f32 1.5, %v593
  %v595 = vmul.f32 %v590, %v594
  %vm596 = vweird.f32 %v475
  %vm597 = vweird.f32 %v590
  %vm598 = vmor %vm596, %vm597
  %v599 = vsel %vm598, %v590, %v595
  %v600 = vrsqrt.pop %v476
  %v601 = vmul.f32 %v600, %v476
  %v602 = vmul.f32 %v601, %v600
  %v603 = vmul.f32 0.5, %v602
  %v604 = vsub.f32 1.5, %v603
  %v605 = vmul.f32 %v600, %v604
  %vm606 = vweird.f32 %v476
  %vm607 = vweird.f32 %v600
  %vm608 = vmor %vm606, %vm607
  %v609 = vsel %vm608, %v600, %v605
  %v610 = vrsqrt.pop %v477
  %v611 = vmul.f32 %v610, %v477
  %v612 = vmul.f32 %v611, %v610
  %v613 = vmul.f32 0.5, %v612
  %v614 = vsub.f32 1.5, %v613
  %v615 = vmul.f32 %v610, %v614
  %vm616 = vweird.f32 %v477
  %vm617 = vweird.f32 %v610
  %vm618 = vmor %vm616, %vm617
  %v619 = vsel %vm618, %v610, %v615
  %v620 = vrsqrt.pop %v478
  %v621 = vmul.f32 %v620, %v478
  %v622 = vmul.f32 %v621, %v620
  %v623 = vmul.f32 0.5, %v622
  %v624 = vsub.f32 1.5, %v623
  %v625 = vmul.f32 %v620, %v624
  %vm626 = vweird.f32 %v478
  %vm627 = vweird.f32 %v620
  %vm628 = vmor %vm626, %vm627
  %v629 = vsel %vm628, %v620, %v625
  %v630 = vrsqrt.pop %v479
  %v631 = vmul.f32 %v630, %v479
  %v632 = vmul.f32 %v631, %v630
  %v633 = vmul.f32 0.5, %v632
  %v634 = vsub.f32 1.5, %v633
  %v635 = vmul.f32 %v630, %v634
  %vm636 = vweird.f32 %v479
  %vm637 = vweird.f32 %v630
  %vm638 = vmor %vm636, %vm637
  %v639 = vsel %vm638, %v630, %v635
  %v640 = vmul.f32 %v319, %v489
  %v641 = vmul.f32 %v320, %v499
  %v642 = vmul.f32 %v321, %v509
  %v643 = vmul.f32 %v322, %v519
  %v644 = vmul.f32 %v323, %v529
  %v645 = vmul.f32 %v324, %v539
  %v646 = vmul.f32 %v325, %v549
  %v647 = vmul.f32 %v326, %v559
  %v648 = vmul.f32 %v327, %v569
  %v649 = vmul.f32 %v328, %v579
  %v650 = vmul.f32 %v329, %v589
  %v651 = vmul.f32 %v330, %v599
  %v652 = vmul.f32 %v331, %v609
  %v653 = vmul.f32 %v332, %v619
  %v654 = vmul.f32 %v333, %v629
  %v655 = vmul.f32 %v334, %v639
  %v656 = vmul.f32 %v640, 0.1
  %v657 = vmul.f32 %v641, 0.1
  %v658 = vmul.f32 %v642, 0.1
  %v659 = vmul.f32 %v643, 0.1
  %v660 = vmul.f32 %v644, 0.1
  %v661 = vmul.f32 %v645, 0.1
  %v662 = vmul.f32 %v646, 0.1
  %v663 = vmul.f32 %v647, 0.1
  %v664 = vmul.f32 %v648, 0.1
  %v665 = vmul.f32 %v649, 0.1
  %v666 = vmul.f32 %v650, 0.1
  %v667 = vmul.f32 %v651, 0.1
  %v668 = vmul.f32 %v652, 0.1
  %v669 = vmul.f32 %v653, 0.1
  %v670 = vmul.f32 %v654, 0.1
  %v671 = vmul.f32 %v655, 0.1
  %v672 = vmul.f32 %v656, 1.442695
  %v673 = vpow.pop %v672
  %v674 = vmul.f32 %v657, 1.442695
  %v675 = vpow.pop %v674
  %v676 = vmul.f32 %v658, 1.442695
  %v677 = vpow.pop %v676
  %v678 = vmul.f32 %v659, 1.442695
  %v679 = vpow.pop %v678
  %v680 = vmul.f32 %v660, 1.442695
  %v681 = vpow.pop %v680
  %v682 = vmul.f32 %v661, 1.442695
  %v683 = vpow.pop %v682
  %v684 = vmul.f32 %v662, 1.442695
  %v685 = vpow.pop %v684
  %v686 = vmul.f32 %v663, 1.442695
  %v687 = vpow.pop %v686
  %v688 = vmul.f32 %v664, 1.442695
  %v689 = vpow.pop %v688
  %v690 = vmul.f32 %v665, 1.442695
  %v691 = vpow.pop %v690
  %v692 = vmul.f32 %v666, 1.442695
  %v693 = vpow.pop %v692
  %v694 = vmul.f32 %v667, 1.442695
  %v695 = vpow.pop %v694
  %v696 = vmul.f32 %v668, 1.442695
  %v697 = vpow.pop %v696
  %v698 = vmul.f32 %v669, 1.442695
  %v699 = vpow.pop %v698
  %v700 = vmul.f32 %v670, 1.442695
  %v701 = vpow.pop %v700
  %v702 = vmul.f32 %v671, 1.442695
  %v703 = vpow.pop %v702
  %vm704 = vcmask 244896
  %v705 = vsel %vm704, %v319, -inf
  %706 = vmax.xlane.f32.xlu0 %v705
  %v707 = vpop.xlane.xlu0 %706
  %v708 = vsel %vm704, %v320, -inf
  %709 = vmax.xlane.f32.xlu0 %v708
  %v710 = vpop.xlane.xlu0 %709
  %v711 = vsel %vm704, %v321, -inf
  %712 = vmax.xlane.f32.xlu0 %v711
  %v713 = vpop.xlane.xlu0 %712
  %v714 = vsel %vm704, %v322, -inf
  %715 = vmax.xlane.f32.xlu0 %v714
  %v716 = vpop.xlane.xlu0 %715
  %v717 = vsel %vm704, %v323, -inf
  %718 = vmax.xlane.f32.xlu0 %v717
  %v719 = vpop.xlane.xlu0 %718
  %v720 = vsel %vm704, %v324, -inf
  %721 = vmax.xlane.f32.xlu0 %v720
  %v722 = vpop.xlane.xlu0 %721
  %v723 = vsel %vm704, %v325, -inf
  %724 = vmax.xlane.f32.xlu0 %v723
  %v725 = vpop.xlane.xlu0 %724
  %v726 = vsel %vm704, %v326, -inf
  %727 = vmax.xlane.f32.xlu0 %v726
  %v728 = vpop.xlane.xlu0 %727
  %v729 = vsel %vm704, %v327, -inf
  %730 = vmax.xlane.f32.xlu0 %v729
  %v731 = vpop.xlane.xlu0 %730
  %v732 = vsel %vm704, %v328, -inf
  %733 = vmax.xlane.f32.xlu0 %v732
  %v734 = vpop.xlane.xlu0 %733
  %v735 = vsel %vm704, %v329, -inf
  %736 = vmax.xlane.f32.xlu0 %v735
  %v737 = vpop.xlane.xlu0 %736
  %v738 = vsel %vm704, %v330, -inf
  %739 = vmax.xlane.f32.xlu0 %v738
  %v740 = vpop.xlane.xlu0 %739
  %v741 = vsel %vm704, %v331, -inf
  %742 = vmax.xlane.f32.xlu0 %v741
  %v743 = vpop.xlane.xlu0 %742
  %v744 = vsel %vm704, %v332, -inf
  %745 = vmax.xlane.f32.xlu0 %v744
  %v746 = vpop.xlane.xlu0 %745
  %v747 = vsel %vm704, %v333, -inf
  %748 = vmax.xlane.f32.xlu0 %v747
  %v749 = vpop.xlane.xlu0 %748
  %v750 = vsel %vm704, %v334, -inf
  %751 = vmax.xlane.f32.xlu0 %v750
  %v752 = vpop.xlane.xlu0 %751
  %v753 = vsub.f32 %v319, %v707
  %v754 = vsub.f32 %v320, %v710
  %v755 = vsub.f32 %v321, %v713
  %v756 = vsub.f32 %v322, %v716
  %v757 = vsub.f32 %v323, %v719
  %v758 = vsub.f32 %v324, %v722
  %v759 = vsub.f32 %v325, %v725
  %v760 = vsub.f32 %v326, %v728
  %v761 = vsub.f32 %v327, %v731
  %v762 = vsub.f32 %v328, %v734
  %v763 = vsub.f32 %v329, %v737
  %v764 = vsub.f32 %v330, %v740
  %v765 = vsub.f32 %v331, %v743
  %v766 = vsub.f32 %v332, %v746
  %v767 = vsub.f32 %v333, %v749
  %v768 = vsub.f32 %v334, %v752
  %v769 = vmul.f32 %v753, 1.442695
  %v770 = vpow.pop %v769
  %v771 = vmul.f32 %v754, 1.442695
  %v772 = vpow.pop %v771
  %v773 = vmul.f32 %v755, 1.442695
  %v774 = vpow.pop %v773
  %v775 = vmul.f32 %v756, 1.442695
  %v776 = vpow.pop %v775
  %v777 = vmul.f32 %v757, 1.442695
  %v778 = vpow.pop %v777
  %v779 = vmul.f32 %v758, 1.442695
  %v780 = vpow.pop %v779
  %v781 = vmul.f32 %v759, 1.442695
  %v782 = vpow.pop %v781
  %v783 = vmul.f32 %v760, 1.442695
  %v784 = vpow.pop %v783
  %v785 = vmul.f32 %v761, 1.442695
  %v786 = vpow.pop %v785
  %v787 = vmul.f32 %v762, 1.442695
  %v788 = vpow.pop %v787
  %v789 = vmul.f32 %v763, 1.442695
  %v790 = vpow.pop %v789
  %v791 = vmul.f32 %v764, 1.442695
  %v792 = vpow.pop %v791
  %v793 = vmul.f32 %v765, 1.442695
  %v794 = vpow.pop %v793
  %v795 = vmul.f32 %v766, 1.442695
  %v796 = vpow.pop %v795
  %v797 = vmul.f32 %v767, 1.442695
  %v798 = vpow.pop %v797
  %v799 = vmul.f32 %v768, 1.442695
  %v800 = vpow.pop %v799
  %817 = vrot.lane.b32.xlu0 %v770, 108
  %v818 = vpop.permute.xlu0 %817
  %819 = vrot.lane.b32.xlu0 %v772, 108
  %v820 = vpop.permute.xlu0 %819
  %821 = vrot.lane.b32.xlu0 %v774, 108
  %v822 = vpop.permute.xlu0 %821
  %823 = vrot.lane.b32.xlu0 %v776, 108
  %v824 = vpop.permute.xlu0 %823
  %825 = vrot.lane.b32.xlu0 %v778, 108
  %v826 = vpop.permute.xlu0 %825
  %827 = vrot.lane.b32.xlu0 %v780, 108
  %v828 = vpop.permute.xlu0 %827
  %829 = vrot.lane.b32.xlu0 %v782, 108
  %v830 = vpop.permute.xlu0 %829
  %831 = vrot.lane.b32.xlu0 %v784, 108
  %v832 = vpop.permute.xlu0 %831
  %833 = vrot.lane.b32.xlu0 %v786, 108
  %v834 = vpop.permute.xlu0 %833
  %835 = vrot.lane.b32.xlu0 %v788, 108
  %v836 = vpop.permute.xlu0 %835
  %837 = vrot.lane.b32.xlu0 %v790, 108
  %v838 = vpop.permute.xlu0 %837
  %839 = vrot.lane.b32.xlu0 %v792, 108
  %v840 = vpop.permute.xlu0 %839
  %841 = vrot.lane.b32.xlu0 %v794, 108
  %v842 = vpop.permute.xlu0 %841
  %843 = vrot.lane.b32.xlu0 %v796, 108
  %v844 = vpop.permute.xlu0 %843
  %845 = vrot.lane.b32.xlu0 %v798, 108
  %v846 = vpop.permute.xlu0 %845
  %847 = vrot.lane.b32.xlu0 %v800, 108
  %v848 = vpop.permute.xlu0 %847
  %v865 = vsel %vm415, %v818, 0.0
  %866 = vadd.xlane.f32.xlu0 %v865
  %v867 = vpop.xlane.xlu0 %866
  %v868 = vsel %vm415, %v820, 0.0
  %869 = vadd.xlane.f32.xlu0 %v868
  %v870 = vpop.xlane.xlu0 %869
  %v871 = vsel %vm415, %v822, 0.0
  %872 = vadd.xlane.f32.xlu0 %v871
  %v873 = vpop.xlane.xlu0 %872
  %v874 = vsel %vm415, %v824, 0.0
  %875 = vadd.xlane.f32.xlu0 %v874
  %v876 = vpop.xlane.xlu0 %875
  %v877 = vsel %vm415, %v826, 0.0
  %878 = vadd.xlane.f32.xlu0 %v877
  %v879 = vpop.xlane.xlu0 %878
  %v880 = vsel %vm415, %v828, 0.0
  %881 = vadd.xlane.f32.xlu0 %v880
  %v882 = vpop.xlane.xlu0 %881
  %v883 = vsel %vm415, %v830, 0.0
  %884 = vadd.xlane.f32.xlu0 %v883
  %v885 = vpop.xlane.xlu0 %884
  %v886 = vsel %vm415, %v832, 0.0
  %887 = vadd.xlane.f32.xlu0 %v886
  %v888 = vpop.xlane.xlu0 %887
  %v889 = vsel %vm415, %v834, 0.0
  %890 = vadd.xlane.f32.xlu0 %v889
  %v891 = vpop.xlane.xlu0 %890
  %v892 = vsel %vm415, %v836, 0.0
  %893 = vadd.xlane.f32.xlu0 %v892
  %v894 = vpop.xlane.xlu0 %893
  %v895 = vsel %vm415, %v838, 0.0
  %896 = vadd.xlane.f32.xlu0 %v895
  %v897 = vpop.xlane.xlu0 %896
  %v898 = vsel %vm415, %v840, 0.0
  %899 = vadd.xlane.f32.xlu0 %v898
  %v900 = vpop.xlane.xlu0 %899
  %v901 = vsel %vm415, %v842, 0.0
  %902 = vadd.xlane.f32.xlu0 %v901
  %v903 = vpop.xlane.xlu0 %902
  %v904 = vsel %vm415, %v844, 0.0
  %905 = vadd.xlane.f32.xlu0 %v904
  %v906 = vpop.xlane.xlu0 %905
  %v907 = vsel %vm415, %v846, 0.0
  %908 = vadd.xlane.f32.xlu0 %v907
  %v909 = vpop.xlane.xlu0 %908
  %v910 = vsel %vm415, %v848, 0.0
  %911 = vadd.xlane.f32.xlu0 %v910
  %v912 = vpop.xlane.xlu0 %911
  %v913 = vrcp.pop %v867
  %v914 = vmul.f32 %v867, %v913
  %v915 = vsub.f32 1.0, %v914
  %v916 = vmul.f32 %v913, %v915
  %v917 = vadd.f32 %v913, %v916
  %vm918 = vweird.f32 %v867
  %vm919 = vweird.f32 %v913
  %vm920 = vmor %vm918, %vm919
  %v921 = vsel %vm920, %v913, %v917
  %v922 = vand.u32 2147483647, %v867
  %vm923 = vcmp.eq.f32.partialorder %v922, 8.507059e+37
  %v924 = vand.u32 %v867, 2147483648
  %v925 = vor.u32 1.1754944e-38, %v924
  %v926 = vsel %vm923, %v925, %v921
  %v927 = vmul.f32 %v770, %v926
  %v928 = vrcp.pop %v870
  %v929 = vmul.f32 %v870, %v928
  %v930 = vsub.f32 1.0, %v929
  %v931 = vmul.f32 %v928, %v930
  %v932 = vadd.f32 %v928, %v931
  %vm933 = vweird.f32 %v870
  %vm934 = vweird.f32 %v928
  %vm935 = vmor %vm933, %vm934
  %v936 = vsel %vm935, %v928, %v932
  %v937 = vand.u32 2147483647, %v870
  %vm938 = vcmp.eq.f32.partialorder %v937, 8.507059e+37
  %v939 = vand.u32 %v870, 2147483648
  %v940 = vor.u32 1.1754944e-38, %v939
  %v941 = vsel %vm938, %v940, %v936
  %v942 = vmul.f32 %v772, %v941
  %v943 = vrcp.pop %v873
  %v944 = vmul.f32 %v873, %v943
  %v945 = vsub.f32 1.0, %v944
  %v946 = vmul.f32 %v943, %v945
  %v947 = vadd.f32 %v943, %v946
  %vm948 = vweird.f32 %v873
  %vm949 = vweird.f32 %v943
  %vm950 = vmor %vm948, %vm949
  %v951 = vsel %vm950, %v943, %v947
  %v952 = vand.u32 2147483647, %v873
  %vm953 = vcmp.eq.f32.partialorder %v952, 8.507059e+37
  %v954 = vand.u32 %v873, 2147483648
  %v955 = vor.u32 1.1754944e-38, %v954
  %v956 = vsel %vm953, %v955, %v951
  %v957 = vmul.f32 %v774, %v956
  %v958 = vrcp.pop %v876
  %v959 = vmul.f32 %v876, %v958
  %v960 = vsub.f32 1.0, %v959
  %v961 = vmul.f32 %v958, %v960
  %v962 = vadd.f32 %v958, %v961
  %vm963 = vweird.f32 %v876
  %vm964 = vweird.f32 %v958
  %vm965 = vmor %vm963, %vm964
  %v966 = vsel %vm965, %v958, %v962
  %v967 = vand.u32 2147483647, %v876
  %vm968 = vcmp.eq.f32.partialorder %v967, 8.507059e+37
  %v969 = vand.u32 %v876, 2147483648
  %v970 = vor.u32 1.1754944e-38, %v969
  %v971 = vsel %vm968, %v970, %v966
  %v972 = vmul.f32 %v776, %v971
  %v973 = vrcp.pop %v879
  %v974 = vmul.f32 %v879, %v973
  %v975 = vsub.f32 1.0, %v974
  %v976 = vmul.f32 %v973, %v975
  %v977 = vadd.f32 %v973, %v976
  %vm978 = vweird.f32 %v879
  %vm979 = vweird.f32 %v973
  %vm980 = vmor %vm978, %vm979
  %v981 = vsel %vm980, %v973, %v977
  %v982 = vand.u32 2147483647, %v879
  %vm983 = vcmp.eq.f32.partialorder %v982, 8.507059e+37
  %v984 = vand.u32 %v879, 2147483648
  %v985 = vor.u32 1.1754944e-38, %v984
  %v986 = vsel %vm983, %v985, %v981
  %v987 = vmul.f32 %v778, %v986
  %v988 = vrcp.pop %v882
  %v989 = vmul.f32 %v882, %v988
  %v990 = vsub.f32 1.0, %v989
  %v991 = vmul.f32 %v988, %v990
  %v992 = vadd.f32 %v988, %v991
  %vm993 = vweird.f32 %v882
  %vm994 = vweird.f32 %v988
  %vm995 = vmor %vm993, %vm994
  %v996 = vsel %vm995, %v988, %v992
  %v997 = vand.u32 2147483647, %v882
  %vm998 = vcmp.eq.f32.partialorder %v997, 8.507059e+37
  %v999 = vand.u32 %v882, 2147483648
  %v1000 = vor.u32 1.1754944e-38, %v999
  %v1001 = vsel %vm998, %v1000, %v996
  %v1002 = vmul.f32 %v780, %v1001
  %v1003 = vrcp.pop %v885
  %v1004 = vmul.f32 %v885, %v1003
  %v1005 = vsub.f32 1.0, %v1004
  %v1006 = vmul.f32 %v1003, %v1005
  %v1007 = vadd.f32 %v1003, %v1006
  %vm1008 = vweird.f32 %v885
  %vm1009 = vweird.f32 %v1003
  %vm1010 = vmor %vm1008, %vm1009
  %v1011 = vsel %vm1010, %v1003, %v1007
  %v1012 = vand.u32 2147483647, %v885
  %vm1013 = vcmp.eq.f32.partialorder %v1012, 8.507059e+37
  %v1014 = vand.u32 %v885, 2147483648
  %v1015 = vor.u32 1.1754944e-38, %v1014
  %v1016 = vsel %vm1013, %v1015, %v1011
  %v1017 = vmul.f32 %v782, %v1016
  %v1018 = vrcp.pop %v888
  %v1019 = vmul.f32 %v888, %v1018
  %v1020 = vsub.f32 1.0, %v1019
  %v1021 = vmul.f32 %v1018, %v1020
  %v1022 = vadd.f32 %v1018, %v1021
  %vm1023 = vweird.f32 %v888
  %vm1024 = vweird.f32 %v1018
  %vm1025 = vmor %vm1023, %vm1024
  %v1026 = vsel %vm1025, %v1018, %v1022
  %v1027 = vand.u32 2147483647, %v888
  %vm1028 = vcmp.eq.f32.partialorder %v1027, 8.507059e+37
  %v1029 = vand.u32 %v888, 2147483648
  %v1030 = vor.u32 1.1754944e-38, %v1029
  %v1031 = vsel %vm1028, %v1030, %v1026
  %v1032 = vmul.f32 %v784, %v1031
  %v1033 = vrcp.pop %v891
  %v1034 = vmul.f32 %v891, %v1033
  %v1035 = vsub.f32 1.0, %v1034
  %v1036 = vmul.f32 %v1033, %v1035
  %v1037 = vadd.f32 %v1033, %v1036
  %vm1038 = vweird.f32 %v891
  %vm1039 = vweird.f32 %v1033
  %vm1040 = vmor %vm1038, %vm1039
  %v1041 = vsel %vm1040, %v1033, %v1037
  %v1042 = vand.u32 2147483647, %v891
  %vm1043 = vcmp.eq.f32.partialorder %v1042, 8.507059e+37
  %v1044 = vand.u32 %v891, 2147483648
  %v1045 = vor.u32 1.1754944e-38, %v1044
  %v1046 = vsel %vm1043, %v1045, %v1041
  %v1047 = vmul.f32 %v786, %v1046
  %v1048 = vrcp.pop %v894
  %v1049 = vmul.f32 %v894, %v1048
  %v1050 = vsub.f32 1.0, %v1049
  %v1051 = vmul.f32 %v1048, %v1050
  %v1052 = vadd.f32 %v1048, %v1051
  %vm1053 = vweird.f32 %v894
  %vm1054 = vweird.f32 %v1048
  %vm1055 = vmor %vm1053, %vm1054
  %v1056 = vsel %vm1055, %v1048, %v1052
  %v1057 = vand.u32 2147483647, %v894
  %vm1058 = vcmp.eq.f32.partialorder %v1057, 8.507059e+37
  %v1059 = vand.u32 %v894, 2147483648
  %v1060 = vor.u32 1.1754944e-38, %v1059
  %v1061 = vsel %vm1058, %v1060, %v1056
  %v1062 = vmul.f32 %v788, %v1061
  %v1063 = vrcp.pop %v897
  %v1064 = vmul.f32 %v897, %v1063
  %v1065 = vsub.f32 1.0, %v1064
  %v1066 = vmul.f32 %v1063, %v1065
  %v1067 = vadd.f32 %v1063, %v1066
  %vm1068 = vweird.f32 %v897
  %vm1069 = vweird.f32 %v1063
  %vm1070 = vmor %vm1068, %vm1069
  %v1071 = vsel %vm1070, %v1063, %v1067
  %v1072 = vand.u32 2147483647, %v897
  %vm1073 = vcmp.eq.f32.partialorder %v1072, 8.507059e+37
  %v1074 = vand.u32 %v897, 2147483648
  %v1075 = vor.u32 1.1754944e-38, %v1074
  %v1076 = vsel %vm1073, %v1075, %v1071
  %v1077 = vmul.f32 %v790, %v1076
  %v1078 = vrcp.pop %v900
  %v1079 = vmul.f32 %v900, %v1078
  %v1080 = vsub.f32 1.0, %v1079
  %v1081 = vmul.f32 %v1078, %v1080
  %v1082 = vadd.f32 %v1078, %v1081
  %vm1083 = vweird.f32 %v900
  %vm1084 = vweird.f32 %v1078
  %vm1085 = vmor %vm1083, %vm1084
  %v1086 = vsel %vm1085, %v1078, %v1082
  %v1087 = vand.u32 2147483647, %v900
  %vm1088 = vcmp.eq.f32.partialorder %v1087, 8.507059e+37
  %v1089 = vand.u32 %v900, 2147483648
  %v1090 = vor.u32 1.1754944e-38, %v1089
  %v1091 = vsel %vm1088, %v1090, %v1086
  %v1092 = vmul.f32 %v792, %v1091
  %v1093 = vrcp.pop %v903
  %v1094 = vmul.f32 %v903, %v1093
  %v1095 = vsub.f32 1.0, %v1094
  %v1096 = vmul.f32 %v1093, %v1095
  %v1097 = vadd.f32 %v1093, %v1096
  %vm1098 = vweird.f32 %v903
  %vm1099 = vweird.f32 %v1093
  %vm1100 = vmor %vm1098, %vm1099
  %v1101 = vsel %vm1100, %v1093, %v1097
  %v1102 = vand.u32 2147483647, %v903
  %vm1103 = vcmp.eq.f32.partialorder %v1102, 8.507059e+37
  %v1104 = vand.u32 %v903, 2147483648
  %v1105 = vor.u32 1.1754944e-38, %v1104
  %v1106 = vsel %vm1103, %v1105, %v1101
  %v1107 = vmul.f32 %v794, %v1106
  %v1108 = vrcp.pop %v906
  %v1109 = vmul.f32 %v906, %v1108
  %v1110 = vsub.f32 1.0, %v1109
  %v1111 = vmul.f32 %v1108, %v1110
  %v1112 = vadd.f32 %v1108, %v1111
  %vm1113 = vweird.f32 %v906
  %vm1114 = vweird.f32 %v1108
  %vm1115 = vmor %vm1113, %vm1114
  %v1116 = vsel %vm1115, %v1108, %v1112
  %v1117 = vand.u32 2147483647, %v906
  %vm1118 = vcmp.eq.f32.partialorder %v1117, 8.507059e+37
  %v1119 = vand.u32 %v906, 2147483648
  %v1120 = vor.u32 1.1754944e-38, %v1119
  %v1121 = vsel %vm1118, %v1120, %v1116
  %v1122 = vmul.f32 %v796, %v1121
  %v1123 = vrcp.pop %v909
  %v1124 = vmul.f32 %v909, %v1123
  %v1125 = vsub.f32 1.0, %v1124
  %v1126 = vmul.f32 %v1123, %v1125
  %v1127 = vadd.f32 %v1123, %v1126
  %vm1128 = vweird.f32 %v909
  %vm1129 = vweird.f32 %v1123
  %vm1130 = vmor %vm1128, %vm1129
  %v1131 = vsel %vm1130, %v1123, %v1127
  %v1132 = vand.u32 2147483647, %v909
  %vm1133 = vcmp.eq.f32.partialorder %v1132, 8.507059e+37
  %v1134 = vand.u32 %v909, 2147483648
  %v1135 = vor.u32 1.1754944e-38, %v1134
  %v1136 = vsel %vm1133, %v1135, %v1131
  %v1137 = vmul.f32 %v798, %v1136
  %v1138 = vrcp.pop %v912
  %v1139 = vmul.f32 %v912, %v1138
  %v1140 = vsub.f32 1.0, %v1139
  %v1141 = vmul.f32 %v1138, %v1140
  %v1142 = vadd.f32 %v1138, %v1141
  %vm1143 = vweird.f32 %v912
  %vm1144 = vweird.f32 %v1138
  %vm1145 = vmor %vm1143, %vm1144
  %v1146 = vsel %vm1145, %v1138, %v1142
  %v1147 = vand.u32 2147483647, %v912
  %vm1148 = vcmp.eq.f32.partialorder %v1147, 8.507059e+37
  %v1149 = vand.u32 %v912, 2147483648
  %v1150 = vor.u32 1.1754944e-38, %v1149
  %v1151 = vsel %vm1148, %v1150, %v1146
  %v1152 = vmul.f32 %v800, %v1151
  %1169 = vrot.lane.b32.xlu0 %v927, 108
  %v1170 = vpop.permute.xlu0 %1169
  %1171 = vrot.lane.b32.xlu0 %v942, 108
  %v1172 = vpop.permute.xlu0 %1171
  %1173 = vrot.lane.b32.xlu0 %v957, 108
  %v1174 = vpop.permute.xlu0 %1173
  %1175 = vrot.lane.b32.xlu0 %v972, 108
  %v1176 = vpop.permute.xlu0 %1175
  %1177 = vrot.lane.b32.xlu0 %v987, 108
  %v1178 = vpop.permute.xlu0 %1177
  %1179 = vrot.lane.b32.xlu0 %v1002, 108
  %v1180 = vpop.permute.xlu0 %1179
  %1181 = vrot.lane.b32.xlu0 %v1017, 108
  %v1182 = vpop.permute.xlu0 %1181
  %1183 = vrot.lane.b32.xlu0 %v1032, 108
  %v1184 = vpop.permute.xlu0 %1183
  %1185 = vrot.lane.b32.xlu0 %v1047, 108
  %v1186 = vpop.permute.xlu0 %1185
  %1187 = vrot.lane.b32.xlu0 %v1062, 108
  %v1188 = vpop.permute.xlu0 %1187
  %1189 = vrot.lane.b32.xlu0 %v1077, 108
  %v1190 = vpop.permute.xlu0 %1189
  %1191 = vrot.lane.b32.xlu0 %v1092, 108
  %v1192 = vpop.permute.xlu0 %1191
  %1193 = vrot.lane.b32.xlu0 %v1107, 108
  %v1194 = vpop.permute.xlu0 %1193
  %1195 = vrot.lane.b32.xlu0 %v1122, 108
  %v1196 = vpop.permute.xlu0 %1195
  %1197 = vrot.lane.b32.xlu0 %v1137, 108
  %v1198 = vpop.permute.xlu0 %1197
  %1199 = vrot.lane.b32.xlu0 %v1152, 108
  %v1200 = vpop.permute.xlu0 %1199
  %v1217 = vmul.f32 %v319, %v1170
  %v1218 = vmul.f32 %v320, %v1172
  %v1219 = vmul.f32 %v321, %v1174
  %v1220 = vmul.f32 %v322, %v1176
  %v1221 = vmul.f32 %v323, %v1178
  %v1222 = vmul.f32 %v324, %v1180
  %v1223 = vmul.f32 %v325, %v1182
  %v1224 = vmul.f32 %v326, %v1184
  %v1225 = vmul.f32 %v327, %v1186
  %v1226 = vmul.f32 %v328, %v1188
  %v1227 = vmul.f32 %v329, %v1190
  %v1228 = vmul.f32 %v330, %v1192
  %v1229 = vmul.f32 %v331, %v1194
  %v1230 = vmul.f32 %v332, %v1196
  %v1231 = vmul.f32 %v333, %v1198
  %v1232 = vmul.f32 %v334, %v1200
  %v1233 = vsel %vm415, %v1217, 0.0
  %1234 = vadd.xlane.f32.xlu0 %v1233
  %v1235 = vpop.xlane.xlu0 %1234
  %v1236 = vsel %vm415, %v1218, 0.0
  %1237 = vadd.xlane.f32.xlu0 %v1236
  %v1238 = vpop.xlane.xlu0 %1237
  %v1239 = vsel %vm415, %v1219, 0.0
  %1240 = vadd.xlane.f32.xlu0 %v1239
  %v1241 = vpop.xlane.xlu0 %1240
  %v1242 = vsel %vm415, %v1220, 0.0
  %1243 = vadd.xlane.f32.xlu0 %v1242
  %v1244 = vpop.xlane.xlu0 %1243
  %v1245 = vsel %vm415, %v1221, 0.0
  %1246 = vadd.xlane.f32.xlu0 %v1245
  %v1247 = vpop.xlane.xlu0 %1246
  %v1248 = vsel %vm415, %v1222, 0.0
  %1249 = vadd.xlane.f32.xlu0 %v1248
  %v1250 = vpop.xlane.xlu0 %1249
  %v1251 = vsel %vm415, %v1223, 0.0
  %1252 = vadd.xlane.f32.xlu0 %v1251
  %v1253 = vpop.xlane.xlu0 %1252
  %v1254 = vsel %vm415, %v1224, 0.0
  %1255 = vadd.xlane.f32.xlu0 %v1254
  %v1256 = vpop.xlane.xlu0 %1255
  %v1257 = vsel %vm415, %v1225, 0.0
  %1258 = vadd.xlane.f32.xlu0 %v1257
  %v1259 = vpop.xlane.xlu0 %1258
  %v1260 = vsel %vm415, %v1226, 0.0
  %1261 = vadd.xlane.f32.xlu0 %v1260
  %v1262 = vpop.xlane.xlu0 %1261
  %v1263 = vsel %vm415, %v1227, 0.0
  %1264 = vadd.xlane.f32.xlu0 %v1263
  %v1265 = vpop.xlane.xlu0 %1264
  %v1266 = vsel %vm415, %v1228, 0.0
  %1267 = vadd.xlane.f32.xlu0 %v1266
  %v1268 = vpop.xlane.xlu0 %1267
  %v1269 = vsel %vm415, %v1229, 0.0
  %1270 = vadd.xlane.f32.xlu0 %v1269
  %v1271 = vpop.xlane.xlu0 %1270
  %v1272 = vsel %vm415, %v1230, 0.0
  %1273 = vadd.xlane.f32.xlu0 %v1272
  %v1274 = vpop.xlane.xlu0 %1273
  %v1275 = vsel %vm415, %v1231, 0.0
  %1276 = vadd.xlane.f32.xlu0 %v1275
  %v1277 = vpop.xlane.xlu0 %1276
  %v1278 = vsel %vm415, %v1232, 0.0
  %1279 = vadd.xlane.f32.xlu0 %v1278
  %v1280 = vpop.xlane.xlu0 %1279
  %1281 = vrot.lane.b32.xlu0 %v927, 118
  %v1282 = vpop.permute.xlu0 %1281
  %1283 = vrot.lane.b32.xlu0 %v942, 118
  %v1284 = vpop.permute.xlu0 %1283
  %1285 = vrot.lane.b32.xlu0 %v957, 118
  %v1286 = vpop.permute.xlu0 %1285
  %1287 = vrot.lane.b32.xlu0 %v972, 118
  %v1288 = vpop.permute.xlu0 %1287
  %1289 = vrot.lane.b32.xlu0 %v987, 118
  %v1290 = vpop.permute.xlu0 %1289
  %1291 = vrot.lane.b32.xlu0 %v1002, 118
  %v1292 = vpop.permute.xlu0 %1291
  %1293 = vrot.lane.b32.xlu0 %v1017, 118
  %v1294 = vpop.permute.xlu0 %1293
  %1295 = vrot.lane.b32.xlu0 %v1032, 118
  %v1296 = vpop.permute.xlu0 %1295
  %1297 = vrot.lane.b32.xlu0 %v1047, 118
  %v1298 = vpop.permute.xlu0 %1297
  %1299 = vrot.lane.b32.xlu0 %v1062, 118
  %v1300 = vpop.permute.xlu0 %1299
  %1301 = vrot.lane.b32.xlu0 %v1077, 118
  %v1302 = vpop.permute.xlu0 %1301
  %1303 = vrot.lane.b32.xlu0 %v1092, 118
  %v1304 = vpop.permute.xlu0 %1303
  %1305 = vrot.lane.b32.xlu0 %v1107, 118
  %v1306 = vpop.permute.xlu0 %1305
  %1307 = vrot.lane.b32.xlu0 %v1122, 118
  %v1308 = vpop.permute.xlu0 %1307
  %1309 = vrot.lane.b32.xlu0 %v1137, 118
  %v1310 = vpop.permute.xlu0 %1309
  %1311 = vrot.lane.b32.xlu0 %v1152, 118
  %v1312 = vpop.permute.xlu0 %1311
  %v1329 = vmul.f32 %v673, %v1282
  %v1330 = vmul.f32 %v675, %v1284
  %v1331 = vmul.f32 %v677, %v1286
  %v1332 = vmul.f32 %v679, %v1288
  %v1333 = vmul.f32 %v681, %v1290
  %v1334 = vmul.f32 %v683, %v1292
  %v1335 = vmul.f32 %v685, %v1294
  %v1336 = vmul.f32 %v687, %v1296
  %v1337 = vmul.f32 %v689, %v1298
  %v1338 = vmul.f32 %v691, %v1300
  %v1339 = vmul.f32 %v693, %v1302
  %v1340 = vmul.f32 %v695, %v1304
  %v1341 = vmul.f32 %v697, %v1306
  %v1342 = vmul.f32 %v699, %v1308
  %v1343 = vmul.f32 %v701, %v1310
  %v1344 = vmul.f32 %v703, %v1312
  %1361 = vrot.lane.b32.xlu0 %v1329, 118
  %v1362 = vpop.permute.xlu0 %1361
  %1363 = vrot.lane.b32.xlu0 %v1330, 118
  %v1364 = vpop.permute.xlu0 %1363
  %1365 = vrot.lane.b32.xlu0 %v1331, 118
  %v1366 = vpop.permute.xlu0 %1365
  %1367 = vrot.lane.b32.xlu0 %v1332, 118
  %v1368 = vpop.permute.xlu0 %1367
  %1369 = vrot.lane.b32.xlu0 %v1333, 118
  %v1370 = vpop.permute.xlu0 %1369
  %1371 = vrot.lane.b32.xlu0 %v1334, 118
  %v1372 = vpop.permute.xlu0 %1371
  %1373 = vrot.lane.b32.xlu0 %v1335, 118
  %v1374 = vpop.permute.xlu0 %1373
  %1375 = vrot.lane.b32.xlu0 %v1336, 118
  %v1376 = vpop.permute.xlu0 %1375
  %1377 = vrot.lane.b32.xlu0 %v1337, 118
  %v1378 = vpop.permute.xlu0 %1377
  %1379 = vrot.lane.b32.xlu0 %v1338, 118
  %v1380 = vpop.permute.xlu0 %1379
  %1381 = vrot.lane.b32.xlu0 %v1339, 118
  %v1382 = vpop.permute.xlu0 %1381
  %1383 = vrot.lane.b32.xlu0 %v1340, 118
  %v1384 = vpop.permute.xlu0 %1383
  %1385 = vrot.lane.b32.xlu0 %v1341, 118
  %v1386 = vpop.permute.xlu0 %1385
  %1387 = vrot.lane.b32.xlu0 %v1342, 118
  %v1388 = vpop.permute.xlu0 %1387
  %1389 = vrot.lane.b32.xlu0 %v1343, 118
  %v1390 = vpop.permute.xlu0 %1389
  %1391 = vrot.lane.b32.xlu0 %v1344, 118
  %v1392 = vpop.permute.xlu0 %1391
  %v1409 = vsel %vm415, %v1362, 0.0
  %1410 = vadd.xlane.f32.xlu0 %v1409
  %v1411 = vpop.xlane.xlu0 %1410
  %v1412 = vsel %vm415, %v1364, 0.0
  %1413 = vadd.xlane.f32.xlu0 %v1412
  %v1414 = vpop.xlane.xlu0 %1413
  %v1415 = vsel %vm415, %v1366, 0.0
  %1416 = vadd.xlane.f32.xlu0 %v1415
  %v1417 = vpop.xlane.xlu0 %1416
  %v1418 = vsel %vm415, %v1368, 0.0
  %1419 = vadd.xlane.f32.xlu0 %v1418
  %v1420 = vpop.xlane.xlu0 %1419
  %v1421 = vsel %vm415, %v1370, 0.0
  %1422 = vadd.xlane.f32.xlu0 %v1421
  %v1423 = vpop.xlane.xlu0 %1422
  %v1424 = vsel %vm415, %v1372, 0.0
  %1425 = vadd.xlane.f32.xlu0 %v1424
  %v1426 = vpop.xlane.xlu0 %1425
  %v1427 = vsel %vm415, %v1374, 0.0
  %1428 = vadd.xlane.f32.xlu0 %v1427
  %v1429 = vpop.xlane.xlu0 %1428
  %v1430 = vsel %vm415, %v1376, 0.0
  %1431 = vadd.xlane.f32.xlu0 %v1430
  %v1432 = vpop.xlane.xlu0 %1431
  %v1433 = vsel %vm415, %v1378, 0.0
  %1434 = vadd.xlane.f32.xlu0 %v1433
  %v1435 = vpop.xlane.xlu0 %1434
  %v1436 = vsel %vm415, %v1380, 0.0
  %1437 = vadd.xlane.f32.xlu0 %v1436
  %v1438 = vpop.xlane.xlu0 %1437
  %v1439 = vsel %vm415, %v1382, 0.0
  %1440 = vadd.xlane.f32.xlu0 %v1439
  %v1441 = vpop.xlane.xlu0 %1440
  %v1442 = vsel %vm415, %v1384, 0.0
  %1443 = vadd.xlane.f32.xlu0 %v1442
  %v1444 = vpop.xlane.xlu0 %1443
  %v1445 = vsel %vm415, %v1386, 0.0
  %1446 = vadd.xlane.f32.xlu0 %v1445
  %v1447 = vpop.xlane.xlu0 %1446
  %v1448 = vsel %vm415, %v1388, 0.0
  %1449 = vadd.xlane.f32.xlu0 %v1448
  %v1450 = vpop.xlane.xlu0 %1449
  %v1451 = vsel %vm415, %v1390, 0.0
  %1452 = vadd.xlane.f32.xlu0 %v1451
  %v1453 = vpop.xlane.xlu0 %1452
  %v1454 = vsel %vm415, %v1392, 0.0
  %1455 = vadd.xlane.f32.xlu0 %v1454
  %v1456 = vpop.xlane.xlu0 %1455
  %v1457 = vld [vmem:[%s2] sm:$0xff]
  %v1458 = vld [vmem:[%s2 + $0x8] sm:$0xff]
  %v1461 = vperm.slane %v1457, 0
  %v1462 = vlaneseq
  %v1463 = vshrl.u32 %v1462, 7
  %1465 = vset.pattern.permute.xlu0 %v1463
  %1466 = vperm.xlu0 %1465, %v1461
  %v1467 = vpop.permute.xlu0 %1466
  %v1468 = vperm.slane %v1457, 1
  %v1469 = vlaneseq
  %v1470 = vshrl.u32 %v1469, 7
  %1472 = vset.pattern.permute.xlu0 %v1470
  %1473 = vperm.xlu0 %1472, %v1468
  %v1474 = vpop.permute.xlu0 %1473
  %v1475 = vperm.slane %v1457, 2
  %v1476 = vlaneseq
  %v1477 = vshrl.u32 %v1476, 7
  %1479 = vset.pattern.permute.xlu0 %v1477
  %1480 = vperm.xlu0 %1479, %v1475
  %v1481 = vpop.permute.xlu0 %1480
  %v1482 = vperm.slane %v1457, 3
  %v1483 = vlaneseq
  %v1484 = vshrl.u32 %v1483, 7
  %1486 = vset.pattern.permute.xlu0 %v1484
  %1487 = vperm.xlu0 %1486, %v1482
  %v1488 = vpop.permute.xlu0 %1487
  %v1489 = vperm.slane %v1457, 4
  %v1490 = vlaneseq
  %v1491 = vshrl.u32 %v1490, 7
  %1493 = vset.pattern.permute.xlu0 %v1491
  %1494 = vperm.xlu0 %1493, %v1489
  %v1495 = vpop.permute.xlu0 %1494
  %v1496 = vperm.slane %v1457, 5
  %v1497 = vlaneseq
  %v1498 = vshrl.u32 %v1497, 7
  %1500 = vset.pattern.permute.xlu0 %v1498
  %1501 = vperm.xlu0 %1500, %v1496
  %v1502 = vpop.permute.xlu0 %1501
  %v1503 = vperm.slane %v1457, 6
  %v1504 = vlaneseq
  %v1505 = vshrl.u32 %v1504, 7
  %1507 = vset.pattern.permute.xlu0 %v1505
  %1508 = vperm.xlu0 %1507, %v1503
  %v1509 = vpop.permute.xlu0 %1508
  %v1510 = vperm.slane %v1457, 7
  %v1511 = vlaneseq
  %v1512 = vshrl.u32 %v1511, 7
  %1514 = vset.pattern.permute.xlu0 %v1512
  %1515 = vperm.xlu0 %1514, %v1510
  %v1516 = vpop.permute.xlu0 %1515
  %v1517 = vperm.slane %v1458, 0
  %v1518 = vlaneseq
  %v1519 = vshrl.u32 %v1518, 7
  %1521 = vset.pattern.permute.xlu0 %v1519
  %1522 = vperm.xlu0 %1521, %v1517
  %v1523 = vpop.permute.xlu0 %1522
  %v1524 = vperm.slane %v1458, 1
  %v1525 = vlaneseq
  %v1526 = vshrl.u32 %v1525, 7
  %1528 = vset.pattern.permute.xlu0 %v1526
  %1529 = vperm.xlu0 %1528, %v1524
  %v1530 = vpop.permute.xlu0 %1529
  %v1531 = vperm.slane %v1458, 2
  %v1532 = vlaneseq
  %v1533 = vshrl.u32 %v1532, 7
  %1535 = vset.pattern.permute.xlu0 %v1533
  %1536 = vperm.xlu0 %1535, %v1531
  %v1537 = vpop.permute.xlu0 %1536
  %v1538 = vperm.slane %v1458, 3
  %v1539 = vlaneseq
  %v1540 = vshrl.u32 %v1539, 7
  %1542 = vset.pattern.permute.xlu0 %v1540
  %1543 = vperm.xlu0 %1542, %v1538
  %v1544 = vpop.permute.xlu0 %1543
  %v1545 = vperm.slane %v1458, 4
  %v1546 = vlaneseq
  %v1547 = vshrl.u32 %v1546, 7
  %1549 = vset.pattern.permute.xlu0 %v1547
  %1550 = vperm.xlu0 %1549, %v1545
  %v1551 = vpop.permute.xlu0 %1550
  %v1552 = vperm.slane %v1458, 5
  %v1553 = vlaneseq
  %v1554 = vshrl.u32 %v1553, 7
  %1556 = vset.pattern.permute.xlu0 %v1554
  %1557 = vperm.xlu0 %1556, %v1552
  %v1558 = vpop.permute.xlu0 %1557
  %v1559 = vperm.slane %v1458, 6
  %v1560 = vlaneseq
  %v1561 = vshrl.u32 %v1560, 7
  %1563 = vset.pattern.permute.xlu0 %v1561
  %1564 = vperm.xlu0 %1563, %v1559
  %v1565 = vpop.permute.xlu0 %1564
  %v1566 = vperm.slane %v1458, 7
  %v1567 = vlaneseq
  %v1568 = vshrl.u32 %v1567, 7
  %1570 = vset.pattern.permute.xlu0 %v1568
  %1571 = vperm.xlu0 %1570, %v1566
  %v1572 = vpop.permute.xlu0 %1571
  %v1589 = vmul.f32 %v1411, %v1467
  %v1590 = vmul.f32 %v1414, %v1474
  %v1591 = vmul.f32 %v1417, %v1481
  %v1592 = vmul.f32 %v1420, %v1488
  %v1593 = vmul.f32 %v1423, %v1495
  %v1594 = vmul.f32 %v1426, %v1502
  %v1595 = vmul.f32 %v1429, %v1509
  %v1596 = vmul.f32 %v1432, %v1516
  %v1597 = vmul.f32 %v1435, %v1523
  %v1598 = vmul.f32 %v1438, %v1530
  %v1599 = vmul.f32 %v1441, %v1537
  %v1600 = vmul.f32 %v1444, %v1544
  %v1601 = vmul.f32 %v1447, %v1551
  %v1602 = vmul.f32 %v1450, %v1558
  %v1603 = vmul.f32 %v1453, %v1565
  %v1604 = vmul.f32 %v1456, %v1572
  %v1605 = vadd.f32 %v1235, %v1589
  %v1606 = vadd.f32 %v1238, %v1590
  %v1607 = vadd.f32 %v1241, %v1591
  %v1608 = vadd.f32 %v1244, %v1592
  %v1609 = vadd.f32 %v1247, %v1593
  %v1610 = vadd.f32 %v1250, %v1594
  %v1611 = vadd.f32 %v1253, %v1595
  %v1612 = vadd.f32 %v1256, %v1596
  %v1613 = vadd.f32 %v1259, %v1597
  %v1614 = vadd.f32 %v1262, %v1598
  %v1615 = vadd.f32 %v1265, %v1599
  %v1616 = vadd.f32 %v1268, %v1600
  %v1617 = vadd.f32 %v1271, %v1601
  %v1618 = vadd.f32 %v1274, %v1602
  %v1619 = vadd.f32 %v1277, %v1603
  %v1620 = vadd.f32 %v1280, %v1604
  %1637 = vset.pattern.permute.xlu0 0
  %1638 = vperm.xlu0 %1637, %v1605
  %v1639 = vpop.permute.xlu0 %1638
  %1640 = vset.pattern.permute.xlu0 0
  %1641 = vperm.xlu0 %1640, %v1606
  %v1642 = vpop.permute.xlu0 %1641
  %1643 = vset.pattern.permute.xlu0 0
  %1644 = vperm.xlu0 %1643, %v1607
  %v1645 = vpop.permute.xlu0 %1644
  %1646 = vset.pattern.permute.xlu0 0
  %1647 = vperm.xlu0 %1646, %v1608
  %v1648 = vpop.permute.xlu0 %1647
  %1649 = vset.pattern.permute.xlu0 0
  %1650 = vperm.xlu0 %1649, %v1609
  %v1651 = vpop.permute.xlu0 %1650
  %1652 = vset.pattern.permute.xlu0 0
  %1653 = vperm.xlu0 %1652, %v1610
  %v1654 = vpop.permute.xlu0 %1653
  %1655 = vset.pattern.permute.xlu0 0
  %1656 = vperm.xlu0 %1655, %v1611
  %v1657 = vpop.permute.xlu0 %1656
  %1658 = vset.pattern.permute.xlu0 0
  %1659 = vperm.xlu0 %1658, %v1612
  %v1660 = vpop.permute.xlu0 %1659
  %1661 = vset.pattern.permute.xlu0 0
  %1662 = vperm.xlu0 %1661, %v1613
  %v1663 = vpop.permute.xlu0 %1662
  %1664 = vset.pattern.permute.xlu0 0
  %1665 = vperm.xlu0 %1664, %v1614
  %v1666 = vpop.permute.xlu0 %1665
  %1667 = vset.pattern.permute.xlu0 0
  %1668 = vperm.xlu0 %1667, %v1615
  %v1669 = vpop.permute.xlu0 %1668
  %1670 = vset.pattern.permute.xlu0 0
  %1671 = vperm.xlu0 %1670, %v1616
  %v1672 = vpop.permute.xlu0 %1671
  %1673 = vset.pattern.permute.xlu0 0
  %1674 = vperm.xlu0 %1673, %v1617
  %v1675 = vpop.permute.xlu0 %1674
  %1676 = vset.pattern.permute.xlu0 0
  %1677 = vperm.xlu0 %1676, %v1618
  %v1678 = vpop.permute.xlu0 %1677
  %1679 = vset.pattern.permute.xlu0 0
  %1680 = vperm.xlu0 %1679, %v1619
  %v1681 = vpop.permute.xlu0 %1680
  %1682 = vset.pattern.permute.xlu0 0
  %1683 = vperm.xlu0 %1682, %v1620
  %v1684 = vpop.permute.xlu0 %1683
  %v1685 = vlaneseq
  %v1686 = vand.u32 %v1685, 127
  %v1687 = vperm.slane %v1639, %v1686
  %v1688 = vperm.slane %v1642, %v1686
  %v1689 = vperm.slane %v1645, %v1686
  %v1690 = vperm.slane %v1648, %v1686
  %v1691 = vperm.slane %v1651, %v1686
  %v1692 = vperm.slane %v1654, %v1686
  %v1693 = vperm.slane %v1657, %v1686
  %v1694 = vperm.slane %v1660, %v1686
  %v1695 = vperm.slane %v1663, %v1686
  %v1696 = vperm.slane %v1666, %v1686
  %v1697 = vperm.slane %v1669, %v1686
  %v1698 = vperm.slane %v1672, %v1686
  %v1699 = vperm.slane %v1675, %v1686
  %v1700 = vperm.slane %v1678, %v1686
  %v1701 = vperm.slane %v1681, %v1686
  %v1702 = vperm.slane %v1684, %v1686
  %vm1703 = vcmask 1041409
  %v1704 = vsel %vm1703, %v1688, %v1687
  %vm1705 = vcmask 1042434
  %v1706 = vsel %vm1705, %v1689, %v1704
  %vm1707 = vcmask 1043459
  %v1708 = vsel %vm1707, %v1690, %v1706
  %vm1709 = vcmask 1044484
  %v1710 = vsel %vm1709, %v1691, %v1708
  %vm1711 = vcmask 1045509
  %v1712 = vsel %vm1711, %v1692, %v1710
  %vm1713 = vcmask 1046534
  %v1714 = vsel %vm1713, %v1693, %v1712
  %vm1715 = vcmask 1047559
  %v1716 = vsel %vm1715, %v1694, %v1714
  %v1717 = vsel %vm1703, %v1696, %v1695
  %v1718 = vsel %vm1705, %v1697, %v1717
  %v1719 = vsel %vm1707, %v1698, %v1718
  %v1720 = vsel %vm1709, %v1699, %v1719
  %v1721 = vsel %vm1711, %v1700, %v1720
  %v1722 = vsel %vm1713, %v1701, %v1721
  %v1723 = vsel %vm1715, %v1702, %v1722
  %vm1726 = vcmask 64512
  %1727 = vst.msk [vmem:[%s6] sm:$0xff] %vm1726, %v1716
  %1728 = vst.msk [vmem:[%s6 + $0x8] sm:$0xff] %vm1726, %v1723
  // Predicated region
  $region26: #{melnet_tier_forward.23} parent=0 // pred_check
    _
  $region27: #{melnet_tier_forward.23} parent=0 // pred_check_branch
    %1730 = sbr.rel (0) target = $region29
  $region28: #{melnet_tier_forward.23} parent=0 // pred_region
    _
  $region29: #{melnet_tier_forward.23} parent=0 // pred_fallthru
    _
  // Predicated region
  $region30: #{melnet_tier_forward.23} parent=0 // pred_check
    _
  $region31: #{melnet_tier_forward.23} parent=0 // pred_check_branch
    %1732 = sbr.rel (0) target = $region33
  $region32: #{melnet_tier_forward.23} parent=0 // pred_region
    _
  $region33: #{melnet_tier_forward.23} parent=0 // pred_fallthru
    _

</llo_original>
